<compile_context>
chip_gen: v7x
topology: tpu7x:2x2x1
jax: 0.10.0
libtpu: 0.0.40
codegen_flags: <defaults>
</compile_context>

<pallas_src>
import functools
import math

import jax
import jax.numpy as jnp
from jax.experimental import pallas as pl
from jax.experimental.pallas import tpu as pltpu

DEPTH = 2          # Transformer.depth
LN_EPS = 1e-5      # torch.nn.LayerNorm default eps


# ----------------------------- shared math helpers -----------------------------
def _layer_norm_features(y, gamma, beta):
    """LayerNorm over the feature axis (axis -2) of a (D, S) column-layout tile."""
    mu = jnp.mean(y, axis=-2, keepdims=True)
    var = jnp.mean((y - mu) ** 2, axis=-2, keepdims=True)
    return (y - mu) * jax.lax.rsqrt(var + LN_EPS) * gamma + beta


def _layer_norm_rows(y, gamma, beta):
    """LayerNorm over the last (feature) axis -- used by the pure-JAX reference."""
    mu = jnp.mean(y, axis=-1, keepdims=True)
    var = jnp.mean((y - mu) ** 2, axis=-1, keepdims=True)
    return (y - mu) * jax.lax.rsqrt(var + LN_EPS) * gamma + beta


def _gelu_exact(x):
    # PyTorch activation='gelu' uses the exact erf-based GELU.
    return 0.5 * x * (1.0 + jax.lax.erf(x * 0.7071067811865476))


def _elu(x):
    # F.elu with alpha=1.0 (applied after each encoder layer).
    return jnp.where(x > 0, x, jnp.exp(jnp.minimum(x, 0.0)) - 1.0)


# ------------------------------------ kernel ------------------------------------
# Column ("transposed") layout: activations are (D, S) with S on the 128-lane axis.
# Weights keep PyTorch's (out_features, in_features) orientation; biases/LN params
# are stored as (dim, 1) columns so every broadcast runs along the lane axis.
def _transformer_kernel(x_ref,
                        wq_ref, wk_ref, wv_ref, bq_ref, bk_ref, bv_ref,
                        wo_ref, bo_ref, ln1w_ref, ln1b_ref,
                        w1_ref, b1_ref, w2_ref, b2_ref, ln2w_ref, ln2b_ref,
                        o_ref, *, num_heads):
    bt, d, s = x_ref.shape              # block: (batch_tile, D, S); S = lane axis
    hd = d // num_heads
    scale = 1.0 / math.sqrt(hd)
    tn = (((0,), (0,)), ((), ()))       # contract sublane axes:  a^T @ b
    nt = (((1,), (1,)), ((), ()))       # contract lane axes:     a @ b^T

    for b in range(bt):                 # whole batch tile in ONE grid step
        x0 = x_ref[b]                   # (D, S)
        h = x0
        for l in range(DEPTH):          # depth = 2, statically unrolled
            # ---- multi-head self-attention (dropout = identity in eval) ----
            attn = jnp.zeros((d, s), jnp.float32)
            for hh in range(num_heads):             # per-head weight slabs: no
                wq = wq_ref[l, hh]                  # activation slicing, no concat
                wk = wk_ref[l, hh]
                wv = wv_ref[l, hh]
                q = jnp.dot(wq, h, preferred_element_type=jnp.float32) + bq_ref[l, hh]
                k = jnp.dot(wk, h, preferred_element_type=jnp.float32) + bk_ref[l, hh]
                v = jnp.dot(wv, h, preferred_element_type=jnp.float32) + bv_ref[l, hh]
                # scores[i, j] = <q[:, i], k[:, j]> / sqrt(hd)        -> (S, S)
                sc = jax.lax.dot_general(q, k, tn,
                                         preferred_element_type=jnp.float32) * scale
                m = jnp.max(sc, axis=-1, keepdims=True)
                p = jnp.exp(sc - m)
                denom = jnp.sum(p, axis=-1, keepdims=True)            # (S, 1)
                # normalisation via EUP approx reciprocal (no VALU divide)
                p = p * pl.reciprocal(denom, approx=True)
                # ctx[:, i] = sum_j p[i, j] * v[:, j]                 -> (hd, S)
                ctx = jax.lax.dot_general(v, p, nt,
                                          preferred_element_type=jnp.float32)
                # fold this head's slab of the output projection (replaces concat)
                attn = attn + jnp.dot(wo_ref[l, hh], ctx,
                                      preferred_element_type=jnp.float32)
            attn = attn + bo_ref[l]                                   # (D, 1)

            # post-norm (norm_first = False default)
            h = _layer_norm_features(h + attn, ln1w_ref[l], ln1b_ref[l])

            # ---- feed-forward: linear1 -> gelu -> linear2 ----
            ff = jnp.dot(w1_ref[l], h, preferred_element_type=jnp.float32) + b1_ref[l]
            ff = _gelu_exact(ff)
            ff = jnp.dot(w2_ref[l], ff, preferred_element_type=jnp.float32) + b2_ref[l]
            h = _layer_norm_features(h + ff, ln2w_ref[l], ln2b_ref[l])

            h = _elu(h)                 # F.elu after each encoder layer

        # outer residual; lane-dense store: last dim is S, not 1
        o_ref[b] = (h + x0).astype(o_ref.dtype)


# ------------------------------------ wrappers ------------------------------------
_PARAM_ORDER = ("wq", "wk", "wv", "bq", "bk", "bv", "wo", "bo",
                "ln1w", "ln1b", "w1", "b1", "w2", "b2", "ln2w", "ln2b")


def _full_spec(shape):
    nd = len(shape)
    return pl.BlockSpec(shape, lambda i, _nd=nd: (0,) * _nd)


def _run_encoder(x_cols, params, num_heads, batch_tile):
    """x_cols: (B, D, S) column-layout activations."""
    b, d, s = x_cols.shape
    bt = b if batch_tile is None else batch_tile   # e.g. B//2 on v7x -> both TCs
    plist = [params[k] for k in _PARAM_ORDER]
    # NOTE: at these shapes everything fits VMEM trivially.  When scaling up, set
    # pltpu.CompilerParams(vmem_limit_bytes=...), give the constant-index weight
    # specs pipeline_mode=pl.Buffered(1), and shrink bt/S tiles before D (v7x has
    # 64 MiB VMEM vs 128 MiB on v5e/v6e).
    return pl.pallas_call(
        functools.partial(_transformer_kernel, num_heads=num_heads),
        grid=(pl.cdiv(b, bt),),
        in_specs=[pl.BlockSpec((bt, d, s), lambda i: (i, 0, 0))]
                 + [_full_spec(p.shape) for p in plist],
        out_specs=pl.BlockSpec((bt, d, s), lambda i: (i, 0, 0)),
        out_shape=jax.ShapeDtypeStruct((b, d, s), jnp.float32),
        compiler_params=pltpu.CompilerParams(dimension_semantics=("parallel",)),
    )(x_cols, *plist)


def transformer_forward(x, params, num_heads=1, *, batch_tile=None):
    """Faithful forward: x (B, S) -> (B, S), matching Transformer.forward.

    torch.unsqueeze(x, -1) forces d_model == input_dim == 1 (hence num_heads == 1);
    the kernel runs in a (B, D, S) layout so the sequence is the 128-lane axis.
    """
    assert num_heads == 1, "d_model == 1 implies a single attention head"
    x_cols = x.astype(jnp.float32)[:, None, :]          # (B, 1, S): lane-dense
    out = _run_encoder(x_cols, params, num_heads, batch_tile)
    return out[:, 0, :]                                  # torch.squeeze(x, -1)


def transformer_forward_general(x3, params, num_heads, *, batch_tile=None):
    """Generality path: x3 (B, S, D) -> (B, S, D) with real multi-head attention."""
    x_cols = jnp.swapaxes(x3.astype(jnp.float32), 1, 2)  # (B, D, S): lane-dense
    out = _run_encoder(x_cols, params, num_heads, batch_tile)
    return jnp.swapaxes(out, 1, 2)


# --------------------------- parameters & pure-JAX reference ---------------------------
def init_params(key, d_model, num_heads, d_ff, depth=DEPTH):
    """Deterministic synthetic parameters in the kernel's column layout.

    Weights keep PyTorch's (out_features, in_features) orientation and are pre-split
    per attention head; biases / LayerNorm params are (dim, 1) columns so in-kernel
    broadcasts run along the lane axis.
    """
    hd = d_model // num_heads
    keys = iter(jax.random.split(key, depth * 16))

    def nrm(shape, scale=0.2):
        return (scale * jax.random.normal(next(keys), shape)).astype(jnp.float32)

    layers = []
    for _ in range(depth):
        layers.append(dict(
            wq=nrm((num_heads, hd, d_model)), wk=nrm((num_heads, hd, d_model)),
            wv=nrm((num_heads, hd, d_model)),
            bq=nrm((num_heads, hd, 1), 0.05), bk=nrm((num_heads, hd, 1), 0.05),
            bv=nrm((num_heads, hd, 1), 0.05),
            wo=nrm((num_heads, d_model, hd)), bo=nrm((d_model, 1), 0.05),
            ln1w=jnp.ones((d_model, 1), jnp.float32), ln1b=nrm((d_model, 1), 0.05),
            w1=nrm((d_ff, d_model)), b1=nrm((d_ff, 1), 0.05),
            w2=nrm((d_model, d_ff)), b2=nrm((d_model, 1), 0.05),
            ln2w=jnp.ones((d_model, 1), jnp.float32), ln2b=nrm((d_model, 1), 0.05),
        ))
    return {k: jnp.stack([lyr[k] for lyr in layers]) for k in layers[0]}


def _reference_forward(x3, params, num_heads):
    """Pure-JAX reference in the standard (B, S, D) layout (PyTorch eval semantics)."""
    _, _, d = x3.shape
    hd = d // num_heads
    scale = 1.0 / math.sqrt(hd)
    h = x3.astype(jnp.float32)
    for l in range(DEPTH):
        attn = jnp.zeros_like(h)
        for hh in range(num_heads):
            q = jnp.einsum("bsd,fd->bsf", h, params["wq"][l, hh]) + params["bq"][l, hh, :, 0]
            k = jnp.einsum("bsd,fd->bsf", h, params["wk"][l, hh]) + params["bk"][l, hh, :, 0]
            v = jnp.einsum("bsd,fd->bsf", h, params["wv"][l, hh]) + params["bv"][l, hh, :, 0]
            p = jax.nn.softmax(jnp.einsum("bqf,bkf->bqk", q, k) * scale, axis=-1)
            ctx = jnp.einsum("bqk,bkf->bqf", p, v)
            attn = attn + jnp.einsum("bsf,df->bsd", ctx, params["wo"][l, hh])
        attn = attn + params["bo"][l, :, 0]
        h = _layer_norm_rows(h + attn, params["ln1w"][l, :, 0], params["ln1b"][l, :, 0])
        ff = jnp.einsum("bsd,fd->bsf", h, params["w1"][l]) + params["b1"][l, :, 0]
        ff = _gelu_exact(ff)
        ff = jnp.einsum("bsf,df->bsd", ff, params["w2"][l]) + params["b2"][l, :, 0]
        h = _layer_norm_rows(h + ff, params["ln2w"][l, :, 0], params["ln2b"][l, :, 0])
        h = _elu(h)
    return h + x3


if __name__ == "__main__":
    key = jax.random.PRNGKey(0)
    kx1, kp1, kx2, kp2 = jax.random.split(key, 4)

    # --- faithful configuration implied by the PyTorch forward ---
    # unsqueeze(-1) appends a size-1 feature dim => d_model = input_dim = 1, num_heads = 1.
    INPUT_DIM, NUM_HEADS = 1, 1
    B, S = 2, 16
    x = jax.random.normal(kx1, (B, S), dtype=jnp.float32)
    params = init_params(kp1, INPUT_DIM, NUM_HEADS, 4 * INPUT_DIM)
    out = transformer_forward(x, params, NUM_HEADS)
    jax.block_until_ready(out)
    assert out.shape == (B, S) and out.dtype == jnp.float32
    ref = _reference_forward(x[..., None], params, NUM_HEADS)[..., 0]
    assert bool(jnp.allclose(out, ref, atol=5e-2, rtol=5e-2)), "faithful path mismatch"

    # --- generality check: same kernel at a non-degenerate size (D=8, H=4) ---
    D2, H2, B2, S2 = 8, 4, 2, 8
    x2 = jax.random.normal(kx2, (B2, S2, D2), dtype=jnp.float32)
    params2 = init_params(kp2, D2, H2, 4 * D2)
    out2 = transformer_forward_general(x2, params2, H2)
    jax.block_until_ready(out2)
    assert out2.shape == (B2, S2, D2)
    ref2 = _reference_forward(x2, params2, H2)
    assert bool(jnp.allclose(out2, ref2, atol=5e-2, rtol=5e-2)), "general path mismatch"

    print("KERNEL_OK")
</pallas_src>

<mosaic_0001>
module attributes {stable_mosaic.version = 11 : i64} {
  func.func @_transformer_kernel(%arg0: i32, %arg1: memref<2x1x16xf32, #tpu.memory_space<vmem>>, %arg2: memref<2x1x1x1xf32, #tpu.memory_space<vmem>>, %arg3: memref<2x1x1x1xf32, #tpu.memory_space<vmem>>, %arg4: memref<2x1x1x1xf32, #tpu.memory_space<vmem>>, %arg5: memref<2x1x1x1xf32, #tpu.memory_space<vmem>>, %arg6: memref<2x1x1x1xf32, #tpu.memory_space<vmem>>, %arg7: memref<2x1x1x1xf32, #tpu.memory_space<vmem>>, %arg8: memref<2x1x1x1xf32, #tpu.memory_space<vmem>>, %arg9: memref<2x1x1xf32, #tpu.memory_space<vmem>>, %arg10: memref<2x1x1xf32, #tpu.memory_space<vmem>>, %arg11: memref<2x1x1xf32, #tpu.memory_space<vmem>>, %arg12: memref<2x4x1xf32, #tpu.memory_space<vmem>>, %arg13: memref<2x4x1xf32, #tpu.memory_space<vmem>>, %arg14: memref<2x1x4xf32, #tpu.memory_space<vmem>>, %arg15: memref<2x1x1xf32, #tpu.memory_space<vmem>>, %arg16: memref<2x1x1xf32, #tpu.memory_space<vmem>>, %arg17: memref<2x1x1xf32, #tpu.memory_space<vmem>>, %arg18: memref<2x1x16xf32, #tpu.memory_space<vmem>>) attributes {dimension_semantics = [#tpu.dimension_semantics<parallel>], iteration_bounds = array<i64: 1>, scalar_prefetch = 0 : i64, scratch_operands = 0 : i64, tpu.core_type = #tpu.core_type<tc>, window_params = [{transform_indices = @transform_0, window_bounds = array<i64: 2, 1, 16>}, {pipeline_mode = #tpu.pipeline_mode<synchronous>, transform_indices = @transform_1, window_bounds = array<i64: 2, 1, 1, 1>}, {pipeline_mode = #tpu.pipeline_mode<synchronous>, transform_indices = @transform_2, window_bounds = array<i64: 2, 1, 1, 1>}, {pipeline_mode = #tpu.pipeline_mode<synchronous>, transform_indices = @transform_3, window_bounds = array<i64: 2, 1, 1, 1>}, {pipeline_mode = #tpu.pipeline_mode<synchronous>, transform_indices = @transform_4, window_bounds = array<i64: 2, 1, 1, 1>}, {pipeline_mode = #tpu.pipeline_mode<synchronous>, transform_indices = @transform_5, window_bounds = array<i64: 2, 1, 1, 1>}, {pipeline_mode = #tpu.pipeline_mode<synchronous>, transform_indices = @transform_6, window_bounds = array<i64: 2, 1, 1, 1>}, {pipeline_mode = #tpu.pipeline_mode<synchronous>, transform_indices = @transform_7, window_bounds = array<i64: 2, 1, 1, 1>}, {pipeline_mode = #tpu.pipeline_mode<synchronous>, transform_indices = @transform_8, window_bounds = array<i64: 2, 1, 1>}, {pipeline_mode = #tpu.pipeline_mode<synchronous>, transform_indices = @transform_9, window_bounds = array<i64: 2, 1, 1>}, {pipeline_mode = #tpu.pipeline_mode<synchronous>, transform_indices = @transform_10, window_bounds = array<i64: 2, 1, 1>}, {pipeline_mode = #tpu.pipeline_mode<synchronous>, transform_indices = @transform_11, window_bounds = array<i64: 2, 4, 1>}, {pipeline_mode = #tpu.pipeline_mode<synchronous>, transform_indices = @transform_12, window_bounds = array<i64: 2, 4, 1>}, {pipeline_mode = #tpu.pipeline_mode<synchronous>, transform_indices = @transform_13, window_bounds = array<i64: 2, 1, 4>}, {pipeline_mode = #tpu.pipeline_mode<synchronous>, transform_indices = @transform_14, window_bounds = array<i64: 2, 1, 1>}, {pipeline_mode = #tpu.pipeline_mode<synchronous>, transform_indices = @transform_15, window_bounds = array<i64: 2, 1, 1>}, {pipeline_mode = #tpu.pipeline_mode<synchronous>, transform_indices = @transform_16, window_bounds = array<i64: 2, 1, 1>}, {transform_indices = @transform_17, window_bounds = array<i64: 2, 1, 16>}]} {
    %c0 = arith.constant 0 : index
    %c0_0 = arith.constant 0 : index
    %c0_1 = arith.constant 0 : index
    %0 = vector.load %arg1[%c0, %c0_0, %c0_1] : memref<2x1x16xf32, #tpu.memory_space<vmem>>, vector<1x1x16xf32>
    %1 = vector.shape_cast %0 : vector<1x1x16xf32> to vector<1x16xf32>
    %cst = arith.constant 0.000000e+00 : f32
    %2 = vector.broadcast %cst : f32 to vector<1x16xf32>
    %c0_2 = arith.constant 0 : index
    %c0_3 = arith.constant 0 : index
    %c0_4 = arith.constant 0 : index
    %c0_5 = arith.constant 0 : index
    %3 = vector.load %arg2[%c0_2, %c0_3, %c0_4, %c0_5] : memref<2x1x1x1xf32, #tpu.memory_space<vmem>>, vector<1x1x1x1xf32>
    %4 = vector.shape_cast %3 : vector<1x1x1x1xf32> to vector<1x1xf32>
    %c0_6 = arith.constant 0 : index
    %c0_7 = arith.constant 0 : index
    %c0_8 = arith.constant 0 : index
    %c0_9 = arith.constant 0 : index
    %5 = vector.load %arg3[%c0_6, %c0_7, %c0_8, %c0_9] : memref<2x1x1x1xf32, #tpu.memory_space<vmem>>, vector<1x1x1x1xf32>
    %6 = vector.shape_cast %5 : vector<1x1x1x1xf32> to vector<1x1xf32>
    %c0_10 = arith.constant 0 : index
    %c0_11 = arith.constant 0 : index
    %c0_12 = arith.constant 0 : index
    %c0_13 = arith.constant 0 : index
    %7 = vector.load %arg4[%c0_10, %c0_11, %c0_12, %c0_13] : memref<2x1x1x1xf32, #tpu.memory_space<vmem>>, vector<1x1x1x1xf32>
    %8 = vector.shape_cast %7 : vector<1x1x1x1xf32> to vector<1x1xf32>
    %cst_14 = arith.constant dense<0.000000e+00> : vector<1x16xf32>
    %9 = tpu.matmul %4, %1, %cst_14 {dimension_numbers = #tpu.dot_dimension_numbers<[1], [0], [0], [1], [0, 0, 1, 1], [], []>} : vector<1x1xf32>, vector<1x16xf32>, vector<1x16xf32> -> vector<1x16xf32>
    %c0_15 = arith.constant 0 : index
    %c0_16 = arith.constant 0 : index
    %c0_17 = arith.constant 0 : index
    %c0_18 = arith.constant 0 : index
    %10 = vector.load %arg5[%c0_15, %c0_16, %c0_17, %c0_18] : memref<2x1x1x1xf32, #tpu.memory_space<vmem>>, vector<1x1x1x1xf32>
    %11 = vector.shape_cast %10 : vector<1x1x1x1xf32> to vector<1x1xf32>
    %12 = vector.broadcast %11 : vector<1x1xf32> to vector<1x16xf32>
    %13 = arith.addf %9, %12 : vector<1x16xf32>
    %cst_19 = arith.constant dense<0.000000e+00> : vector<1x16xf32>
    %14 = tpu.matmul %6, %1, %cst_19 {dimension_numbers = #tpu.dot_dimension_numbers<[1], [0], [0], [1], [0, 0, 1, 1], [], []>} : vector<1x1xf32>, vector<1x16xf32>, vector<1x16xf32> -> vector<1x16xf32>
    %c0_20 = arith.constant 0 : index
    %c0_21 = arith.constant 0 : index
    %c0_22 = arith.constant 0 : index
    %c0_23 = arith.constant 0 : index
    %15 = vector.load %arg6[%c0_20, %c0_21, %c0_22, %c0_23] : memref<2x1x1x1xf32, #tpu.memory_space<vmem>>, vector<1x1x1x1xf32>
    %16 = vector.shape_cast %15 : vector<1x1x1x1xf32> to vector<1x1xf32>
    %17 = vector.broadcast %16 : vector<1x1xf32> to vector<1x16xf32>
    %18 = arith.addf %14, %17 : vector<1x16xf32>
    %cst_24 = arith.constant dense<0.000000e+00> : vector<1x16xf32>
    %19 = tpu.matmul %8, %1, %cst_24 {dimension_numbers = #tpu.dot_dimension_numbers<[1], [0], [0], [1], [0, 0, 1, 1], [], []>} : vector<1x1xf32>, vector<1x16xf32>, vector<1x16xf32> -> vector<1x16xf32>
    %c0_25 = arith.constant 0 : index
    %c0_26 = arith.constant 0 : index
    %c0_27 = arith.constant 0 : index
    %c0_28 = arith.constant 0 : index
    %20 = vector.load %arg7[%c0_25, %c0_26, %c0_27, %c0_28] : memref<2x1x1x1xf32, #tpu.memory_space<vmem>>, vector<1x1x1x1xf32>
    %21 = vector.shape_cast %20 : vector<1x1x1x1xf32> to vector<1x1xf32>
    %22 = vector.broadcast %21 : vector<1x1xf32> to vector<1x16xf32>
    %23 = arith.addf %19, %22 : vector<1x16xf32>
    %cst_29 = arith.constant dense<0.000000e+00> : vector<16x16xf32>
    %24 = tpu.matmul %13, %18, %cst_29 {dimension_numbers = #tpu.dot_dimension_numbers<[0], [0], [1], [1], [0, 1, 1, 1], [], []>} : vector<1x16xf32>, vector<1x16xf32>, vector<16x16xf32> -> vector<16x16xf32>
    %cst_30 = arith.constant 1.000000e+00 : f32
    %25 = vector.broadcast %cst_30 : f32 to vector<16x16xf32>
    %26 = arith.mulf %24, %25 : vector<16x16xf32>
    %cst_31 = arith.constant dense<0xFF800000> : vector<16xf32>
    %27 = vector.multi_reduction <maximumf>, %26, %cst_31 [1] : vector<16x16xf32> to vector<16xf32>
    %28 = vector.shape_cast %27 : vector<16xf32> to vector<16x1xf32>
    %29 = vector.broadcast %28 : vector<16x1xf32> to vector<16x16xf32>
    %30 = arith.subf %26, %29 : vector<16x16xf32>
    %31 = math.exp %30 : vector<16x16xf32>
    %cst_32 = arith.constant dense<0.000000e+00> : vector<16xf32>
    %32 = vector.multi_reduction <add>, %31, %cst_32 [1] : vector<16x16xf32> to vector<16xf32>
    %33 = vector.shape_cast %32 : vector<16xf32> to vector<16x1xf32>
    %34 = tpu.reciprocal %33 {approx = true} : vector<16x1xf32> -> vector<16x1xf32>
    %35 = vector.broadcast %34 : vector<16x1xf32> to vector<16x16xf32>
    %36 = arith.mulf %31, %35 : vector<16x16xf32>
    %cst_33 = arith.constant dense<0.000000e+00> : vector<1x16xf32>
    %37 = tpu.matmul %23, %36, %cst_33 {dimension_numbers = #tpu.dot_dimension_numbers<[1], [1], [0], [0], [0, 0, 1, 0], [], []>} : vector<1x16xf32>, vector<16x16xf32>, vector<1x16xf32> -> vector<1x16xf32>
    %c0_34 = arith.constant 0 : index
    %c0_35 = arith.constant 0 : index
    %c0_36 = arith.constant 0 : index
    %c0_37 = arith.constant 0 : index
    %38 = vector.load %arg8[%c0_34, %c0_35, %c0_36, %c0_37] : memref<2x1x1x1xf32, #tpu.memory_space<vmem>>, vector<1x1x1x1xf32>
    %39 = vector.shape_cast %38 : vector<1x1x1x1xf32> to vector<1x1xf32>
    %cst_38 = arith.constant dense<0.000000e+00> : vector<1x16xf32>
    %40 = tpu.matmul %39, %37, %cst_38 {dimension_numbers = #tpu.dot_dimension_numbers<[1], [0], [0], [1], [0, 0, 1, 1], [], []>} : vector<1x1xf32>, vector<1x16xf32>, vector<1x16xf32> -> vector<1x16xf32>
    %41 = arith.addf %2, %40 : vector<1x16xf32>
    %c0_39 = arith.constant 0 : index
    %c0_40 = arith.constant 0 : index
    %c0_41 = arith.constant 0 : index
    %42 = vector.load %arg9[%c0_39, %c0_40, %c0_41] : memref<2x1x1xf32, #tpu.memory_space<vmem>>, vector<1x1x1xf32>
    %43 = vector.shape_cast %42 : vector<1x1x1xf32> to vector<1x1xf32>
    %44 = vector.broadcast %43 : vector<1x1xf32> to vector<1x16xf32>
    %45 = arith.addf %41, %44 : vector<1x16xf32>
    %46 = arith.addf %1, %45 : vector<1x16xf32>
    %c0_42 = arith.constant 0 : index
    %c0_43 = arith.constant 0 : index
    %c0_44 = arith.constant 0 : index
    %47 = vector.load %arg10[%c0_42, %c0_43, %c0_44] : memref<2x1x1xf32, #tpu.memory_space<vmem>>, vector<1x1x1xf32>
    %48 = vector.shape_cast %47 : vector<1x1x1xf32> to vector<1x1xf32>
    %c0_45 = arith.constant 0 : index
    %c0_46 = arith.constant 0 : index
    %c0_47 = arith.constant 0 : index
    %49 = vector.load %arg11[%c0_45, %c0_46, %c0_47] : memref<2x1x1xf32, #tpu.memory_space<vmem>>, vector<1x1x1xf32>
    %50 = vector.shape_cast %49 : vector<1x1x1xf32> to vector<1x1xf32>
    %cst_48 = arith.constant dense<0.000000e+00> : vector<16xf32>
    %51 = vector.multi_reduction <add>, %46, %cst_48 [0] : vector<1x16xf32> to vector<16xf32>
    %52 = vector.shape_cast %51 : vector<16xf32> to vector<1x16xf32>
    %cst_49 = arith.constant 1.000000e+00 : f32
    %53 = vector.broadcast %cst_49 : f32 to vector<1x16xf32>
    %54 = arith.divf %52, %53 : vector<1x16xf32>
    %55 = arith.subf %46, %54 : vector<1x16xf32>
    %56 = arith.mulf %55, %55 : vector<1x16xf32>
    %cst_50 = arith.constant dense<0.000000e+00> : vector<16xf32>
    %57 = vector.multi_reduction <add>, %56, %cst_50 [0] : vector<1x16xf32> to vector<16xf32>
    %58 = vector.shape_cast %57 : vector<16xf32> to vector<1x16xf32>
    %cst_51 = arith.constant 1.000000e+00 : f32
    %59 = vector.broadcast %cst_51 : f32 to vector<1x16xf32>
    %60 = arith.divf %58, %59 : vector<1x16xf32>
    %61 = arith.subf %46, %54 : vector<1x16xf32>
    %cst_52 = arith.constant 9.99999974E-6 : f32
    %62 = vector.broadcast %cst_52 : f32 to vector<1x16xf32>
    %63 = arith.addf %60, %62 : vector<1x16xf32>
    %64 = math.rsqrt %63 : vector<1x16xf32>
    %65 = arith.mulf %61, %64 : vector<1x16xf32>
    %66 = vector.broadcast %48 : vector<1x1xf32> to vector<1x16xf32>
    %67 = arith.mulf %65, %66 : vector<1x16xf32>
    %68 = vector.broadcast %50 : vector<1x1xf32> to vector<1x16xf32>
    %69 = arith.addf %67, %68 : vector<1x16xf32>
    %c0_53 = arith.constant 0 : index
    %c0_54 = arith.constant 0 : index
    %c0_55 = arith.constant 0 : index
    %70 = vector.load %arg12[%c0_53, %c0_54, %c0_55] : memref<2x4x1xf32, #tpu.memory_space<vmem>>, vector<1x4x1xf32>
    %71 = vector.shape_cast %70 : vector<1x4x1xf32> to vector<4x1xf32>
    %cst_56 = arith.constant dense<0.000000e+00> : vector<4x16xf32>
    %72 = tpu.matmul %71, %69, %cst_56 {dimension_numbers = #tpu.dot_dimension_numbers<[1], [0], [0], [1], [0, 0, 1, 1], [], []>} : vector<4x1xf32>, vector<1x16xf32>, vector<4x16xf32> -> vector<4x16xf32>
    %c0_57 = arith.constant 0 : index
    %c0_58 = arith.constant 0 : index
    %c0_59 = arith.constant 0 : index
    %73 = vector.load %arg13[%c0_57, %c0_58, %c0_59] : memref<2x4x1xf32, #tpu.memory_space<vmem>>, vector<1x4x1xf32>
    %74 = vector.shape_cast %73 : vector<1x4x1xf32> to vector<4x1xf32>
    %75 = vector.broadcast %74 : vector<4x1xf32> to vector<4x16xf32>
    %76 = arith.addf %72, %75 : vector<4x16xf32>
    %cst_60 = arith.constant 5.000000e-01 : f32
    %77 = vector.broadcast %cst_60 : f32 to vector<4x16xf32>
    %78 = arith.mulf %77, %76 : vector<4x16xf32>
    %cst_61 = arith.constant 0.707106769 : f32
    %79 = vector.broadcast %cst_61 : f32 to vector<4x16xf32>
    %80 = arith.mulf %76, %79 : vector<4x16xf32>
    %81 = math.erf %80 : vector<4x16xf32>
    %cst_62 = arith.constant 1.000000e+00 : f32
    %82 = vector.broadcast %cst_62 : f32 to vector<4x16xf32>
    %83 = arith.addf %82, %81 : vector<4x16xf32>
    %84 = arith.mulf %78, %83 : vector<4x16xf32>
    %c0_63 = arith.constant 0 : index
    %c0_64 = arith.constant 0 : index
    %c0_65 = arith.constant 0 : index
    %85 = vector.load %arg14[%c0_63, %c0_64, %c0_65] : memref<2x1x4xf32, #tpu.memory_space<vmem>>, vector<1x1x4xf32>
    %86 = vector.shape_cast %85 : vector<1x1x4xf32> to vector<1x4xf32>
    %cst_66 = arith.constant dense<0.000000e+00> : vector<1x16xf32>
    %87 = tpu.matmul %86, %84, %cst_66 {dimension_numbers = #tpu.dot_dimension_numbers<[1], [0], [0], [1], [0, 0, 1, 1], [], []>} : vector<1x4xf32>, vector<4x16xf32>, vector<1x16xf32> -> vector<1x16xf32>
    %c0_67 = arith.constant 0 : index
    %c0_68 = arith.constant 0 : index
    %c0_69 = arith.constant 0 : index
    %88 = vector.load %arg15[%c0_67, %c0_68, %c0_69] : memref<2x1x1xf32, #tpu.memory_space<vmem>>, vector<1x1x1xf32>
    %89 = vector.shape_cast %88 : vector<1x1x1xf32> to vector<1x1xf32>
    %90 = vector.broadcast %89 : vector<1x1xf32> to vector<1x16xf32>
    %91 = arith.addf %87, %90 : vector<1x16xf32>
    %92 = arith.addf %69, %91 : vector<1x16xf32>
    %c0_70 = arith.constant 0 : index
    %c0_71 = arith.constant 0 : index
    %c0_72 = arith.constant 0 : index
    %93 = vector.load %arg16[%c0_70, %c0_71, %c0_72] : memref<2x1x1xf32, #tpu.memory_space<vmem>>, vector<1x1x1xf32>
    %94 = vector.shape_cast %93 : vector<1x1x1xf32> to vector<1x1xf32>
    %c0_73 = arith.constant 0 : index
    %c0_74 = arith.constant 0 : index
    %c0_75 = arith.constant 0 : index
    %95 = vector.load %arg17[%c0_73, %c0_74, %c0_75] : memref<2x1x1xf32, #tpu.memory_space<vmem>>, vector<1x1x1xf32>
    %96 = vector.shape_cast %95 : vector<1x1x1xf32> to vector<1x1xf32>
    %cst_76 = arith.constant dense<0.000000e+00> : vector<16xf32>
    %97 = vector.multi_reduction <add>, %92, %cst_76 [0] : vector<1x16xf32> to vector<16xf32>
    %98 = vector.shape_cast %97 : vector<16xf32> to vector<1x16xf32>
    %cst_77 = arith.constant 1.000000e+00 : f32
    %99 = vector.broadcast %cst_77 : f32 to vector<1x16xf32>
    %100 = arith.divf %98, %99 : vector<1x16xf32>
    %101 = arith.subf %92, %100 : vector<1x16xf32>
    %102 = arith.mulf %101, %101 : vector<1x16xf32>
    %cst_78 = arith.constant dense<0.000000e+00> : vector<16xf32>
    %103 = vector.multi_reduction <add>, %102, %cst_78 [0] : vector<1x16xf32> to vector<16xf32>
    %104 = vector.shape_cast %103 : vector<16xf32> to vector<1x16xf32>
    %cst_79 = arith.constant 1.000000e+00 : f32
    %105 = vector.broadcast %cst_79 : f32 to vector<1x16xf32>
    %106 = arith.divf %104, %105 : vector<1x16xf32>
    %107 = arith.subf %92, %100 : vector<1x16xf32>
    %cst_80 = arith.constant 9.99999974E-6 : f32
    %108 = vector.broadcast %cst_80 : f32 to vector<1x16xf32>
    %109 = arith.addf %106, %108 : vector<1x16xf32>
    %110 = math.rsqrt %109 : vector<1x16xf32>
    %111 = arith.mulf %107, %110 : vector<1x16xf32>
    %112 = vector.broadcast %94 : vector<1x1xf32> to vector<1x16xf32>
    %113 = arith.mulf %111, %112 : vector<1x16xf32>
    %114 = vector.broadcast %96 : vector<1x1xf32> to vector<1x16xf32>
    %115 = arith.addf %113, %114 : vector<1x16xf32>
    %cst_81 = arith.constant 0.000000e+00 : f32
    %116 = vector.broadcast %cst_81 : f32 to vector<1x16xf32>
    %117 = arith.cmpf ogt, %115, %116 : vector<1x16xf32>
    %cst_82 = arith.constant 0.000000e+00 : f32
    %118 = vector.broadcast %cst_82 : f32 to vector<1x16xf32>
    %119 = arith.minimumf %115, %118 : vector<1x16xf32>
    %120 = math.exp %119 : vector<1x16xf32>
    %cst_83 = arith.constant 1.000000e+00 : f32
    %121 = vector.broadcast %cst_83 : f32 to vector<1x16xf32>
    %122 = arith.subf %120, %121 : vector<1x16xf32>
    %123 = arith.select %117, %115, %122 : vector<1x16xi1>, vector<1x16xf32>
    %cst_84 = arith.constant 0.000000e+00 : f32
    %124 = vector.broadcast %cst_84 : f32 to vector<1x16xf32>
    %c1 = arith.constant 1 : index
    %c0_85 = arith.constant 0 : index
    %c0_86 = arith.constant 0 : index
    %c0_87 = arith.constant 0 : index
    %125 = vector.load %arg2[%c1, %c0_85, %c0_86, %c0_87] : memref<2x1x1x1xf32, #tpu.memory_space<vmem>>, vector<1x1x1x1xf32>
    %126 = vector.shape_cast %125 : vector<1x1x1x1xf32> to vector<1x1xf32>
    %c1_88 = arith.constant 1 : index
    %c0_89 = arith.constant 0 : index
    %c0_90 = arith.constant 0 : index
    %c0_91 = arith.constant 0 : index
    %127 = vector.load %arg3[%c1_88, %c0_89, %c0_90, %c0_91] : memref<2x1x1x1xf32, #tpu.memory_space<vmem>>, vector<1x1x1x1xf32>
    %128 = vector.shape_cast %127 : vector<1x1x1x1xf32> to vector<1x1xf32>
    %c1_92 = arith.constant 1 : index
    %c0_93 = arith.constant 0 : index
    %c0_94 = arith.constant 0 : index
    %c0_95 = arith.constant 0 : index
    %129 = vector.load %arg4[%c1_92, %c0_93, %c0_94, %c0_95] : memref<2x1x1x1xf32, #tpu.memory_space<vmem>>, vector<1x1x1x1xf32>
    %130 = vector.shape_cast %129 : vector<1x1x1x1xf32> to vector<1x1xf32>
    %cst_96 = arith.constant dense<0.000000e+00> : vector<1x16xf32>
    %131 = tpu.matmul %126, %123, %cst_96 {dimension_numbers = #tpu.dot_dimension_numbers<[1], [0], [0], [1], [0, 0, 1, 1], [], []>} : vector<1x1xf32>, vector<1x16xf32>, vector<1x16xf32> -> vector<1x16xf32>
    %c1_97 = arith.constant 1 : index
    %c0_98 = arith.constant 0 : index
    %c0_99 = arith.constant 0 : index
    %c0_100 = arith.constant 0 : index
    %132 = vector.load %arg5[%c1_97, %c0_98, %c0_99, %c0_100] : memref<2x1x1x1xf32, #tpu.memory_space<vmem>>, vector<1x1x1x1xf32>
    %133 = vector.shape_cast %132 : vector<1x1x1x1xf32> to vector<1x1xf32>
    %134 = vector.broadcast %133 : vector<1x1xf32> to vector<1x16xf32>
    %135 = arith.addf %131, %134 : vector<1x16xf32>
    %cst_101 = arith.constant dense<0.000000e+00> : vector<1x16xf32>
    %136 = tpu.matmul %128, %123, %cst_101 {dimension_numbers = #tpu.dot_dimension_numbers<[1], [0], [0], [1], [0, 0, 1, 1], [], []>} : vector<1x1xf32>, vector<1x16xf32>, vector<1x16xf32> -> vector<1x16xf32>
    %c1_102 = arith.constant 1 : index
    %c0_103 = arith.constant 0 : index
    %c0_104 = arith.constant 0 : index
    %c0_105 = arith.constant 0 : index
    %137 = vector.load %arg6[%c1_102, %c0_103, %c0_104, %c0_105] : memref<2x1x1x1xf32, #tpu.memory_space<vmem>>, vector<1x1x1x1xf32>
    %138 = vector.shape_cast %137 : vector<1x1x1x1xf32> to vector<1x1xf32>
    %139 = vector.broadcast %138 : vector<1x1xf32> to vector<1x16xf32>
    %140 = arith.addf %136, %139 : vector<1x16xf32>
    %cst_106 = arith.constant dense<0.000000e+00> : vector<1x16xf32>
    %141 = tpu.matmul %130, %123, %cst_106 {dimension_numbers = #tpu.dot_dimension_numbers<[1], [0], [0], [1], [0, 0, 1, 1], [], []>} : vector<1x1xf32>, vector<1x16xf32>, vector<1x16xf32> -> vector<1x16xf32>
    %c1_107 = arith.constant 1 : index
    %c0_108 = arith.constant 0 : index
    %c0_109 = arith.constant 0 : index
    %c0_110 = arith.constant 0 : index
    %142 = vector.load %arg7[%c1_107, %c0_108, %c0_109, %c0_110] : memref<2x1x1x1xf32, #tpu.memory_space<vmem>>, vector<1x1x1x1xf32>
    %143 = vector.shape_cast %142 : vector<1x1x1x1xf32> to vector<1x1xf32>
    %144 = vector.broadcast %143 : vector<1x1xf32> to vector<1x16xf32>
    %145 = arith.addf %141, %144 : vector<1x16xf32>
    %cst_111 = arith.constant dense<0.000000e+00> : vector<16x16xf32>
    %146 = tpu.matmul %135, %140, %cst_111 {dimension_numbers = #tpu.dot_dimension_numbers<[0], [0], [1], [1], [0, 1, 1, 1], [], []>} : vector<1x16xf32>, vector<1x16xf32>, vector<16x16xf32> -> vector<16x16xf32>
    %cst_112 = arith.constant 1.000000e+00 : f32
    %147 = vector.broadcast %cst_112 : f32 to vector<16x16xf32>
    %148 = arith.mulf %146, %147 : vector<16x16xf32>
    %cst_113 = arith.constant dense<0xFF800000> : vector<16xf32>
    %149 = vector.multi_reduction <maximumf>, %148, %cst_113 [1] : vector<16x16xf32> to vector<16xf32>
    %150 = vector.shape_cast %149 : vector<16xf32> to vector<16x1xf32>
    %151 = vector.broadcast %150 : vector<16x1xf32> to vector<16x16xf32>
    %152 = arith.subf %148, %151 : vector<16x16xf32>
    %153 = math.exp %152 : vector<16x16xf32>
    %cst_114 = arith.constant dense<0.000000e+00> : vector<16xf32>
    %154 = vector.multi_reduction <add>, %153, %cst_114 [1] : vector<16x16xf32> to vector<16xf32>
    %155 = vector.shape_cast %154 : vector<16xf32> to vector<16x1xf32>
    %156 = tpu.reciprocal %155 {approx = true} : vector<16x1xf32> -> vector<16x1xf32>
    %157 = vector.broadcast %156 : vector<16x1xf32> to vector<16x16xf32>
    %158 = arith.mulf %153, %157 : vector<16x16xf32>
    %cst_115 = arith.constant dense<0.000000e+00> : vector<1x16xf32>
    %159 = tpu.matmul %145, %158, %cst_115 {dimension_numbers = #tpu.dot_dimension_numbers<[1], [1], [0], [0], [0, 0, 1, 0], [], []>} : vector<1x16xf32>, vector<16x16xf32>, vector<1x16xf32> -> vector<1x16xf32>
    %c1_116 = arith.constant 1 : index
    %c0_117 = arith.constant 0 : index
    %c0_118 = arith.constant 0 : index
    %c0_119 = arith.constant 0 : index
    %160 = vector.load %arg8[%c1_116, %c0_117, %c0_118, %c0_119] : memref<2x1x1x1xf32, #tpu.memory_space<vmem>>, vector<1x1x1x1xf32>
    %161 = vector.shape_cast %160 : vector<1x1x1x1xf32> to vector<1x1xf32>
    %cst_120 = arith.constant dense<0.000000e+00> : vector<1x16xf32>
    %162 = tpu.matmul %161, %159, %cst_120 {dimension_numbers = #tpu.dot_dimension_numbers<[1], [0], [0], [1], [0, 0, 1, 1], [], []>} : vector<1x1xf32>, vector<1x16xf32>, vector<1x16xf32> -> vector<1x16xf32>
    %163 = arith.addf %124, %162 : vector<1x16xf32>
    %c1_121 = arith.constant 1 : index
    %c0_122 = arith.constant 0 : index
    %c0_123 = arith.constant 0 : index
    %164 = vector.load %arg9[%c1_121, %c0_122, %c0_123] : memref<2x1x1xf32, #tpu.memory_space<vmem>>, vector<1x1x1xf32>
    %165 = vector.shape_cast %164 : vector<1x1x1xf32> to vector<1x1xf32>
    %166 = vector.broadcast %165 : vector<1x1xf32> to vector<1x16xf32>
    %167 = arith.addf %163, %166 : vector<1x16xf32>
    %168 = arith.addf %123, %167 : vector<1x16xf32>
    %c1_124 = arith.constant 1 : index
    %c0_125 = arith.constant 0 : index
    %c0_126 = arith.constant 0 : index
    %169 = vector.load %arg10[%c1_124, %c0_125, %c0_126] : memref<2x1x1xf32, #tpu.memory_space<vmem>>, vector<1x1x1xf32>
    %170 = vector.shape_cast %169 : vector<1x1x1xf32> to vector<1x1xf32>
    %c1_127 = arith.constant 1 : index
    %c0_128 = arith.constant 0 : index
    %c0_129 = arith.constant 0 : index
    %171 = vector.load %arg11[%c1_127, %c0_128, %c0_129] : memref<2x1x1xf32, #tpu.memory_space<vmem>>, vector<1x1x1xf32>
    %172 = vector.shape_cast %171 : vector<1x1x1xf32> to vector<1x1xf32>
    %cst_130 = arith.constant dense<0.000000e+00> : vector<16xf32>
    %173 = vector.multi_reduction <add>, %168, %cst_130 [0] : vector<1x16xf32> to vector<16xf32>
    %174 = vector.shape_cast %173 : vector<16xf32> to vector<1x16xf32>
    %cst_131 = arith.constant 1.000000e+00 : f32
    %175 = vector.broadcast %cst_131 : f32 to vector<1x16xf32>
    %176 = arith.divf %174, %175 : vector<1x16xf32>
    %177 = arith.subf %168, %176 : vector<1x16xf32>
    %178 = arith.mulf %177, %177 : vector<1x16xf32>
    %cst_132 = arith.constant dense<0.000000e+00> : vector<16xf32>
    %179 = vector.multi_reduction <add>, %178, %cst_132 [0] : vector<1x16xf32> to vector<16xf32>
    %180 = vector.shape_cast %179 : vector<16xf32> to vector<1x16xf32>
    %cst_133 = arith.constant 1.000000e+00 : f32
    %181 = vector.broadcast %cst_133 : f32 to vector<1x16xf32>
    %182 = arith.divf %180, %181 : vector<1x16xf32>
    %183 = arith.subf %168, %176 : vector<1x16xf32>
    %cst_134 = arith.constant 9.99999974E-6 : f32
    %184 = vector.broadcast %cst_134 : f32 to vector<1x16xf32>
    %185 = arith.addf %182, %184 : vector<1x16xf32>
    %186 = math.rsqrt %185 : vector<1x16xf32>
    %187 = arith.mulf %183, %186 : vector<1x16xf32>
    %188 = vector.broadcast %170 : vector<1x1xf32> to vector<1x16xf32>
    %189 = arith.mulf %187, %188 : vector<1x16xf32>
    %190 = vector.broadcast %172 : vector<1x1xf32> to vector<1x16xf32>
    %191 = arith.addf %189, %190 : vector<1x16xf32>
    %c1_135 = arith.constant 1 : index
    %c0_136 = arith.constant 0 : index
    %c0_137 = arith.constant 0 : index
    %192 = vector.load %arg12[%c1_135, %c0_136, %c0_137] : memref<2x4x1xf32, #tpu.memory_space<vmem>>, vector<1x4x1xf32>
    %193 = vector.shape_cast %192 : vector<1x4x1xf32> to vector<4x1xf32>
    %cst_138 = arith.constant dense<0.000000e+00> : vector<4x16xf32>
    %194 = tpu.matmul %193, %191, %cst_138 {dimension_numbers = #tpu.dot_dimension_numbers<[1], [0], [0], [1], [0, 0, 1, 1], [], []>} : vector<4x1xf32>, vector<1x16xf32>, vector<4x16xf32> -> vector<4x16xf32>
    %c1_139 = arith.constant 1 : index
    %c0_140 = arith.constant 0 : index
    %c0_141 = arith.constant 0 : index
    %195 = vector.load %arg13[%c1_139, %c0_140, %c0_141] : memref<2x4x1xf32, #tpu.memory_space<vmem>>, vector<1x4x1xf32>
    %196 = vector.shape_cast %195 : vector<1x4x1xf32> to vector<4x1xf32>
    %197 = vector.broadcast %196 : vector<4x1xf32> to vector<4x16xf32>
    %198 = arith.addf %194, %197 : vector<4x16xf32>
    %cst_142 = arith.constant 5.000000e-01 : f32
    %199 = vector.broadcast %cst_142 : f32 to vector<4x16xf32>
    %200 = arith.mulf %199, %198 : vector<4x16xf32>
    %cst_143 = arith.constant 0.707106769 : f32
    %201 = vector.broadcast %cst_143 : f32 to vector<4x16xf32>
    %202 = arith.mulf %198, %201 : vector<4x16xf32>
    %203 = math.erf %202 : vector<4x16xf32>
    %cst_144 = arith.constant 1.000000e+00 : f32
    %204 = vector.broadcast %cst_144 : f32 to vector<4x16xf32>
    %205 = arith.addf %204, %203 : vector<4x16xf32>
    %206 = arith.mulf %200, %205 : vector<4x16xf32>
    %c1_145 = arith.constant 1 : index
    %c0_146 = arith.constant 0 : index
    %c0_147 = arith.constant 0 : index
    %207 = vector.load %arg14[%c1_145, %c0_146, %c0_147] : memref<2x1x4xf32, #tpu.memory_space<vmem>>, vector<1x1x4xf32>
    %208 = vector.shape_cast %207 : vector<1x1x4xf32> to vector<1x4xf32>
    %cst_148 = arith.constant dense<0.000000e+00> : vector<1x16xf32>
    %209 = tpu.matmul %208, %206, %cst_148 {dimension_numbers = #tpu.dot_dimension_numbers<[1], [0], [0], [1], [0, 0, 1, 1], [], []>} : vector<1x4xf32>, vector<4x16xf32>, vector<1x16xf32> -> vector<1x16xf32>
    %c1_149 = arith.constant 1 : index
    %c0_150 = arith.constant 0 : index
    %c0_151 = arith.constant 0 : index
    %210 = vector.load %arg15[%c1_149, %c0_150, %c0_151] : memref<2x1x1xf32, #tpu.memory_space<vmem>>, vector<1x1x1xf32>
    %211 = vector.shape_cast %210 : vector<1x1x1xf32> to vector<1x1xf32>
    %212 = vector.broadcast %211 : vector<1x1xf32> to vector<1x16xf32>
    %213 = arith.addf %209, %212 : vector<1x16xf32>
    %214 = arith.addf %191, %213 : vector<1x16xf32>
    %c1_152 = arith.constant 1 : index
    %c0_153 = arith.constant 0 : index
    %c0_154 = arith.constant 0 : index
    %215 = vector.load %arg16[%c1_152, %c0_153, %c0_154] : memref<2x1x1xf32, #tpu.memory_space<vmem>>, vector<1x1x1xf32>
    %216 = vector.shape_cast %215 : vector<1x1x1xf32> to vector<1x1xf32>
    %c1_155 = arith.constant 1 : index
    %c0_156 = arith.constant 0 : index
    %c0_157 = arith.constant 0 : index
    %217 = vector.load %arg17[%c1_155, %c0_156, %c0_157] : memref<2x1x1xf32, #tpu.memory_space<vmem>>, vector<1x1x1xf32>
    %218 = vector.shape_cast %217 : vector<1x1x1xf32> to vector<1x1xf32>
    %cst_158 = arith.constant dense<0.000000e+00> : vector<16xf32>
    %219 = vector.multi_reduction <add>, %214, %cst_158 [0] : vector<1x16xf32> to vector<16xf32>
    %220 = vector.shape_cast %219 : vector<16xf32> to vector<1x16xf32>
    %cst_159 = arith.constant 1.000000e+00 : f32
    %221 = vector.broadcast %cst_159 : f32 to vector<1x16xf32>
    %222 = arith.divf %220, %221 : vector<1x16xf32>
    %223 = arith.subf %214, %222 : vector<1x16xf32>
    %224 = arith.mulf %223, %223 : vector<1x16xf32>
    %cst_160 = arith.constant dense<0.000000e+00> : vector<16xf32>
    %225 = vector.multi_reduction <add>, %224, %cst_160 [0] : vector<1x16xf32> to vector<16xf32>
    %226 = vector.shape_cast %225 : vector<16xf32> to vector<1x16xf32>
    %cst_161 = arith.constant 1.000000e+00 : f32
    %227 = vector.broadcast %cst_161 : f32 to vector<1x16xf32>
    %228 = arith.divf %226, %227 : vector<1x16xf32>
    %229 = arith.subf %214, %222 : vector<1x16xf32>
    %cst_162 = arith.constant 9.99999974E-6 : f32
    %230 = vector.broadcast %cst_162 : f32 to vector<1x16xf32>
    %231 = arith.addf %228, %230 : vector<1x16xf32>
    %232 = math.rsqrt %231 : vector<1x16xf32>
    %233 = arith.mulf %229, %232 : vector<1x16xf32>
    %234 = vector.broadcast %216 : vector<1x1xf32> to vector<1x16xf32>
    %235 = arith.mulf %233, %234 : vector<1x16xf32>
    %236 = vector.broadcast %218 : vector<1x1xf32> to vector<1x16xf32>
    %237 = arith.addf %235, %236 : vector<1x16xf32>
    %cst_163 = arith.constant 0.000000e+00 : f32
    %238 = vector.broadcast %cst_163 : f32 to vector<1x16xf32>
    %239 = arith.cmpf ogt, %237, %238 : vector<1x16xf32>
    %cst_164 = arith.constant 0.000000e+00 : f32
    %240 = vector.broadcast %cst_164 : f32 to vector<1x16xf32>
    %241 = arith.minimumf %237, %240 : vector<1x16xf32>
    %242 = math.exp %241 : vector<1x16xf32>
    %cst_165 = arith.constant 1.000000e+00 : f32
    %243 = vector.broadcast %cst_165 : f32 to vector<1x16xf32>
    %244 = arith.subf %242, %243 : vector<1x16xf32>
    %245 = arith.select %239, %237, %244 : vector<1x16xi1>, vector<1x16xf32>
    %246 = arith.addf %245, %1 : vector<1x16xf32>
    %c0_166 = arith.constant 0 : index
    %c0_167 = arith.constant 0 : index
    %c0_168 = arith.constant 0 : index
    %247 = vector.load %arg18[%c0_166, %c0_167, %c0_168] : memref<2x1x16xf32, #tpu.memory_space<vmem>>, vector<1x1x16xf32>
    %248 = vector.shape_cast %247 : vector<1x1x16xf32> to vector<1x16xf32>
    %249 = vector.shape_cast %246 : vector<1x16xf32> to vector<1x1x16xf32>
    tpu.vector_store %arg18[%c0_166, %c0_167, %c0_168], %249 {strides = array<i32>} : memref<2x1x16xf32, #tpu.memory_space<vmem>>, vector<1x1x16xf32>,
    %c1_169 = arith.constant 1 : index
    %c0_170 = arith.constant 0 : index
    %c0_171 = arith.constant 0 : index
    %250 = vector.load %arg1[%c1_169, %c0_170, %c0_171] : memref<2x1x16xf32, #tpu.memory_space<vmem>>, vector<1x1x16xf32>
    %251 = vector.shape_cast %250 : vector<1x1x16xf32> to vector<1x16xf32>
    %cst_172 = arith.constant 0.000000e+00 : f32
    %252 = vector.broadcast %cst_172 : f32 to vector<1x16xf32>
    %c0_173 = arith.constant 0 : index
    %c0_174 = arith.constant 0 : index
    %c0_175 = arith.constant 0 : index
    %c0_176 = arith.constant 0 : index
    %253 = vector.load %arg2[%c0_173, %c0_174, %c0_175, %c0_176] : memref<2x1x1x1xf32, #tpu.memory_space<vmem>>, vector<1x1x1x1xf32>
    %254 = vector.shape_cast %253 : vector<1x1x1x1xf32> to vector<1x1xf32>
    %c0_177 = arith.constant 0 : index
    %c0_178 = arith.constant 0 : index
    %c0_179 = arith.constant 0 : index
    %c0_180 = arith.constant 0 : index
    %255 = vector.load %arg3[%c0_177, %c0_178, %c0_179, %c0_180] : memref<2x1x1x1xf32, #tpu.memory_space<vmem>>, vector<1x1x1x1xf32>
    %256 = vector.shape_cast %255 : vector<1x1x1x1xf32> to vector<1x1xf32>
    %c0_181 = arith.constant 0 : index
    %c0_182 = arith.constant 0 : index
    %c0_183 = arith.constant 0 : index
    %c0_184 = arith.constant 0 : index
    %257 = vector.load %arg4[%c0_181, %c0_182, %c0_183, %c0_184] : memref<2x1x1x1xf32, #tpu.memory_space<vmem>>, vector<1x1x1x1xf32>
    %258 = vector.shape_cast %257 : vector<1x1x1x1xf32> to vector<1x1xf32>
    %cst_185 = arith.constant dense<0.000000e+00> : vector<1x16xf32>
    %259 = tpu.matmul %254, %251, %cst_185 {dimension_numbers = #tpu.dot_dimension_numbers<[1], [0], [0], [1], [0, 0, 1, 1], [], []>} : vector<1x1xf32>, vector<1x16xf32>, vector<1x16xf32> -> vector<1x16xf32>
    %c0_186 = arith.constant 0 : index
    %c0_187 = arith.constant 0 : index
    %c0_188 = arith.constant 0 : index
    %c0_189 = arith.constant 0 : index
    %260 = vector.load %arg5[%c0_186, %c0_187, %c0_188, %c0_189] : memref<2x1x1x1xf32, #tpu.memory_space<vmem>>, vector<1x1x1x1xf32>
    %261 = vector.shape_cast %260 : vector<1x1x1x1xf32> to vector<1x1xf32>
    %262 = vector.broadcast %261 : vector<1x1xf32> to vector<1x16xf32>
    %263 = arith.addf %259, %262 : vector<1x16xf32>
    %cst_190 = arith.constant dense<0.000000e+00> : vector<1x16xf32>
    %264 = tpu.matmul %256, %251, %cst_190 {dimension_numbers = #tpu.dot_dimension_numbers<[1], [0], [0], [1], [0, 0, 1, 1], [], []>} : vector<1x1xf32>, vector<1x16xf32>, vector<1x16xf32> -> vector<1x16xf32>
    %c0_191 = arith.constant 0 : index
    %c0_192 = arith.constant 0 : index
    %c0_193 = arith.constant 0 : index
    %c0_194 = arith.constant 0 : index
    %265 = vector.load %arg6[%c0_191, %c0_192, %c0_193, %c0_194] : memref<2x1x1x1xf32, #tpu.memory_space<vmem>>, vector<1x1x1x1xf32>
    %266 = vector.shape_cast %265 : vector<1x1x1x1xf32> to vector<1x1xf32>
    %267 = vector.broadcast %266 : vector<1x1xf32> to vector<1x16xf32>
    %268 = arith.addf %264, %267 : vector<1x16xf32>
    %cst_195 = arith.constant dense<0.000000e+00> : vector<1x16xf32>
    %269 = tpu.matmul %258, %251, %cst_195 {dimension_numbers = #tpu.dot_dimension_numbers<[1], [0], [0], [1], [0, 0, 1, 1], [], []>} : vector<1x1xf32>, vector<1x16xf32>, vector<1x16xf32> -> vector<1x16xf32>
    %c0_196 = arith.constant 0 : index
    %c0_197 = arith.constant 0 : index
    %c0_198 = arith.constant 0 : index
    %c0_199 = arith.constant 0 : index
    %270 = vector.load %arg7[%c0_196, %c0_197, %c0_198, %c0_199] : memref<2x1x1x1xf32, #tpu.memory_space<vmem>>, vector<1x1x1x1xf32>
    %271 = vector.shape_cast %270 : vector<1x1x1x1xf32> to vector<1x1xf32>
    %272 = vector.broadcast %271 : vector<1x1xf32> to vector<1x16xf32>
    %273 = arith.addf %269, %272 : vector<1x16xf32>
    %cst_200 = arith.constant dense<0.000000e+00> : vector<16x16xf32>
    %274 = tpu.matmul %263, %268, %cst_200 {dimension_numbers = #tpu.dot_dimension_numbers<[0], [0], [1], [1], [0, 1, 1, 1], [], []>} : vector<1x16xf32>, vector<1x16xf32>, vector<16x16xf32> -> vector<16x16xf32>
    %cst_201 = arith.constant 1.000000e+00 : f32
    %275 = vector.broadcast %cst_201 : f32 to vector<16x16xf32>
    %276 = arith.mulf %274, %275 : vector<16x16xf32>
    %cst_202 = arith.constant dense<0xFF800000> : vector<16xf32>
    %277 = vector.multi_reduction <maximumf>, %276, %cst_202 [1] : vector<16x16xf32> to vector<16xf32>
    %278 = vector.shape_cast %277 : vector<16xf32> to vector<16x1xf32>
    %279 = vector.broadcast %278 : vector<16x1xf32> to vector<16x16xf32>
    %280 = arith.subf %276, %279 : vector<16x16xf32>
    %281 = math.exp %280 : vector<16x16xf32>
    %cst_203 = arith.constant dense<0.000000e+00> : vector<16xf32>
    %282 = vector.multi_reduction <add>, %281, %cst_203 [1] : vector<16x16xf32> to vector<16xf32>
    %283 = vector.shape_cast %282 : vector<16xf32> to vector<16x1xf32>
    %284 = tpu.reciprocal %283 {approx = true} : vector<16x1xf32> -> vector<16x1xf32>
    %285 = vector.broadcast %284 : vector<16x1xf32> to vector<16x16xf32>
    %286 = arith.mulf %281, %285 : vector<16x16xf32>
    %cst_204 = arith.constant dense<0.000000e+00> : vector<1x16xf32>
    %287 = tpu.matmul %273, %286, %cst_204 {dimension_numbers = #tpu.dot_dimension_numbers<[1], [1], [0], [0], [0, 0, 1, 0], [], []>} : vector<1x16xf32>, vector<16x16xf32>, vector<1x16xf32> -> vector<1x16xf32>
    %c0_205 = arith.constant 0 : index
    %c0_206 = arith.constant 0 : index
    %c0_207 = arith.constant 0 : index
    %c0_208 = arith.constant 0 : index
    %288 = vector.load %arg8[%c0_205, %c0_206, %c0_207, %c0_208] : memref<2x1x1x1xf32, #tpu.memory_space<vmem>>, vector<1x1x1x1xf32>
    %289 = vector.shape_cast %288 : vector<1x1x1x1xf32> to vector<1x1xf32>
    %cst_209 = arith.constant dense<0.000000e+00> : vector<1x16xf32>
    %290 = tpu.matmul %289, %287, %cst_209 {dimension_numbers = #tpu.dot_dimension_numbers<[1], [0], [0], [1], [0, 0, 1, 1], [], []>} : vector<1x1xf32>, vector<1x16xf32>, vector<1x16xf32> -> vector<1x16xf32>
    %291 = arith.addf %252, %290 : vector<1x16xf32>
    %c0_210 = arith.constant 0 : index
    %c0_211 = arith.constant 0 : index
    %c0_212 = arith.constant 0 : index
    %292 = vector.load %arg9[%c0_210, %c0_211, %c0_212] : memref<2x1x1xf32, #tpu.memory_space<vmem>>, vector<1x1x1xf32>
    %293 = vector.shape_cast %292 : vector<1x1x1xf32> to vector<1x1xf32>
    %294 = vector.broadcast %293 : vector<1x1xf32> to vector<1x16xf32>
    %295 = arith.addf %291, %294 : vector<1x16xf32>
    %296 = arith.addf %251, %295 : vector<1x16xf32>
    %c0_213 = arith.constant 0 : index
    %c0_214 = arith.constant 0 : index
    %c0_215 = arith.constant 0 : index
    %297 = vector.load %arg10[%c0_213, %c0_214, %c0_215] : memref<2x1x1xf32, #tpu.memory_space<vmem>>, vector<1x1x1xf32>
    %298 = vector.shape_cast %297 : vector<1x1x1xf32> to vector<1x1xf32>
    %c0_216 = arith.constant 0 : index
    %c0_217 = arith.constant 0 : index
    %c0_218 = arith.constant 0 : index
    %299 = vector.load %arg11[%c0_216, %c0_217, %c0_218] : memref<2x1x1xf32, #tpu.memory_space<vmem>>, vector<1x1x1xf32>
    %300 = vector.shape_cast %299 : vector<1x1x1xf32> to vector<1x1xf32>
    %cst_219 = arith.constant dense<0.000000e+00> : vector<16xf32>
    %301 = vector.multi_reduction <add>, %296, %cst_219 [0] : vector<1x16xf32> to vector<16xf32>
    %302 = vector.shape_cast %301 : vector<16xf32> to vector<1x16xf32>
    %cst_220 = arith.constant 1.000000e+00 : f32
    %303 = vector.broadcast %cst_220 : f32 to vector<1x16xf32>
    %304 = arith.divf %302, %303 : vector<1x16xf32>
    %305 = arith.subf %296, %304 : vector<1x16xf32>
    %306 = arith.mulf %305, %305 : vector<1x16xf32>
    %cst_221 = arith.constant dense<0.000000e+00> : vector<16xf32>
    %307 = vector.multi_reduction <add>, %306, %cst_221 [0] : vector<1x16xf32> to vector<16xf32>
    %308 = vector.shape_cast %307 : vector<16xf32> to vector<1x16xf32>
    %cst_222 = arith.constant 1.000000e+00 : f32
    %309 = vector.broadcast %cst_222 : f32 to vector<1x16xf32>
    %310 = arith.divf %308, %309 : vector<1x16xf32>
    %311 = arith.subf %296, %304 : vector<1x16xf32>
    %cst_223 = arith.constant 9.99999974E-6 : f32
    %312 = vector.broadcast %cst_223 : f32 to vector<1x16xf32>
    %313 = arith.addf %310, %312 : vector<1x16xf32>
    %314 = math.rsqrt %313 : vector<1x16xf32>
    %315 = arith.mulf %311, %314 : vector<1x16xf32>
    %316 = vector.broadcast %298 : vector<1x1xf32> to vector<1x16xf32>
    %317 = arith.mulf %315, %316 : vector<1x16xf32>
    %318 = vector.broadcast %300 : vector<1x1xf32> to vector<1x16xf32>
    %319 = arith.addf %317, %318 : vector<1x16xf32>
    %c0_224 = arith.constant 0 : index
    %c0_225 = arith.constant 0 : index
    %c0_226 = arith.constant 0 : index
    %320 = vector.load %arg12[%c0_224, %c0_225, %c0_226] : memref<2x4x1xf32, #tpu.memory_space<vmem>>, vector<1x4x1xf32>
    %321 = vector.shape_cast %320 : vector<1x4x1xf32> to vector<4x1xf32>
    %cst_227 = arith.constant dense<0.000000e+00> : vector<4x16xf32>
    %322 = tpu.matmul %321, %319, %cst_227 {dimension_numbers = #tpu.dot_dimension_numbers<[1], [0], [0], [1], [0, 0, 1, 1], [], []>} : vector<4x1xf32>, vector<1x16xf32>, vector<4x16xf32> -> vector<4x16xf32>
    %c0_228 = arith.constant 0 : index
    %c0_229 = arith.constant 0 : index
    %c0_230 = arith.constant 0 : index
    %323 = vector.load %arg13[%c0_228, %c0_229, %c0_230] : memref<2x4x1xf32, #tpu.memory_space<vmem>>, vector<1x4x1xf32>
    %324 = vector.shape_cast %323 : vector<1x4x1xf32> to vector<4x1xf32>
    %325 = vector.broadcast %324 : vector<4x1xf32> to vector<4x16xf32>
    %326 = arith.addf %322, %325 : vector<4x16xf32>
    %cst_231 = arith.constant 5.000000e-01 : f32
    %327 = vector.broadcast %cst_231 : f32 to vector<4x16xf32>
    %328 = arith.mulf %327, %326 : vector<4x16xf32>
    %cst_232 = arith.constant 0.707106769 : f32
    %329 = vector.broadcast %cst_232 : f32 to vector<4x16xf32>
    %330 = arith.mulf %326, %329 : vector<4x16xf32>
    %331 = math.erf %330 : vector<4x16xf32>
    %cst_233 = arith.constant 1.000000e+00 : f32
    %332 = vector.broadcast %cst_233 : f32 to vector<4x16xf32>
    %333 = arith.addf %332, %331 : vector<4x16xf32>
    %334 = arith.mulf %328, %333 : vector<4x16xf32>
    %c0_234 = arith.constant 0 : index
    %c0_235 = arith.constant 0 : index
    %c0_236 = arith.constant 0 : index
    %335 = vector.load %arg14[%c0_234, %c0_235, %c0_236] : memref<2x1x4xf32, #tpu.memory_space<vmem>>, vector<1x1x4xf32>
    %336 = vector.shape_cast %335 : vector<1x1x4xf32> to vector<1x4xf32>
    %cst_237 = arith.constant dense<0.000000e+00> : vector<1x16xf32>
    %337 = tpu.matmul %336, %334, %cst_237 {dimension_numbers = #tpu.dot_dimension_numbers<[1], [0], [0], [1], [0, 0, 1, 1], [], []>} : vector<1x4xf32>, vector<4x16xf32>, vector<1x16xf32> -> vector<1x16xf32>
    %c0_238 = arith.constant 0 : index
    %c0_239 = arith.constant 0 : index
    %c0_240 = arith.constant 0 : index
    %338 = vector.load %arg15[%c0_238, %c0_239, %c0_240] : memref<2x1x1xf32, #tpu.memory_space<vmem>>, vector<1x1x1xf32>
    %339 = vector.shape_cast %338 : vector<1x1x1xf32> to vector<1x1xf32>
    %340 = vector.broadcast %339 : vector<1x1xf32> to vector<1x16xf32>
    %341 = arith.addf %337, %340 : vector<1x16xf32>
    %342 = arith.addf %319, %341 : vector<1x16xf32>
    %c0_241 = arith.constant 0 : index
    %c0_242 = arith.constant 0 : index
    %c0_243 = arith.constant 0 : index
    %343 = vector.load %arg16[%c0_241, %c0_242, %c0_243] : memref<2x1x1xf32, #tpu.memory_space<vmem>>, vector<1x1x1xf32>
    %344 = vector.shape_cast %343 : vector<1x1x1xf32> to vector<1x1xf32>
    %c0_244 = arith.constant 0 : index
    %c0_245 = arith.constant 0 : index
    %c0_246 = arith.constant 0 : index
    %345 = vector.load %arg17[%c0_244, %c0_245, %c0_246] : memref<2x1x1xf32, #tpu.memory_space<vmem>>, vector<1x1x1xf32>
    %346 = vector.shape_cast %345 : vector<1x1x1xf32> to vector<1x1xf32>
    %cst_247 = arith.constant dense<0.000000e+00> : vector<16xf32>
    %347 = vector.multi_reduction <add>, %342, %cst_247 [0] : vector<1x16xf32> to vector<16xf32>
    %348 = vector.shape_cast %347 : vector<16xf32> to vector<1x16xf32>
    %cst_248 = arith.constant 1.000000e+00 : f32
    %349 = vector.broadcast %cst_248 : f32 to vector<1x16xf32>
    %350 = arith.divf %348, %349 : vector<1x16xf32>
    %351 = arith.subf %342, %350 : vector<1x16xf32>
    %352 = arith.mulf %351, %351 : vector<1x16xf32>
    %cst_249 = arith.constant dense<0.000000e+00> : vector<16xf32>
    %353 = vector.multi_reduction <add>, %352, %cst_249 [0] : vector<1x16xf32> to vector<16xf32>
    %354 = vector.shape_cast %353 : vector<16xf32> to vector<1x16xf32>
    %cst_250 = arith.constant 1.000000e+00 : f32
    %355 = vector.broadcast %cst_250 : f32 to vector<1x16xf32>
    %356 = arith.divf %354, %355 : vector<1x16xf32>
    %357 = arith.subf %342, %350 : vector<1x16xf32>
    %cst_251 = arith.constant 9.99999974E-6 : f32
    %358 = vector.broadcast %cst_251 : f32 to vector<1x16xf32>
    %359 = arith.addf %356, %358 : vector<1x16xf32>
    %360 = math.rsqrt %359 : vector<1x16xf32>
    %361 = arith.mulf %357, %360 : vector<1x16xf32>
    %362 = vector.broadcast %344 : vector<1x1xf32> to vector<1x16xf32>
    %363 = arith.mulf %361, %362 : vector<1x16xf32>
    %364 = vector.broadcast %346 : vector<1x1xf32> to vector<1x16xf32>
    %365 = arith.addf %363, %364 : vector<1x16xf32>
    %cst_252 = arith.constant 0.000000e+00 : f32
    %366 = vector.broadcast %cst_252 : f32 to vector<1x16xf32>
    %367 = arith.cmpf ogt, %365, %366 : vector<1x16xf32>
    %cst_253 = arith.constant 0.000000e+00 : f32
    %368 = vector.broadcast %cst_253 : f32 to vector<1x16xf32>
    %369 = arith.minimumf %365, %368 : vector<1x16xf32>
    %370 = math.exp %369 : vector<1x16xf32>
    %cst_254 = arith.constant 1.000000e+00 : f32
    %371 = vector.broadcast %cst_254 : f32 to vector<1x16xf32>
    %372 = arith.subf %370, %371 : vector<1x16xf32>
    %373 = arith.select %367, %365, %372 : vector<1x16xi1>, vector<1x16xf32>
    %cst_255 = arith.constant 0.000000e+00 : f32
    %374 = vector.broadcast %cst_255 : f32 to vector<1x16xf32>
    %c1_256 = arith.constant 1 : index
    %c0_257 = arith.constant 0 : index
    %c0_258 = arith.constant 0 : index
    %c0_259 = arith.constant 0 : index
    %375 = vector.load %arg2[%c1_256, %c0_257, %c0_258, %c0_259] : memref<2x1x1x1xf32, #tpu.memory_space<vmem>>, vector<1x1x1x1xf32>
    %376 = vector.shape_cast %375 : vector<1x1x1x1xf32> to vector<1x1xf32>
    %c1_260 = arith.constant 1 : index
    %c0_261 = arith.constant 0 : index
    %c0_262 = arith.constant 0 : index
    %c0_263 = arith.constant 0 : index
    %377 = vector.load %arg3[%c1_260, %c0_261, %c0_262, %c0_263] : memref<2x1x1x1xf32, #tpu.memory_space<vmem>>, vector<1x1x1x1xf32>
    %378 = vector.shape_cast %377 : vector<1x1x1x1xf32> to vector<1x1xf32>
    %c1_264 = arith.constant 1 : index
    %c0_265 = arith.constant 0 : index
    %c0_266 = arith.constant 0 : index
    %c0_267 = arith.constant 0 : index
    %379 = vector.load %arg4[%c1_264, %c0_265, %c0_266, %c0_267] : memref<2x1x1x1xf32, #tpu.memory_space<vmem>>, vector<1x1x1x1xf32>
    %380 = vector.shape_cast %379 : vector<1x1x1x1xf32> to vector<1x1xf32>
    %cst_268 = arith.constant dense<0.000000e+00> : vector<1x16xf32>
    %381 = tpu.matmul %376, %373, %cst_268 {dimension_numbers = #tpu.dot_dimension_numbers<[1], [0], [0], [1], [0, 0, 1, 1], [], []>} : vector<1x1xf32>, vector<1x16xf32>, vector<1x16xf32> -> vector<1x16xf32>
    %c1_269 = arith.constant 1 : index
    %c0_270 = arith.constant 0 : index
    %c0_271 = arith.constant 0 : index
    %c0_272 = arith.constant 0 : index
    %382 = vector.load %arg5[%c1_269, %c0_270, %c0_271, %c0_272] : memref<2x1x1x1xf32, #tpu.memory_space<vmem>>, vector<1x1x1x1xf32>
    %383 = vector.shape_cast %382 : vector<1x1x1x1xf32> to vector<1x1xf32>
    %384 = vector.broadcast %383 : vector<1x1xf32> to vector<1x16xf32>
    %385 = arith.addf %381, %384 : vector<1x16xf32>
    %cst_273 = arith.constant dense<0.000000e+00> : vector<1x16xf32>
    %386 = tpu.matmul %378, %373, %cst_273 {dimension_numbers = #tpu.dot_dimension_numbers<[1], [0], [0], [1], [0, 0, 1, 1], [], []>} : vector<1x1xf32>, vector<1x16xf32>, vector<1x16xf32> -> vector<1x16xf32>
    %c1_274 = arith.constant 1 : index
    %c0_275 = arith.constant 0 : index
    %c0_276 = arith.constant 0 : index
    %c0_277 = arith.constant 0 : index
    %387 = vector.load %arg6[%c1_274, %c0_275, %c0_276, %c0_277] : memref<2x1x1x1xf32, #tpu.memory_space<vmem>>, vector<1x1x1x1xf32>
    %388 = vector.shape_cast %387 : vector<1x1x1x1xf32> to vector<1x1xf32>
    %389 = vector.broadcast %388 : vector<1x1xf32> to vector<1x16xf32>
    %390 = arith.addf %386, %389 : vector<1x16xf32>
    %cst_278 = arith.constant dense<0.000000e+00> : vector<1x16xf32>
    %391 = tpu.matmul %380, %373, %cst_278 {dimension_numbers = #tpu.dot_dimension_numbers<[1], [0], [0], [1], [0, 0, 1, 1], [], []>} : vector<1x1xf32>, vector<1x16xf32>, vector<1x16xf32> -> vector<1x16xf32>
    %c1_279 = arith.constant 1 : index
    %c0_280 = arith.constant 0 : index
    %c0_281 = arith.constant 0 : index
    %c0_282 = arith.constant 0 : index
    %392 = vector.load %arg7[%c1_279, %c0_280, %c0_281, %c0_282] : memref<2x1x1x1xf32, #tpu.memory_space<vmem>>, vector<1x1x1x1xf32>
    %393 = vector.shape_cast %392 : vector<1x1x1x1xf32> to vector<1x1xf32>
    %394 = vector.broadcast %393 : vector<1x1xf32> to vector<1x16xf32>
    %395 = arith.addf %391, %394 : vector<1x16xf32>
    %cst_283 = arith.constant dense<0.000000e+00> : vector<16x16xf32>
    %396 = tpu.matmul %385, %390, %cst_283 {dimension_numbers = #tpu.dot_dimension_numbers<[0], [0], [1], [1], [0, 1, 1, 1], [], []>} : vector<1x16xf32>, vector<1x16xf32>, vector<16x16xf32> -> vector<16x16xf32>
    %cst_284 = arith.constant 1.000000e+00 : f32
    %397 = vector.broadcast %cst_284 : f32 to vector<16x16xf32>
    %398 = arith.mulf %396, %397 : vector<16x16xf32>
    %cst_285 = arith.constant dense<0xFF800000> : vector<16xf32>
    %399 = vector.multi_reduction <maximumf>, %398, %cst_285 [1] : vector<16x16xf32> to vector<16xf32>
    %400 = vector.shape_cast %399 : vector<16xf32> to vector<16x1xf32>
    %401 = vector.broadcast %400 : vector<16x1xf32> to vector<16x16xf32>
    %402 = arith.subf %398, %401 : vector<16x16xf32>
    %403 = math.exp %402 : vector<16x16xf32>
    %cst_286 = arith.constant dense<0.000000e+00> : vector<16xf32>
    %404 = vector.multi_reduction <add>, %403, %cst_286 [1] : vector<16x16xf32> to vector<16xf32>
    %405 = vector.shape_cast %404 : vector<16xf32> to vector<16x1xf32>
    %406 = tpu.reciprocal %405 {approx = true} : vector<16x1xf32> -> vector<16x1xf32>
    %407 = vector.broadcast %406 : vector<16x1xf32> to vector<16x16xf32>
    %408 = arith.mulf %403, %407 : vector<16x16xf32>
    %cst_287 = arith.constant dense<0.000000e+00> : vector<1x16xf32>
    %409 = tpu.matmul %395, %408, %cst_287 {dimension_numbers = #tpu.dot_dimension_numbers<[1], [1], [0], [0], [0, 0, 1, 0], [], []>} : vector<1x16xf32>, vector<16x16xf32>, vector<1x16xf32> -> vector<1x16xf32>
    %c1_288 = arith.constant 1 : index
    %c0_289 = arith.constant 0 : index
    %c0_290 = arith.constant 0 : index
    %c0_291 = arith.constant 0 : index
    %410 = vector.load %arg8[%c1_288, %c0_289, %c0_290, %c0_291] : memref<2x1x1x1xf32, #tpu.memory_space<vmem>>, vector<1x1x1x1xf32>
    %411 = vector.shape_cast %410 : vector<1x1x1x1xf32> to vector<1x1xf32>
    %cst_292 = arith.constant dense<0.000000e+00> : vector<1x16xf32>
    %412 = tpu.matmul %411, %409, %cst_292 {dimension_numbers = #tpu.dot_dimension_numbers<[1], [0], [0], [1], [0, 0, 1, 1], [], []>} : vector<1x1xf32>, vector<1x16xf32>, vector<1x16xf32> -> vector<1x16xf32>
    %413 = arith.addf %374, %412 : vector<1x16xf32>
    %c1_293 = arith.constant 1 : index
    %c0_294 = arith.constant 0 : index
    %c0_295 = arith.constant 0 : index
    %414 = vector.load %arg9[%c1_293, %c0_294, %c0_295] : memref<2x1x1xf32, #tpu.memory_space<vmem>>, vector<1x1x1xf32>
    %415 = vector.shape_cast %414 : vector<1x1x1xf32> to vector<1x1xf32>
    %416 = vector.broadcast %415 : vector<1x1xf32> to vector<1x16xf32>
    %417 = arith.addf %413, %416 : vector<1x16xf32>
    %418 = arith.addf %373, %417 : vector<1x16xf32>
    %c1_296 = arith.constant 1 : index
    %c0_297 = arith.constant 0 : index
    %c0_298 = arith.constant 0 : index
    %419 = vector.load %arg10[%c1_296, %c0_297, %c0_298] : memref<2x1x1xf32, #tpu.memory_space<vmem>>, vector<1x1x1xf32>
    %420 = vector.shape_cast %419 : vector<1x1x1xf32> to vector<1x1xf32>
    %c1_299 = arith.constant 1 : index
    %c0_300 = arith.constant 0 : index
    %c0_301 = arith.constant 0 : index
    %421 = vector.load %arg11[%c1_299, %c0_300, %c0_301] : memref<2x1x1xf32, #tpu.memory_space<vmem>>, vector<1x1x1xf32>
    %422 = vector.shape_cast %421 : vector<1x1x1xf32> to vector<1x1xf32>
    %cst_302 = arith.constant dense<0.000000e+00> : vector<16xf32>
    %423 = vector.multi_reduction <add>, %418, %cst_302 [0] : vector<1x16xf32> to vector<16xf32>
    %424 = vector.shape_cast %423 : vector<16xf32> to vector<1x16xf32>
    %cst_303 = arith.constant 1.000000e+00 : f32
    %425 = vector.broadcast %cst_303 : f32 to vector<1x16xf32>
    %426 = arith.divf %424, %425 : vector<1x16xf32>
    %427 = arith.subf %418, %426 : vector<1x16xf32>
    %428 = arith.mulf %427, %427 : vector<1x16xf32>
    %cst_304 = arith.constant dense<0.000000e+00> : vector<16xf32>
    %429 = vector.multi_reduction <add>, %428, %cst_304 [0] : vector<1x16xf32> to vector<16xf32>
    %430 = vector.shape_cast %429 : vector<16xf32> to vector<1x16xf32>
    %cst_305 = arith.constant 1.000000e+00 : f32
    %431 = vector.broadcast %cst_305 : f32 to vector<1x16xf32>
    %432 = arith.divf %430, %431 : vector<1x16xf32>
    %433 = arith.subf %418, %426 : vector<1x16xf32>
    %cst_306 = arith.constant 9.99999974E-6 : f32
    %434 = vector.broadcast %cst_306 : f32 to vector<1x16xf32>
    %435 = arith.addf %432, %434 : vector<1x16xf32>
    %436 = math.rsqrt %435 : vector<1x16xf32>
    %437 = arith.mulf %433, %436 : vector<1x16xf32>
    %438 = vector.broadcast %420 : vector<1x1xf32> to vector<1x16xf32>
    %439 = arith.mulf %437, %438 : vector<1x16xf32>
    %440 = vector.broadcast %422 : vector<1x1xf32> to vector<1x16xf32>
    %441 = arith.addf %439, %440 : vector<1x16xf32>
    %c1_307 = arith.constant 1 : index
    %c0_308 = arith.constant 0 : index
    %c0_309 = arith.constant 0 : index
    %442 = vector.load %arg12[%c1_307, %c0_308, %c0_309] : memref<2x4x1xf32, #tpu.memory_space<vmem>>, vector<1x4x1xf32>
    %443 = vector.shape_cast %442 : vector<1x4x1xf32> to vector<4x1xf32>
    %cst_310 = arith.constant dense<0.000000e+00> : vector<4x16xf32>
    %444 = tpu.matmul %443, %441, %cst_310 {dimension_numbers = #tpu.dot_dimension_numbers<[1], [0], [0], [1], [0, 0, 1, 1], [], []>} : vector<4x1xf32>, vector<1x16xf32>, vector<4x16xf32> -> vector<4x16xf32>
    %c1_311 = arith.constant 1 : index
    %c0_312 = arith.constant 0 : index
    %c0_313 = arith.constant 0 : index
    %445 = vector.load %arg13[%c1_311, %c0_312, %c0_313] : memref<2x4x1xf32, #tpu.memory_space<vmem>>, vector<1x4x1xf32>
    %446 = vector.shape_cast %445 : vector<1x4x1xf32> to vector<4x1xf32>
    %447 = vector.broadcast %446 : vector<4x1xf32> to vector<4x16xf32>
    %448 = arith.addf %444, %447 : vector<4x16xf32>
    %cst_314 = arith.constant 5.000000e-01 : f32
    %449 = vector.broadcast %cst_314 : f32 to vector<4x16xf32>
    %450 = arith.mulf %449, %448 : vector<4x16xf32>
    %cst_315 = arith.constant 0.707106769 : f32
    %451 = vector.broadcast %cst_315 : f32 to vector<4x16xf32>
    %452 = arith.mulf %448, %451 : vector<4x16xf32>
    %453 = math.erf %452 : vector<4x16xf32>
    %cst_316 = arith.constant 1.000000e+00 : f32
    %454 = vector.broadcast %cst_316 : f32 to vector<4x16xf32>
    %455 = arith.addf %454, %453 : vector<4x16xf32>
    %456 = arith.mulf %450, %455 : vector<4x16xf32>
    %c1_317 = arith.constant 1 : index
    %c0_318 = arith.constant 0 : index
    %c0_319 = arith.constant 0 : index
    %457 = vector.load %arg14[%c1_317, %c0_318, %c0_319] : memref<2x1x4xf32, #tpu.memory_space<vmem>>, vector<1x1x4xf32>
    %458 = vector.shape_cast %457 : vector<1x1x4xf32> to vector<1x4xf32>
    %cst_320 = arith.constant dense<0.000000e+00> : vector<1x16xf32>
    %459 = tpu.matmul %458, %456, %cst_320 {dimension_numbers = #tpu.dot_dimension_numbers<[1], [0], [0], [1], [0, 0, 1, 1], [], []>} : vector<1x4xf32>, vector<4x16xf32>, vector<1x16xf32> -> vector<1x16xf32>
    %c1_321 = arith.constant 1 : index
    %c0_322 = arith.constant 0 : index
    %c0_323 = arith.constant 0 : index
    %460 = vector.load %arg15[%c1_321, %c0_322, %c0_323] : memref<2x1x1xf32, #tpu.memory_space<vmem>>, vector<1x1x1xf32>
    %461 = vector.shape_cast %460 : vector<1x1x1xf32> to vector<1x1xf32>
    %462 = vector.broadcast %461 : vector<1x1xf32> to vector<1x16xf32>
    %463 = arith.addf %459, %462 : vector<1x16xf32>
    %464 = arith.addf %441, %463 : vector<1x16xf32>
    %c1_324 = arith.constant 1 : index
    %c0_325 = arith.constant 0 : index
    %c0_326 = arith.constant 0 : index
    %465 = vector.load %arg16[%c1_324, %c0_325, %c0_326] : memref<2x1x1xf32, #tpu.memory_space<vmem>>, vector<1x1x1xf32>
    %466 = vector.shape_cast %465 : vector<1x1x1xf32> to vector<1x1xf32>
    %c1_327 = arith.constant 1 : index
    %c0_328 = arith.constant 0 : index
    %c0_329 = arith.constant 0 : index
    %467 = vector.load %arg17[%c1_327, %c0_328, %c0_329] : memref<2x1x1xf32, #tpu.memory_space<vmem>>, vector<1x1x1xf32>
    %468 = vector.shape_cast %467 : vector<1x1x1xf32> to vector<1x1xf32>
    %cst_330 = arith.constant dense<0.000000e+00> : vector<16xf32>
    %469 = vector.multi_reduction <add>, %464, %cst_330 [0] : vector<1x16xf32> to vector<16xf32>
    %470 = vector.shape_cast %469 : vector<16xf32> to vector<1x16xf32>
    %cst_331 = arith.constant 1.000000e+00 : f32
    %471 = vector.broadcast %cst_331 : f32 to vector<1x16xf32>
    %472 = arith.divf %470, %471 : vector<1x16xf32>
    %473 = arith.subf %464, %472 : vector<1x16xf32>
    %474 = arith.mulf %473, %473 : vector<1x16xf32>
    %cst_332 = arith.constant dense<0.000000e+00> : vector<16xf32>
    %475 = vector.multi_reduction <add>, %474, %cst_332 [0] : vector<1x16xf32> to vector<16xf32>
    %476 = vector.shape_cast %475 : vector<16xf32> to vector<1x16xf32>
    %cst_333 = arith.constant 1.000000e+00 : f32
    %477 = vector.broadcast %cst_333 : f32 to vector<1x16xf32>
    %478 = arith.divf %476, %477 : vector<1x16xf32>
    %479 = arith.subf %464, %472 : vector<1x16xf32>
    %cst_334 = arith.constant 9.99999974E-6 : f32
    %480 = vector.broadcast %cst_334 : f32 to vector<1x16xf32>
    %481 = arith.addf %478, %480 : vector<1x16xf32>
    %482 = math.rsqrt %481 : vector<1x16xf32>
    %483 = arith.mulf %479, %482 : vector<1x16xf32>
    %484 = vector.broadcast %466 : vector<1x1xf32> to vector<1x16xf32>
    %485 = arith.mulf %483, %484 : vector<1x16xf32>
    %486 = vector.broadcast %468 : vector<1x1xf32> to vector<1x16xf32>
    %487 = arith.addf %485, %486 : vector<1x16xf32>
    %cst_335 = arith.constant 0.000000e+00 : f32
    %488 = vector.broadcast %cst_335 : f32 to vector<1x16xf32>
    %489 = arith.cmpf ogt, %487, %488 : vector<1x16xf32>
    %cst_336 = arith.constant 0.000000e+00 : f32
    %490 = vector.broadcast %cst_336 : f32 to vector<1x16xf32>
    %491 = arith.minimumf %487, %490 : vector<1x16xf32>
    %492 = math.exp %491 : vector<1x16xf32>
    %cst_337 = arith.constant 1.000000e+00 : f32
    %493 = vector.broadcast %cst_337 : f32 to vector<1x16xf32>
    %494 = arith.subf %492, %493 : vector<1x16xf32>
    %495 = arith.select %489, %487, %494 : vector<1x16xi1>, vector<1x16xf32>
    %496 = arith.addf %495, %251 : vector<1x16xf32>
    %c1_338 = arith.constant 1 : index
    %c0_339 = arith.constant 0 : index
    %c0_340 = arith.constant 0 : index
    %497 = vector.load %arg18[%c1_338, %c0_339, %c0_340] : memref<2x1x16xf32, #tpu.memory_space<vmem>>, vector<1x1x16xf32>
    %498 = vector.shape_cast %497 : vector<1x1x16xf32> to vector<1x16xf32>
    %499 = vector.shape_cast %496 : vector<1x16xf32> to vector<1x1x16xf32>
    tpu.vector_store %arg18[%c1_338, %c0_339, %c0_340], %499 {strides = array<i32>} : memref<2x1x16xf32, #tpu.memory_space<vmem>>, vector<1x1x16xf32>,
    return
  }
  func.func @transform_0(%arg0: i32) -> (i32, i32, i32) {
    %c0_i32 = arith.constant 0 : i32
    %c0_i32_0 = arith.constant 0 : i32
    %c0_i32_1 = arith.constant 0 : i32
    return %arg0, %c0_i32, %c0_i32_0 : i32, i32, i32
  }
  func.func @transform_1(%arg0: i32) -> (i32, i32, i32, i32) {
    %c0_i32 = arith.constant 0 : i32
    %c0_i32_0 = arith.constant 0 : i32
    %c0_i32_1 = arith.constant 0 : i32
    %c0_i32_2 = arith.constant 0 : i32
    %c0_i32_3 = arith.constant 0 : i32
    return %c0_i32, %c0_i32_0, %c0_i32_1, %c0_i32_2 : i32, i32, i32, i32
  }
  func.func @transform_2(%arg0: i32) -> (i32, i32, i32, i32) {
    %c0_i32 = arith.constant 0 : i32
    %c0_i32_0 = arith.constant 0 : i32
    %c0_i32_1 = arith.constant 0 : i32
    %c0_i32_2 = arith.constant 0 : i32
    %c0_i32_3 = arith.constant 0 : i32
    return %c0_i32, %c0_i32_0, %c0_i32_1, %c0_i32_2 : i32, i32, i32, i32
  }
  func.func @transform_3(%arg0: i32) -> (i32, i32, i32, i32) {
    %c0_i32 = arith.constant 0 : i32
    %c0_i32_0 = arith.constant 0 : i32
    %c0_i32_1 = arith.constant 0 : i32
    %c0_i32_2 = arith.constant 0 : i32
    %c0_i32_3 = arith.constant 0 : i32
    return %c0_i32, %c0_i32_0, %c0_i32_1, %c0_i32_2 : i32, i32, i32, i32
  }
  func.func @transform_4(%arg0: i32) -> (i32, i32, i32, i32) {
    %c0_i32 = arith.constant 0 : i32
    %c0_i32_0 = arith.constant 0 : i32
    %c0_i32_1 = arith.constant 0 : i32
    %c0_i32_2 = arith.constant 0 : i32
    %c0_i32_3 = arith.constant 0 : i32
    return %c0_i32, %c0_i32_0, %c0_i32_1, %c0_i32_2 : i32, i32, i32, i32
  }
  func.func @transform_5(%arg0: i32) -> (i32, i32, i32, i32) {
    %c0_i32 = arith.constant 0 : i32
    %c0_i32_0 = arith.constant 0 : i32
    %c0_i32_1 = arith.constant 0 : i32
    %c0_i32_2 = arith.constant 0 : i32
    %c0_i32_3 = arith.constant 0 : i32
    return %c0_i32, %c0_i32_0, %c0_i32_1, %c0_i32_2 : i32, i32, i32, i32
  }
  func.func @transform_6(%arg0: i32) -> (i32, i32, i32, i32) {
    %c0_i32 = arith.constant 0 : i32
    %c0_i32_0 = arith.constant 0 : i32
    %c0_i32_1 = arith.constant 0 : i32
    %c0_i32_2 = arith.constant 0 : i32
    %c0_i32_3 = arith.constant 0 : i32
    return %c0_i32, %c0_i32_0, %c0_i32_1, %c0_i32_2 : i32, i32, i32, i32
  }
  func.func @transform_7(%arg0: i32) -> (i32, i32, i32, i32) {
    %c0_i32 = arith.constant 0 : i32
    %c0_i32_0 = arith.constant 0 : i32
    %c0_i32_1 = arith.constant 0 : i32
    %c0_i32_2 = arith.constant 0 : i32
    %c0_i32_3 = arith.constant 0 : i32
    return %c0_i32, %c0_i32_0, %c0_i32_1, %c0_i32_2 : i32, i32, i32, i32
  }
  func.func @transform_8(%arg0: i32) -> (i32, i32, i32) {
    %c0_i32 = arith.constant 0 : i32
    %c0_i32_0 = arith.constant 0 : i32
    %c0_i32_1 = arith.constant 0 : i32
    %c0_i32_2 = arith.constant 0 : i32
    return %c0_i32, %c0_i32_0, %c0_i32_1 : i32, i32, i32
  }
  func.func @transform_9(%arg0: i32) -> (i32, i32, i32) {
    %c0_i32 = arith.constant 0 : i32
    %c0_i32_0 = arith.constant 0 : i32
    %c0_i32_1 = arith.constant 0 : i32
    %c0_i32_2 = arith.constant 0 : i32
    return %c0_i32, %c0_i32_0, %c0_i32_1 : i32, i32, i32
  }
  func.func @transform_10(%arg0: i32) -> (i32, i32, i32) {
    %c0_i32 = arith.constant 0 : i32
    %c0_i32_0 = arith.constant 0 : i32
    %c0_i32_1 = arith.constant 0 : i32
    %c0_i32_2 = arith.constant 0 : i32
    return %c0_i32, %c0_i32_0, %c0_i32_1 : i32, i32, i32
  }
  func.func @transform_11(%arg0: i32) -> (i32, i32, i32) {
    %c0_i32 = arith.constant 0 : i32
    %c0_i32_0 = arith.constant 0 : i32
    %c0_i32_1 = arith.constant 0 : i32
    %c0_i32_2 = arith.constant 0 : i32
    return %c0_i32, %c0_i32_0, %c0_i32_1 : i32, i32, i32
  }
  func.func @transform_12(%arg0: i32) -> (i32, i32, i32) {
    %c0_i32 = arith.constant 0 : i32
    %c0_i32_0 = arith.constant 0 : i32
    %c0_i32_1 = arith.constant 0 : i32
    %c0_i32_2 = arith.constant 0 : i32
    return %c0_i32, %c0_i32_0, %c0_i32_1 : i32, i32, i32
  }
  func.func @transform_13(%arg0: i32) -> (i32, i32, i32) {
    %c0_i32 = arith.constant 0 : i32
    %c0_i32_0 = arith.constant 0 : i32
    %c0_i32_1 = arith.constant 0 : i32
    %c0_i32_2 = arith.constant 0 : i32
    return %c0_i32, %c0_i32_0, %c0_i32_1 : i32, i32, i32
  }
  func.func @transform_14(%arg0: i32) -> (i32, i32, i32) {
    %c0_i32 = arith.constant 0 : i32
    %c0_i32_0 = arith.constant 0 : i32
    %c0_i32_1 = arith.constant 0 : i32
    %c0_i32_2 = arith.constant 0 : i32
    return %c0_i32, %c0_i32_0, %c0_i32_1 : i32, i32, i32
  }
  func.func @transform_15(%arg0: i32) -> (i32, i32, i32) {
    %c0_i32 = arith.constant 0 : i32
    %c0_i32_0 = arith.constant 0 : i32
    %c0_i32_1 = arith.constant 0 : i32
    %c0_i32_2 = arith.constant 0 : i32
    return %c0_i32, %c0_i32_0, %c0_i32_1 : i32, i32, i32
  }
  func.func @transform_16(%arg0: i32) -> (i32, i32, i32) {
    %c0_i32 = arith.constant 0 : i32
    %c0_i32_0 = arith.constant 0 : i32
    %c0_i32_1 = arith.constant 0 : i32
    %c0_i32_2 = arith.constant 0 : i32
    return %c0_i32, %c0_i32_0, %c0_i32_1 : i32, i32, i32
  }
  func.func @transform_17(%arg0: i32) -> (i32, i32, i32) {
    %c0_i32 = arith.constant 0 : i32
    %c0_i32_0 = arith.constant 0 : i32
    %c0_i32_1 = arith.constant 0 : i32
    return %arg0, %c0_i32, %c0_i32_0 : i32, i32, i32
  }
}

</mosaic_0001>

<llo_original>
// kernel: tpu_custom_call.1
$region0: #{tpu_custom_call.1}
  #allocation0 [shape = 'u32[]', space=smem, size = 0x4, offset = 0x4, fixed_abs, tag = 'smem constant byte address 0x4 - core index']
  #allocation1 [shape = 'u32[144,128]{1,0:T(1,128)}', space=vmem, size = 0x12000, scoped, tag = 'internal scratch']
  %s0 = inlined_call_operand.vmem [shape: f32[2,1,16], index: 0, kind: input, shape index: {}]
  %s1 = inlined_call_operand.vmem [shape: f32[2,1,1,1], index: 1, kind: input, shape index: {}]
  %s2 = inlined_call_operand.vmem [shape: f32[2,1,1,1], index: 2, kind: input, shape index: {}]
  %s3 = inlined_call_operand.vmem [shape: f32[2,1,1,1], index: 3, kind: input, shape index: {}]
  %s4 = inlined_call_operand.vmem [shape: f32[2,1,1,1], index: 4, kind: input, shape index: {}]
  %s5 = inlined_call_operand.vmem [shape: f32[2,1,1,1], index: 5, kind: input, shape index: {}]
  %s6 = inlined_call_operand.vmem [shape: f32[2,1,1,1], index: 6, kind: input, shape index: {}]
  %s7 = inlined_call_operand.vmem [shape: f32[2,1,1,1], index: 7, kind: input, shape index: {}]
  %s8 = inlined_call_operand.vmem [shape: f32[2,1,1], index: 8, kind: input, shape index: {}]
  %s9 = inlined_call_operand.vmem [shape: f32[2,1,1], index: 9, kind: input, shape index: {}]
  %s10 = inlined_call_operand.vmem [shape: f32[2,1,1], index: 10, kind: input, shape index: {}]
  %s11 = inlined_call_operand.vmem [shape: f32[2,4,1], index: 11, kind: input, shape index: {}]
  %s12 = inlined_call_operand.vmem [shape: f32[2,4,1], index: 12, kind: input, shape index: {}]
  %s13 = inlined_call_operand.vmem [shape: f32[2,1,4], index: 13, kind: input, shape index: {}]
  %s14 = inlined_call_operand.vmem [shape: f32[2,1,1], index: 14, kind: input, shape index: {}]
  %s15 = inlined_call_operand.vmem [shape: f32[2,1,1], index: 15, kind: input, shape index: {}]
  %s16 = inlined_call_operand.vmem [shape: f32[2,1,1], index: 16, kind: input, shape index: {}]
  %s17 = inlined_call_operand.hbm [shape: f32[2,1,16], index: 17, kind: output, shape index: {}]
  %s18 = sld [smem:[#allocation0]]
  $region78: #{tpu_custom_call.1} parent=0
    _
  %s20 = ssub.s32 1, %s18
  %s21 = scalar_select 0, %s20, %s18
  $region1: #{tpu_custom_call.1} parent=0
    #allocation2 [shape = 'u8[1024]{0}', space=vmem, size = 0x400, scoped, tag = 'output window, operand 0, single buffered']
    #allocation3 [shape = 's32[1]{0}', space=sflag, size = 0x4, scoped, tag = 'scoped memory for tpu_custom_call.1']
    %22 = vsyncpa [#allocation3], 0
    // Predicated region
    $region2: #{tpu_custom_call.1} parent=1 // pred_check
      _
    $region3: #{tpu_custom_call.1} parent=1 // pred_check_branch
      %24 = sbr.rel (0) target = $region5
    $region4: #{tpu_custom_call.1} parent=1 // pred_region
      _
    $region5: #{tpu_custom_call.1} parent=1 // pred_fallthru
      _
    // Predicated region
    $region6: #{tpu_custom_call.1} parent=1 // pred_check
      _
    $region7: #{tpu_custom_call.1} parent=1 // pred_check_branch
      %26 = sbr.rel (0) target = $region9
    $region8: #{tpu_custom_call.1} parent=1 // pred_region
      _
    $region9: #{tpu_custom_call.1} parent=1 // pred_fallthru
      _
    // Predicated region
    $region10: #{tpu_custom_call.1} parent=1 // pred_check
      _
    $region11: #{tpu_custom_call.1} parent=1 // pred_check_branch
      %28 = sbr.rel (0) target = $region13
    $region12: #{tpu_custom_call.1} parent=1 // pred_region
      _
    $region13: #{tpu_custom_call.1} parent=1 // pred_fallthru
      _
    // Predicated region
    $region14: #{tpu_custom_call.1} parent=1 // pred_check
      _
    $region15: #{tpu_custom_call.1} parent=1 // pred_check_branch
      %30 = sbr.rel (0) target = $region17
    $region16: #{tpu_custom_call.1} parent=1 // pred_region
      _
    $region17: #{tpu_custom_call.1} parent=1 // pred_fallthru
      _
    // Predicated region
    $region18: #{tpu_custom_call.1} parent=1 // pred_check
      _
    $region19: #{tpu_custom_call.1} parent=1 // pred_check_branch
      %32 = sbr.rel (0) target = $region21
    $region20: #{tpu_custom_call.1} parent=1 // pred_region
      _
    $region21: #{tpu_custom_call.1} parent=1 // pred_fallthru
      _
    // Predicated region
    $region22: #{tpu_custom_call.1} parent=1 // pred_check
      _
    $region23: #{tpu_custom_call.1} parent=1 // pred_check_branch
      %34 = sbr.rel (0) target = $region25
    $region24: #{tpu_custom_call.1} parent=1 // pred_region
      _
    $region25: #{tpu_custom_call.1} parent=1 // pred_fallthru
      _
    // Predicated region
    $region26: #{tpu_custom_call.1} parent=1 // pred_check
      _
    $region27: #{tpu_custom_call.1} parent=1 // pred_check_branch
      %36 = sbr.rel (0) target = $region29
    $region28: #{tpu_custom_call.1} parent=1 // pred_region
      _
    $region29: #{tpu_custom_call.1} parent=1 // pred_fallthru
      _
    // Predicated region
    $region30: #{tpu_custom_call.1} parent=1 // pred_check
      _
    $region31: #{tpu_custom_call.1} parent=1 // pred_check_branch
      %38 = sbr.rel (0) target = $region33
    $region32: #{tpu_custom_call.1} parent=1 // pred_region
      _
    $region33: #{tpu_custom_call.1} parent=1 // pred_fallthru
      _
    // Predicated region
    $region34: #{tpu_custom_call.1} parent=1 // pred_check
      _
    $region35: #{tpu_custom_call.1} parent=1 // pred_check_branch
      %40 = sbr.rel (0) target = $region37
    $region36: #{tpu_custom_call.1} parent=1 // pred_region
      _
    $region37: #{tpu_custom_call.1} parent=1 // pred_fallthru
      _
    // Predicated region
    $region38: #{tpu_custom_call.1} parent=1 // pred_check
      _
    $region39: #{tpu_custom_call.1} parent=1 // pred_check_branch
      %42 = sbr.rel (0) target = $region41
    $region40: #{tpu_custom_call.1} parent=1 // pred_region
      _
    $region41: #{tpu_custom_call.1} parent=1 // pred_fallthru
      _
    // Predicated region
    $region42: #{tpu_custom_call.1} parent=1 // pred_check
      _
    $region43: #{tpu_custom_call.1} parent=1 // pred_check_branch
      %44 = sbr.rel (0) target = $region45
    $region44: #{tpu_custom_call.1} parent=1 // pred_region
      _
    $region45: #{tpu_custom_call.1} parent=1 // pred_fallthru
      _
    // Predicated region
    $region46: #{tpu_custom_call.1} parent=1 // pred_check
      _
    $region47: #{tpu_custom_call.1} parent=1 // pred_check_branch
      %46 = sbr.rel (0) target = $region49
    $region48: #{tpu_custom_call.1} parent=1 // pred_region
      _
    $region49: #{tpu_custom_call.1} parent=1 // pred_fallthru
      _
    // Predicated region
    $region50: #{tpu_custom_call.1} parent=1 // pred_check
      _
    $region51: #{tpu_custom_call.1} parent=1 // pred_check_branch
      %48 = sbr.rel (0) target = $region53
    $region52: #{tpu_custom_call.1} parent=1 // pred_region
      _
    $region53: #{tpu_custom_call.1} parent=1 // pred_fallthru
      _
    // Predicated region
    $region54: #{tpu_custom_call.1} parent=1 // pred_check
      _
    $region55: #{tpu_custom_call.1} parent=1 // pred_check_branch
      %50 = sbr.rel (0) target = $region57
    $region56: #{tpu_custom_call.1} parent=1 // pred_region
      _
    $region57: #{tpu_custom_call.1} parent=1 // pred_fallthru
      _
    // Predicated region
    $region58: #{tpu_custom_call.1} parent=1 // pred_check
      _
    $region59: #{tpu_custom_call.1} parent=1 // pred_check_branch
      %52 = sbr.rel (0) target = $region61
    $region60: #{tpu_custom_call.1} parent=1 // pred_region
      _
    $region61: #{tpu_custom_call.1} parent=1 // pred_fallthru
      _
    // Predicated region
    $region62: #{tpu_custom_call.1} parent=1 // pred_check
      _
    $region63: #{tpu_custom_call.1} parent=1 // pred_check_branch
      %54 = sbr.rel (0) target = $region65
    $region64: #{tpu_custom_call.1} parent=1 // pred_region
      _
    $region65: #{tpu_custom_call.1} parent=1 // pred_fallthru
      _
    // Predicated region
    $region66: #{tpu_custom_call.1} parent=1 // pred_check
      _
    $region67: #{tpu_custom_call.1} parent=1 // pred_check_branch
      %56 = sbr.rel (0) target = $region69
    $region68: #{tpu_custom_call.1} parent=1 // pred_region
      _
    $region69: #{tpu_custom_call.1} parent=1 // pred_fallthru
      _
    %v57 = vld [vmem:[%s0] sm:$0x1]
    %v58 = vld [vmem:[%s1] sm:$0x1]
    %v59 = vld [vmem:[%s2] sm:$0x1]
    %v60 = vld [vmem:[%s3] sm:$0x1]
    %v61 = vld [vmem:[%s4] sm:$0x1]
    %63 = vset.pattern.permute.xlu0 0
    %64 = vperm.xlu0 %63, %v61
    %v65 = vpop.permute.xlu0 %64
    %v67 = vlaneseq
    %v68 = vshrl.u32 %v67, 7
    %v69 = vsub.s32 0, %v68
    %v70 = vrot.slane %v65, %v69
    %vm71 = vcmask 7168
    %v73 = vsel %vm71, %v58, 0
    %vm75 = vcmask 1040384
    %v77 = vsel %vm75, %v57, 0
    %79 = vmatprep.subr.mxu0 0.0
    %80 = vmatpush1.msra.mxu0 %v77
    %81 = vmatprep.subr.mxu0 0.0
    %82 = vmatpush1.msra.mxu0 0.0
    %83 = vmatprep.subr.mxu0 0.0
    %84 = vmatpush1.msra.mxu0 0.0
    %85 = vmatprep.subr.mxu0 0.0
    %86 = vmatpush1.msra.mxu0 0.0
    %87 = vmatprep.subr.mxu0 0.0
    %88 = vmatpush1.msra.mxu0 0.0
    %89 = vmatprep.subr.mxu0 0.0
    %90 = vmatpush1.msra.mxu0 0.0
    %91 = vmatprep.subr.mxu0 0.0
    %92 = vmatpush1.msra.mxu0 0.0
    %93 = vmatprep.subr.mxu0 0.0
    %94 = vmatpush1.msra.mxu0 0.0
    %95 = vmatprep.subr.mxu0 0.0
    %96 = vmatpush1.msra.mxu0 0.0
    %97 = vmatprep.subr.mxu0 0.0
    %98 = vmatpush1.msra.mxu0 0.0
    %99 = vmatprep.subr.mxu0 0.0
    %100 = vmatpush1.msra.mxu0 0.0
    %101 = vmatprep.subr.mxu0 0.0
    %102 = vmatpush1.msra.mxu0 0.0
    %103 = vmatprep.subr.mxu0 0.0
    %104 = vmatpush1.msra.mxu0 0.0
    %105 = vmatprep.subr.mxu0 0.0
    %106 = vmatpush1.msra.mxu0 0.0
    %107 = vmatprep.subr.mxu0 0.0
    %108 = vmatpush1.msra.mxu0 0.0
    %109 = vmatprep.subr.mxu0 0.0
    %110 = vmatpush1.msra.mxu0 0.0
    %111 = vmatprep.subr.mxu0 0.0
    %112 = vmatpush1.msra.mxu0 0.0
    %113 = vmatprep.subr.mxu0 0.0
    %114 = vmatpush1.msra.mxu0 0.0
    %115 = vmatprep.subr.mxu0 0.0
    %116 = vmatpush1.msra.mxu0 0.0
    %117 = vmatprep.subr.mxu0 0.0
    %118 = vmatpush1.msra.mxu0 0.0
    %119 = vmatprep.subr.mxu0 0.0
    %120 = vmatpush1.msra.mxu0 0.0
    %121 = vmatprep.subr.mxu0 0.0
    %122 = vmatpush1.msra.mxu0 0.0
    %123 = vmatprep.subr.mxu0 0.0
    %124 = vmatpush1.msra.mxu0 0.0
    %125 = vmatprep.subr.mxu0 0.0
    %126 = vmatpush1.msra.mxu0 0.0
    %127 = vmatprep.subr.mxu0 0.0
    %128 = vmatpush1.msra.mxu0 0.0
    %129 = vmatprep.subr.mxu0 0.0
    %130 = vmatpush1.msra.mxu0 0.0
    %131 = vmatprep.subr.mxu0 0.0
    %132 = vmatpush1.msra.mxu0 0.0
    %133 = vmatprep.subr.mxu0 0.0
    %134 = vmatpush1.msra.mxu0 0.0
    %135 = vmatprep.subr.mxu0 0.0
    %136 = vmatpush1.msra.mxu0 0.0
    %137 = vmatprep.subr.mxu0 0.0
    %138 = vmatpush1.msra.mxu0 0.0
    %139 = vmatprep.subr.mxu0 0.0
    %140 = vmatpush1.msra.mxu0 0.0
    %141 = vmatprep.subr.mxu0 0.0
    %142 = vmatpush1.msra.mxu0 0.0
    %143 = vmatprep.mubr.f32.mxu0 0.0
    %144 = vmatmul.mubr.f32.gmra.mrb[0].mxu0 %v73
    %v145 = vpop.f32.mrb[0].mxu0
    %v146 = vadd.f32 %v70, %v145
    %v147 = vpop.f32.mrb[0].mxu0
    %148 = vdwg.mxu0
    %v149 = vld [vmem:[%s5] sm:$0x1]
    %151 = vset.pattern.permute.xlu0 0
    %152 = vperm.xlu0 %151, %v149
    %v153 = vpop.permute.xlu0 %152
    %v155 = vlaneseq
    %v156 = vshrl.u32 %v155, 7
    %v157 = vsub.s32 0, %v156
    %v158 = vrot.slane %v153, %v157
    %v160 = vsel %vm71, %v59, 0
    %162 = vmatprep.subr.mxu0 0.0
    %163 = vmatpush1.msra.mxu0 %v77
    %164 = vmatprep.subr.mxu0 0.0
    %165 = vmatpush1.msra.mxu0 0.0
    %166 = vmatprep.subr.mxu0 0.0
    %167 = vmatpush1.msra.mxu0 0.0
    %168 = vmatprep.subr.mxu0 0.0
    %169 = vmatpush1.msra.mxu0 0.0
    %170 = vmatprep.subr.mxu0 0.0
    %171 = vmatpush1.msra.mxu0 0.0
    %172 = vmatprep.subr.mxu0 0.0
    %173 = vmatpush1.msra.mxu0 0.0
    %174 = vmatprep.subr.mxu0 0.0
    %175 = vmatpush1.msra.mxu0 0.0
    %176 = vmatprep.subr.mxu0 0.0
    %177 = vmatpush1.msra.mxu0 0.0
    %178 = vmatprep.subr.mxu0 0.0
    %179 = vmatpush1.msra.mxu0 0.0
    %180 = vmatprep.subr.mxu0 0.0
    %181 = vmatpush1.msra.mxu0 0.0
    %182 = vmatprep.subr.mxu0 0.0
    %183 = vmatpush1.msra.mxu0 0.0
    %184 = vmatprep.subr.mxu0 0.0
    %185 = vmatpush1.msra.mxu0 0.0
    %186 = vmatprep.subr.mxu0 0.0
    %187 = vmatpush1.msra.mxu0 0.0
    %188 = vmatprep.subr.mxu0 0.0
    %189 = vmatpush1.msra.mxu0 0.0
    %190 = vmatprep.subr.mxu0 0.0
    %191 = vmatpush1.msra.mxu0 0.0
    %192 = vmatprep.subr.mxu0 0.0
    %193 = vmatpush1.msra.mxu0 0.0
    %194 = vmatprep.subr.mxu0 0.0
    %195 = vmatpush1.msra.mxu0 0.0
    %196 = vmatprep.subr.mxu0 0.0
    %197 = vmatpush1.msra.mxu0 0.0
    %198 = vmatprep.subr.mxu0 0.0
    %199 = vmatpush1.msra.mxu0 0.0
    %200 = vmatprep.subr.mxu0 0.0
    %201 = vmatpush1.msra.mxu0 0.0
    %202 = vmatprep.subr.mxu0 0.0
    %203 = vmatpush1.msra.mxu0 0.0
    %204 = vmatprep.subr.mxu0 0.0
    %205 = vmatpush1.msra.mxu0 0.0
    %206 = vmatprep.subr.mxu0 0.0
    %207 = vmatpush1.msra.mxu0 0.0
    %208 = vmatprep.subr.mxu0 0.0
    %209 = vmatpush1.msra.mxu0 0.0
    %210 = vmatprep.subr.mxu0 0.0
    %211 = vmatpush1.msra.mxu0 0.0
    %212 = vmatprep.subr.mxu0 0.0
    %213 = vmatpush1.msra.mxu0 0.0
    %214 = vmatprep.subr.mxu0 0.0
    %215 = vmatpush1.msra.mxu0 0.0
    %216 = vmatprep.subr.mxu0 0.0
    %217 = vmatpush1.msra.mxu0 0.0
    %218 = vmatprep.subr.mxu0 0.0
    %219 = vmatpush1.msra.mxu0 0.0
    %220 = vmatprep.subr.mxu0 0.0
    %221 = vmatpush1.msra.mxu0 0.0
    %222 = vmatprep.subr.mxu0 0.0
    %223 = vmatpush1.msra.mxu0 0.0
    %224 = vmatprep.subr.mxu0 0.0
    %225 = vmatpush1.msra.mxu0 0.0
    %226 = vmatprep.mubr.f32.mxu0 0.0
    %227 = vmatmul.mubr.f32.gmra.mrb[0].mxu0 %v160
    %v228 = vpop.f32.mrb[0].mxu0
    %v229 = vadd.f32 %v158, %v228
    %v230 = vpop.f32.mrb[0].mxu0
    %231 = vdwg.mxu0
    %v232 = vld [vmem:[%s6] sm:$0x1]
    %234 = vset.pattern.permute.xlu0 0
    %235 = vperm.xlu0 %234, %v232
    %v236 = vpop.permute.xlu0 %235
    %v238 = vlaneseq
    %v239 = vshrl.u32 %v238, 7
    %v240 = vsub.s32 0, %v239
    %v241 = vrot.slane %v236, %v240
    %v243 = vsel %vm71, %v60, 0
    %245 = vmatprep.subr.mxu0 0.0
    %246 = vmatpush1.msra.mxu0 %v77
    %247 = vmatprep.subr.mxu0 0.0
    %248 = vmatpush1.msra.mxu0 0.0
    %249 = vmatprep.subr.mxu0 0.0
    %250 = vmatpush1.msra.mxu0 0.0
    %251 = vmatprep.subr.mxu0 0.0
    %252 = vmatpush1.msra.mxu0 0.0
    %253 = vmatprep.subr.mxu0 0.0
    %254 = vmatpush1.msra.mxu0 0.0
    %255 = vmatprep.subr.mxu0 0.0
    %256 = vmatpush1.msra.mxu0 0.0
    %257 = vmatprep.subr.mxu0 0.0
    %258 = vmatpush1.msra.mxu0 0.0
    %259 = vmatprep.subr.mxu0 0.0
    %260 = vmatpush1.msra.mxu0 0.0
    %261 = vmatprep.subr.mxu0 0.0
    %262 = vmatpush1.msra.mxu0 0.0
    %263 = vmatprep.subr.mxu0 0.0
    %264 = vmatpush1.msra.mxu0 0.0
    %265 = vmatprep.subr.mxu0 0.0
    %266 = vmatpush1.msra.mxu0 0.0
    %267 = vmatprep.subr.mxu0 0.0
    %268 = vmatpush1.msra.mxu0 0.0
    %269 = vmatprep.subr.mxu0 0.0
    %270 = vmatpush1.msra.mxu0 0.0
    %271 = vmatprep.subr.mxu0 0.0
    %272 = vmatpush1.msra.mxu0 0.0
    %273 = vmatprep.subr.mxu0 0.0
    %274 = vmatpush1.msra.mxu0 0.0
    %275 = vmatprep.subr.mxu0 0.0
    %276 = vmatpush1.msra.mxu0 0.0
    %277 = vmatprep.subr.mxu0 0.0
    %278 = vmatpush1.msra.mxu0 0.0
    %279 = vmatprep.subr.mxu0 0.0
    %280 = vmatpush1.msra.mxu0 0.0
    %281 = vmatprep.subr.mxu0 0.0
    %282 = vmatpush1.msra.mxu0 0.0
    %283 = vmatprep.subr.mxu0 0.0
    %284 = vmatpush1.msra.mxu0 0.0
    %285 = vmatprep.subr.mxu0 0.0
    %286 = vmatpush1.msra.mxu0 0.0
    %287 = vmatprep.subr.mxu0 0.0
    %288 = vmatpush1.msra.mxu0 0.0
    %289 = vmatprep.subr.mxu0 0.0
    %290 = vmatpush1.msra.mxu0 0.0
    %291 = vmatprep.subr.mxu0 0.0
    %292 = vmatpush1.msra.mxu0 0.0
    %293 = vmatprep.subr.mxu0 0.0
    %294 = vmatpush1.msra.mxu0 0.0
    %295 = vmatprep.subr.mxu0 0.0
    %296 = vmatpush1.msra.mxu0 0.0
    %297 = vmatprep.subr.mxu0 0.0
    %298 = vmatpush1.msra.mxu0 0.0
    %299 = vmatprep.subr.mxu0 0.0
    %300 = vmatpush1.msra.mxu0 0.0
    %301 = vmatprep.subr.mxu0 0.0
    %302 = vmatpush1.msra.mxu0 0.0
    %303 = vmatprep.subr.mxu0 0.0
    %304 = vmatpush1.msra.mxu0 0.0
    %305 = vmatprep.subr.mxu0 0.0
    %306 = vmatpush1.msra.mxu0 0.0
    %307 = vmatprep.subr.mxu0 0.0
    %308 = vmatpush1.msra.mxu0 0.0
    %309 = vmatprep.mubr.f32.mxu0 0.0
    %310 = vmatmul.mubr.f32.gmra.mrb[0].mxu0 %v243
    %v311 = vpop.f32.mrb[0].mxu0
    %v312 = vadd.f32 %v241, %v311
    %v313 = vpop.f32.mrb[0].mxu0
    %314 = vdwg.mxu0
    %315 = vxpose.xlu0.b32.start [1/16] %v146, 128
    %316 = vxpose.xlu0.b32.cont [2/16] 0.0, 128
    %317 = vxpose.xlu0.b32.cont [3/16] 0.0, 128
    %318 = vxpose.xlu0.b32.cont [4/16] 0.0, 128
    %319 = vxpose.xlu0.b32.cont [5/16] 0.0, 128
    %320 = vxpose.xlu0.b32.cont [6/16] 0.0, 128
    %321 = vxpose.xlu0.b32.cont [7/16] 0.0, 128
    %322 = vxpose.xlu0.b32.cont [8/16] 0.0, 128
    %323 = vxpose.xlu0.b32.cont [9/16] 0.0, 128
    %324 = vxpose.xlu0.b32.cont [10/16] 0.0, 128
    %325 = vxpose.xlu0.b32.cont [11/16] 0.0, 128
    %326 = vxpose.xlu0.b32.cont [12/16] 0.0, 128
    %327 = vxpose.xlu0.b32.cont [13/16] 0.0, 128
    %328 = vxpose.xlu0.b32.cont [14/16] 0.0, 128
    %329 = vxpose.xlu0.b32.cont [15/16] 0.0, 128
    %330 = vxpose.xlu0.b32.end [16/16] 0.0, 128
    %v331 = vpop.trf.xlu0
    %v332 = vpop.trf.xlu0
    %v333 = vpop.trf.xlu0
    %v334 = vpop.trf.xlu0
    %v335 = vpop.trf.xlu0
    %v336 = vpop.trf.xlu0
    %v337 = vpop.trf.xlu0
    %v338 = vpop.trf.xlu0
    %v339 = vpop.trf.xlu0
    %v340 = vpop.trf.xlu0
    %v341 = vpop.trf.xlu0
    %v342 = vpop.trf.xlu0
    %v343 = vpop.trf.xlu0
    %v344 = vpop.trf.xlu0
    %v345 = vpop.trf.xlu0
    %v346 = vpop.trf.xlu0
    %v348 = vsel %vm71, %v331, 0
    %v351 = vsel %vm71, %v332, 0
    %v354 = vsel %vm75, %v229, 0
    %356 = vmatprep.subr.mxu0 0.0
    %357 = vmatpush1.msra.mxu0 %v354
    %358 = vmatprep.subr.mxu0 0.0
    %359 = vmatpush1.msra.mxu0 0.0
    %360 = vmatprep.subr.mxu0 0.0
    %361 = vmatpush1.msra.mxu0 0.0
    %362 = vmatprep.subr.mxu0 0.0
    %363 = vmatpush1.msra.mxu0 0.0
    %364 = vmatprep.subr.mxu0 0.0
    %365 = vmatpush1.msra.mxu0 0.0
    %366 = vmatprep.subr.mxu0 0.0
    %367 = vmatpush1.msra.mxu0 0.0
    %368 = vmatprep.subr.mxu0 0.0
    %369 = vmatpush1.msra.mxu0 0.0
    %370 = vmatprep.subr.mxu0 0.0
    %371 = vmatpush1.msra.mxu0 0.0
    %372 = vmatprep.subr.mxu0 0.0
    %373 = vmatpush1.msra.mxu0 0.0
    %374 = vmatprep.subr.mxu0 0.0
    %375 = vmatpush1.msra.mxu0 0.0
    %376 = vmatprep.subr.mxu0 0.0
    %377 = vmatpush1.msra.mxu0 0.0
    %378 = vmatprep.subr.mxu0 0.0
    %379 = vmatpush1.msra.mxu0 0.0
    %380 = vmatprep.subr.mxu0 0.0
    %381 = vmatpush1.msra.mxu0 0.0
    %382 = vmatprep.subr.mxu0 0.0
    %383 = vmatpush1.msra.mxu0 0.0
    %384 = vmatprep.subr.mxu0 0.0
    %385 = vmatpush1.msra.mxu0 0.0
    %386 = vmatprep.subr.mxu0 0.0
    %387 = vmatpush1.msra.mxu0 0.0
    %388 = vmatprep.subr.mxu0 0.0
    %389 = vmatpush1.msra.mxu0 0.0
    %390 = vmatprep.subr.mxu0 0.0
    %391 = vmatpush1.msra.mxu0 0.0
    %392 = vmatprep.subr.mxu0 0.0
    %393 = vmatpush1.msra.mxu0 0.0
    %394 = vmatprep.subr.mxu0 0.0
    %395 = vmatpush1.msra.mxu0 0.0
    %396 = vmatprep.subr.mxu0 0.0
    %397 = vmatpush1.msra.mxu0 0.0
    %398 = vmatprep.subr.mxu0 0.0
    %399 = vmatpush1.msra.mxu0 0.0
    %400 = vmatprep.subr.mxu0 0.0
    %401 = vmatpush1.msra.mxu0 0.0
    %402 = vmatprep.subr.mxu0 0.0
    %403 = vmatpush1.msra.mxu0 0.0
    %404 = vmatprep.subr.mxu0 0.0
    %405 = vmatpush1.msra.mxu0 0.0
    %406 = vmatprep.subr.mxu0 0.0
    %407 = vmatpush1.msra.mxu0 0.0
    %408 = vmatprep.subr.mxu0 0.0
    %409 = vmatpush1.msra.mxu0 0.0
    %410 = vmatprep.subr.mxu0 0.0
    %411 = vmatpush1.msra.mxu0 0.0
    %412 = vmatprep.subr.mxu0 0.0
    %413 = vmatpush1.msra.mxu0 0.0
    %414 = vmatprep.subr.mxu0 0.0
    %415 = vmatpush1.msra.mxu0 0.0
    %416 = vmatprep.subr.mxu0 0.0
    %417 = vmatpush1.msra.mxu0 0.0
    %418 = vmatprep.subr.mxu0 0.0
    %419 = vmatpush1.msra.mxu0 0.0
    %420 = vmatprep.mubr.f32.mxu0 0.0
    %421 = vmatmul.mubr.f32.gmra.mrb[0].mxu0 %v348
    %v422 = vpop.f32.mrb[0].mxu0
    %v423 = vadd.f32 0.0, %v422
    %v424 = vpop.f32.mrb[0].mxu0
    %425 = vmatprep.mubr.f32.mxu0 0.0
    %426 = vmatmul.mubr.f32.gmra.mrb[0].mxu0 %v351
    %v427 = vpop.f32.mrb[0].mxu0
    %v428 = vadd.f32 0.0, %v427
    %v429 = vpop.f32.mrb[0].mxu0
    %430 = vdwg.mxu0
    %vm431 = vcmask 130048
    %v432 = vsel %vm431, %v423, -inf
    %433 = vmax.xlane.f32.xlu0 %v432
    %v434 = vpop.xlane.xlu0 %433
    %v435 = vsel %vm431, %v428, -inf
    %436 = vmax.xlane.f32.xlu0 %v435
    %v437 = vpop.xlane.xlu0 %436
    %v438 = vsub.f32 %v423, %v434
    %v439 = vsub.f32 %v428, %v437
    %v440 = vmul.f32 %v438, 1.442695
    %v441 = vpow.pop %v440
    %v442 = vmul.f32 %v439, 1.442695
    %v443 = vpow.pop %v442
    %v444 = vsel %vm431, %v441, 0.0
    %445 = vadd.xlane.f32.xlu0 %v444
    %v446 = vpop.xlane.xlu0 %445
    %v447 = vsel %vm431, %v443, 0.0
    %448 = vadd.xlane.f32.xlu0 %v447
    %v449 = vpop.xlane.xlu0 %448
    %v450 = vrcp.pop %v446
    %v451 = vrcp.pop %v449
    %v452 = vmul.f32 %v441, %v450
    %v453 = vmul.f32 %v443, %v451
    %v455 = vsel %vm431, %v312, 0
    %v458 = vsel %vm431, %v452, 0
    %v461 = vsel %vm431, %v453, 0
    %463 = vmatprep.subr.mxu0 0.0
    %464 = vmatpush1.xpose.msra.mxu0 %v458
    %465 = vmatprep.subr.mxu0 0.0
    %466 = vmatpush1.xpose.msra.mxu0 %v461
    %467 = vmatprep.subr.mxu0 0.0
    %468 = vmatpush1.xpose.msra.mxu0 0.0
    %469 = vmatprep.subr.mxu0 0.0
    %470 = vmatpush1.xpose.msra.mxu0 0.0
    %471 = vmatprep.subr.mxu0 0.0
    %472 = vmatpush1.xpose.msra.mxu0 0.0
    %473 = vmatprep.subr.mxu0 0.0
    %474 = vmatpush1.xpose.msra.mxu0 0.0
    %475 = vmatprep.subr.mxu0 0.0
    %476 = vmatpush1.xpose.msra.mxu0 0.0
    %477 = vmatprep.subr.mxu0 0.0
    %478 = vmatpush1.xpose.msra.mxu0 0.0
    %479 = vmatprep.subr.mxu0 0.0
    %480 = vmatpush1.xpose.msra.mxu0 0.0
    %481 = vmatprep.subr.mxu0 0.0
    %482 = vmatpush1.xpose.msra.mxu0 0.0
    %483 = vmatprep.subr.mxu0 0.0
    %484 = vmatpush1.xpose.msra.mxu0 0.0
    %485 = vmatprep.subr.mxu0 0.0
    %486 = vmatpush1.xpose.msra.mxu0 0.0
    %487 = vmatprep.subr.mxu0 0.0
    %488 = vmatpush1.xpose.msra.mxu0 0.0
    %489 = vmatprep.subr.mxu0 0.0
    %490 = vmatpush1.xpose.msra.mxu0 0.0
    %491 = vmatprep.subr.mxu0 0.0
    %492 = vmatpush1.xpose.msra.mxu0 0.0
    %493 = vmatprep.subr.mxu0 0.0
    %494 = vmatpush1.xpose.msra.mxu0 0.0
    %495 = vmatprep.subr.mxu0 0.0
    %496 = vmatpush1.xpose.msra.mxu0 0.0
    %497 = vmatprep.subr.mxu0 0.0
    %498 = vmatpush1.xpose.msra.mxu0 0.0
    %499 = vmatprep.subr.mxu0 0.0
    %500 = vmatpush1.xpose.msra.mxu0 0.0
    %501 = vmatprep.subr.mxu0 0.0
    %502 = vmatpush1.xpose.msra.mxu0 0.0
    %503 = vmatprep.subr.mxu0 0.0
    %504 = vmatpush1.xpose.msra.mxu0 0.0
    %505 = vmatprep.subr.mxu0 0.0
    %506 = vmatpush1.xpose.msra.mxu0 0.0
    %507 = vmatprep.subr.mxu0 0.0
    %508 = vmatpush1.xpose.msra.mxu0 0.0
    %509 = vmatprep.subr.mxu0 0.0
    %510 = vmatpush1.xpose.msra.mxu0 0.0
    %511 = vmatprep.subr.mxu0 0.0
    %512 = vmatpush1.xpose.msra.mxu0 0.0
    %513 = vmatprep.subr.mxu0 0.0
    %514 = vmatpush1.xpose.msra.mxu0 0.0
    %515 = vmatprep.subr.mxu0 0.0
    %516 = vmatpush1.xpose.msra.mxu0 0.0
    %517 = vmatprep.subr.mxu0 0.0
    %518 = vmatpush1.xpose.msra.mxu0 0.0
    %519 = vmatprep.subr.mxu0 0.0
    %520 = vmatpush1.xpose.msra.mxu0 0.0
    %521 = vmatprep.subr.mxu0 0.0
    %522 = vmatpush1.xpose.msra.mxu0 0.0
    %523 = vmatprep.subr.mxu0 0.0
    %524 = vmatpush1.xpose.msra.mxu0 0.0
    %525 = vmatprep.subr.mxu0 0.0
    %526 = vmatpush1.xpose.msra.mxu0 0.0
    %527 = vmatprep.mubr.f32.mxu0 0.0
    %528 = vmatmul.mubr.f32.gmra.mrb[0].mxu0 %v455
    %v529 = vpop.f32.mrb[0].mxu0
    %v530 = vadd.f32 0.0, %v529
    %v531 = vpop.f32.mrb[0].mxu0
    %532 = vdwg.mxu0
    %v533 = vld [vmem:[%s7] sm:$0x1]
    %v534 = vld [vmem:[%s8] sm:$0x1]
    %536 = vset.pattern.permute.xlu0 0
    %537 = vperm.xlu0 %536, %v534
    %v538 = vpop.permute.xlu0 %537
    %v540 = vlaneseq
    %v541 = vshrl.u32 %v540, 7
    %v542 = vsub.s32 0, %v541
    %v543 = vrot.slane %v538, %v542
    %v545 = vsel %vm71, %v533, 0
    %v548 = vsel %vm75, %v530, 0
    %550 = vmatprep.subr.mxu0 0.0
    %551 = vmatpush1.msra.mxu0 %v548
    %552 = vmatprep.subr.mxu0 0.0
    %553 = vmatpush1.msra.mxu0 0.0
    %554 = vmatprep.subr.mxu0 0.0
    %555 = vmatpush1.msra.mxu0 0.0
    %556 = vmatprep.subr.mxu0 0.0
    %557 = vmatpush1.msra.mxu0 0.0
    %558 = vmatprep.subr.mxu0 0.0
    %559 = vmatpush1.msra.mxu0 0.0
    %560 = vmatprep.subr.mxu0 0.0
    %561 = vmatpush1.msra.mxu0 0.0
    %562 = vmatprep.subr.mxu0 0.0
    %563 = vmatpush1.msra.mxu0 0.0
    %564 = vmatprep.subr.mxu0 0.0
    %565 = vmatpush1.msra.mxu0 0.0
    %566 = vmatprep.subr.mxu0 0.0
    %567 = vmatpush1.msra.mxu0 0.0
    %568 = vmatprep.subr.mxu0 0.0
    %569 = vmatpush1.msra.mxu0 0.0
    %570 = vmatprep.subr.mxu0 0.0
    %571 = vmatpush1.msra.mxu0 0.0
    %572 = vmatprep.subr.mxu0 0.0
    %573 = vmatpush1.msra.mxu0 0.0
    %574 = vmatprep.subr.mxu0 0.0
    %575 = vmatpush1.msra.mxu0 0.0
    %576 = vmatprep.subr.mxu0 0.0
    %577 = vmatpush1.msra.mxu0 0.0
    %578 = vmatprep.subr.mxu0 0.0
    %579 = vmatpush1.msra.mxu0 0.0
    %580 = vmatprep.subr.mxu0 0.0
    %581 = vmatpush1.msra.mxu0 0.0
    %582 = vmatprep.subr.mxu0 0.0
    %583 = vmatpush1.msra.mxu0 0.0
    %584 = vmatprep.subr.mxu0 0.0
    %585 = vmatpush1.msra.mxu0 0.0
    %586 = vmatprep.subr.mxu0 0.0
    %587 = vmatpush1.msra.mxu0 0.0
    %588 = vmatprep.subr.mxu0 0.0
    %589 = vmatpush1.msra.mxu0 0.0
    %590 = vmatprep.subr.mxu0 0.0
    %591 = vmatpush1.msra.mxu0 0.0
    %592 = vmatprep.subr.mxu0 0.0
    %593 = vmatpush1.msra.mxu0 0.0
    %594 = vmatprep.subr.mxu0 0.0
    %595 = vmatpush1.msra.mxu0 0.0
    %596 = vmatprep.subr.mxu0 0.0
    %597 = vmatpush1.msra.mxu0 0.0
    %598 = vmatprep.subr.mxu0 0.0
    %599 = vmatpush1.msra.mxu0 0.0
    %600 = vmatprep.subr.mxu0 0.0
    %601 = vmatpush1.msra.mxu0 0.0
    %602 = vmatprep.subr.mxu0 0.0
    %603 = vmatpush1.msra.mxu0 0.0
    %604 = vmatprep.subr.mxu0 0.0
    %605 = vmatpush1.msra.mxu0 0.0
    %606 = vmatprep.subr.mxu0 0.0
    %607 = vmatpush1.msra.mxu0 0.0
    %608 = vmatprep.subr.mxu0 0.0
    %609 = vmatpush1.msra.mxu0 0.0
    %610 = vmatprep.subr.mxu0 0.0
    %611 = vmatpush1.msra.mxu0 0.0
    %612 = vmatprep.subr.mxu0 0.0
    %613 = vmatpush1.msra.mxu0 0.0
    %614 = vmatprep.mubr.f32.mxu0 0.0
    %615 = vmatmul.mubr.f32.gmra.mrb[0].mxu0 %v545
    %v616 = vpop.f32.mrb[0].mxu0
    %v617 = vadd.f32 %v543, %v616
    %v618 = vpop.f32.mrb[0].mxu0
    %619 = vdwg.mxu0
    %v620 = vadd.f32 %v57, %v617
    %v621 = vld [vmem:[%s9] sm:$0x1]
    %v622 = vld [vmem:[%s10] sm:$0x1]
    %v623 = vadd.f32 %v620, 0.0
    %v624 = vsub.f32 %v620, %v623
    %v625 = vmul.f32 %v624, %v624
    %v626 = vadd.f32 %v625, 0.0
    %v627 = vadd.f32 %v626, 1e-05
    %v628 = vrsqrt.pop %v627
    %v629 = vmul.f32 %v624, %v628
    %631 = vset.pattern.permute.xlu0 0
    %632 = vperm.xlu0 %631, %v621
    %v633 = vpop.permute.xlu0 %632
    %v635 = vlaneseq
    %v636 = vshrl.u32 %v635, 7
    %v637 = vsub.s32 0, %v636
    %v638 = vrot.slane %v633, %v637
    %v639 = vmul.f32 %v629, %v638
    %641 = vset.pattern.permute.xlu0 0
    %642 = vperm.xlu0 %641, %v622
    %v643 = vpop.permute.xlu0 %642
    %v645 = vlaneseq
    %v646 = vshrl.u32 %v645, 7
    %v647 = vsub.s32 0, %v646
    %v648 = vrot.slane %v643, %v647
    %v649 = vadd.f32 %v639, %v648
    %v650 = vld [vmem:[%s11] sm:$0xf]
    %v651 = vld [vmem:[%s12] sm:$0xf]
    %653 = vset.pattern.permute.xlu0 0
    %654 = vperm.xlu0 %653, %v651
    %v655 = vpop.permute.xlu0 %654
    %v658 = vsel %vm71, %v650, 0
    %v661 = vsel %vm75, %v649, 0
    %663 = vmatprep.subr.mxu0 0.0
    %664 = vmatpush1.msra.mxu0 %v661
    %665 = vmatprep.subr.mxu0 0.0
    %666 = vmatpush1.msra.mxu0 0.0
    %667 = vmatprep.subr.mxu0 0.0
    %668 = vmatpush1.msra.mxu0 0.0
    %669 = vmatprep.subr.mxu0 0.0
    %670 = vmatpush1.msra.mxu0 0.0
    %671 = vmatprep.subr.mxu0 0.0
    %672 = vmatpush1.msra.mxu0 0.0
    %673 = vmatprep.subr.mxu0 0.0
    %674 = vmatpush1.msra.mxu0 0.0
    %675 = vmatprep.subr.mxu0 0.0
    %676 = vmatpush1.msra.mxu0 0.0
    %677 = vmatprep.subr.mxu0 0.0
    %678 = vmatpush1.msra.mxu0 0.0
    %679 = vmatprep.subr.mxu0 0.0
    %680 = vmatpush1.msra.mxu0 0.0
    %681 = vmatprep.subr.mxu0 0.0
    %682 = vmatpush1.msra.mxu0 0.0
    %683 = vmatprep.subr.mxu0 0.0
    %684 = vmatpush1.msra.mxu0 0.0
    %685 = vmatprep.subr.mxu0 0.0
    %686 = vmatpush1.msra.mxu0 0.0
    %687 = vmatprep.subr.mxu0 0.0
    %688 = vmatpush1.msra.mxu0 0.0
    %689 = vmatprep.subr.mxu0 0.0
    %690 = vmatpush1.msra.mxu0 0.0
    %691 = vmatprep.subr.mxu0 0.0
    %692 = vmatpush1.msra.mxu0 0.0
    %693 = vmatprep.subr.mxu0 0.0
    %694 = vmatpush1.msra.mxu0 0.0
    %695 = vmatprep.subr.mxu0 0.0
    %696 = vmatpush1.msra.mxu0 0.0
    %697 = vmatprep.subr.mxu0 0.0
    %698 = vmatpush1.msra.mxu0 0.0
    %699 = vmatprep.subr.mxu0 0.0
    %700 = vmatpush1.msra.mxu0 0.0
    %701 = vmatprep.subr.mxu0 0.0
    %702 = vmatpush1.msra.mxu0 0.0
    %703 = vmatprep.subr.mxu0 0.0
    %704 = vmatpush1.msra.mxu0 0.0
    %705 = vmatprep.subr.mxu0 0.0
    %706 = vmatpush1.msra.mxu0 0.0
    %707 = vmatprep.subr.mxu0 0.0
    %708 = vmatpush1.msra.mxu0 0.0
    %709 = vmatprep.subr.mxu0 0.0
    %710 = vmatpush1.msra.mxu0 0.0
    %711 = vmatprep.subr.mxu0 0.0
    %712 = vmatpush1.msra.mxu0 0.0
    %713 = vmatprep.subr.mxu0 0.0
    %714 = vmatpush1.msra.mxu0 0.0
    %715 = vmatprep.subr.mxu0 0.0
    %716 = vmatpush1.msra.mxu0 0.0
    %717 = vmatprep.subr.mxu0 0.0
    %718 = vmatpush1.msra.mxu0 0.0
    %719 = vmatprep.subr.mxu0 0.0
    %720 = vmatpush1.msra.mxu0 0.0
    %721 = vmatprep.subr.mxu0 0.0
    %722 = vmatpush1.msra.mxu0 0.0
    %723 = vmatprep.subr.mxu0 0.0
    %724 = vmatpush1.msra.mxu0 0.0
    %725 = vmatprep.subr.mxu0 0.0
    %726 = vmatpush1.msra.mxu0 0.0
    %727 = vmatprep.mubr.f32.mxu0 0.0
    %728 = vmatmul.mubr.f32.gmra.mrb[0].mxu0 %v658
    %v729 = vpop.f32.mrb[0].mxu0
    %v730 = vadd.f32 %v655, %v729
    %v731 = vpop.f32.mrb[0].mxu0
    %732 = vdwg.mxu0
    %v733 = vmul.f32 %v730, 0.5
    %v734 = vmul.f32 %v730, 0.70710677
    %v735 = verf.f32.pop %v734
    %v736 = vadd.f32 %v735, 1.0
    %v737 = vmul.f32 %v733, %v736
    %v738 = vld [vmem:[%s13] sm:$0x1]
    %v739 = vld [vmem:[%s14] sm:$0x1]
    %741 = vset.pattern.permute.xlu0 0
    %742 = vperm.xlu0 %741, %v739
    %v743 = vpop.permute.xlu0 %742
    %v745 = vlaneseq
    %v746 = vshrl.u32 %v745, 7
    %v747 = vsub.s32 0, %v746
    %v748 = vrot.slane %v743, %v747
    %vm749 = vcmask 31744
    %v751 = vsel %vm749, %v738, 0
    %vm753 = vcmask 1043456
    %v755 = vsel %vm753, %v737, 0
    %757 = vmatprep.subr.mxu0 0.0
    %758 = vmatpush1.msra.mxu0 %v755
    %759 = vmatprep.subr.mxu0 0.0
    %760 = vmatpush1.msra.mxu0 0.0
    %761 = vmatprep.subr.mxu0 0.0
    %762 = vmatpush1.msra.mxu0 0.0
    %763 = vmatprep.subr.mxu0 0.0
    %764 = vmatpush1.msra.mxu0 0.0
    %765 = vmatprep.subr.mxu0 0.0
    %766 = vmatpush1.msra.mxu0 0.0
    %767 = vmatprep.subr.mxu0 0.0
    %768 = vmatpush1.msra.mxu0 0.0
    %769 = vmatprep.subr.mxu0 0.0
    %770 = vmatpush1.msra.mxu0 0.0
    %771 = vmatprep.subr.mxu0 0.0
    %772 = vmatpush1.msra.mxu0 0.0
    %773 = vmatprep.subr.mxu0 0.0
    %774 = vmatpush1.msra.mxu0 0.0
    %775 = vmatprep.subr.mxu0 0.0
    %776 = vmatpush1.msra.mxu0 0.0
    %777 = vmatprep.subr.mxu0 0.0
    %778 = vmatpush1.msra.mxu0 0.0
    %779 = vmatprep.subr.mxu0 0.0
    %780 = vmatpush1.msra.mxu0 0.0
    %781 = vmatprep.subr.mxu0 0.0
    %782 = vmatpush1.msra.mxu0 0.0
    %783 = vmatprep.subr.mxu0 0.0
    %784 = vmatpush1.msra.mxu0 0.0
    %785 = vmatprep.subr.mxu0 0.0
    %786 = vmatpush1.msra.mxu0 0.0
    %787 = vmatprep.subr.mxu0 0.0
    %788 = vmatpush1.msra.mxu0 0.0
    %789 = vmatprep.subr.mxu0 0.0
    %790 = vmatpush1.msra.mxu0 0.0
    %791 = vmatprep.subr.mxu0 0.0
    %792 = vmatpush1.msra.mxu0 0.0
    %793 = vmatprep.subr.mxu0 0.0
    %794 = vmatpush1.msra.mxu0 0.0
    %795 = vmatprep.subr.mxu0 0.0
    %796 = vmatpush1.msra.mxu0 0.0
    %797 = vmatprep.subr.mxu0 0.0
    %798 = vmatpush1.msra.mxu0 0.0
    %799 = vmatprep.subr.mxu0 0.0
    %800 = vmatpush1.msra.mxu0 0.0
    %801 = vmatprep.subr.mxu0 0.0
    %802 = vmatpush1.msra.mxu0 0.0
    %803 = vmatprep.subr.mxu0 0.0
    %804 = vmatpush1.msra.mxu0 0.0
    %805 = vmatprep.subr.mxu0 0.0
    %806 = vmatpush1.msra.mxu0 0.0
    %807 = vmatprep.subr.mxu0 0.0
    %808 = vmatpush1.msra.mxu0 0.0
    %809 = vmatprep.subr.mxu0 0.0
    %810 = vmatpush1.msra.mxu0 0.0
    %811 = vmatprep.subr.mxu0 0.0
    %812 = vmatpush1.msra.mxu0 0.0
    %813 = vmatprep.subr.mxu0 0.0
    %814 = vmatpush1.msra.mxu0 0.0
    %815 = vmatprep.subr.mxu0 0.0
    %816 = vmatpush1.msra.mxu0 0.0
    %817 = vmatprep.subr.mxu0 0.0
    %818 = vmatpush1.msra.mxu0 0.0
    %819 = vmatprep.subr.mxu0 0.0
    %820 = vmatpush1.msra.mxu0 0.0
    %821 = vmatprep.mubr.f32.mxu0 0.0
    %822 = vmatmul.mubr.f32.gmra.mrb[0].mxu0 %v751
    %v823 = vpop.f32.mrb[0].mxu0
    %v824 = vadd.f32 %v748, %v823
    %v825 = vpop.f32.mrb[0].mxu0
    %826 = vdwg.mxu0
    %v827 = vadd.f32 %v649, %v824
    %v828 = vld [vmem:[%s15] sm:$0x1]
    %v829 = vld [vmem:[%s16] sm:$0x1]
    %v830 = vadd.f32 %v827, 0.0
    %v831 = vsub.f32 %v827, %v830
    %v832 = vmul.f32 %v831, %v831
    %v833 = vadd.f32 %v832, 0.0
    %v834 = vadd.f32 %v833, 1e-05
    %v835 = vrsqrt.pop %v834
    %v836 = vmul.f32 %v831, %v835
    %838 = vset.pattern.permute.xlu0 0
    %839 = vperm.xlu0 %838, %v828
    %v840 = vpop.permute.xlu0 %839
    %v842 = vlaneseq
    %v843 = vshrl.u32 %v842, 7
    %v844 = vsub.s32 0, %v843
    %v845 = vrot.slane %v840, %v844
    %v846 = vmul.f32 %v836, %v845
    %848 = vset.pattern.permute.xlu0 0
    %849 = vperm.xlu0 %848, %v829
    %v850 = vpop.permute.xlu0 %849
    %v852 = vlaneseq
    %v853 = vshrl.u32 %v852, 7
    %v854 = vsub.s32 0, %v853
    %v855 = vrot.slane %v850, %v854
    %v856 = vadd.f32 %v846, %v855
    %vm857 = vcmp.gt.f32.partialorder %v856, 0.0
    %v858 = vmin.f32 %v856, 0.0
    %v859 = vmul.f32 %v858, 1.442695
    %v860 = vpow.pop %v859
    %v861 = vsub.f32 %v860, 1.0
    %v862 = vsel %vm857, %v856, %v861
    %s863 = scalar_lea.vmem %s1, 1
    %v864 = vld [vmem:[%s863] sm:$0x1]
    %s865 = scalar_lea.vmem %s2, 1
    %v866 = vld [vmem:[%s865] sm:$0x1]
    %s867 = scalar_lea.vmem %s3, 1
    %v868 = vld [vmem:[%s867] sm:$0x1]
    %s869 = scalar_lea.vmem %s4, 1
    %v870 = vld [vmem:[%s869] sm:$0x1]
    %872 = vset.pattern.permute.xlu0 0
    %873 = vperm.xlu0 %872, %v870
    %v874 = vpop.permute.xlu0 %873
    %v876 = vlaneseq
    %v877 = vshrl.u32 %v876, 7
    %v878 = vsub.s32 0, %v877
    %v879 = vrot.slane %v874, %v878
    %v881 = vsel %vm71, %v864, 0
    %v884 = vsel %vm75, %v862, 0
    %886 = vmatprep.subr.mxu0 0.0
    %887 = vmatpush1.msra.mxu0 %v884
    %888 = vmatprep.subr.mxu0 0.0
    %889 = vmatpush1.msra.mxu0 0.0
    %890 = vmatprep.subr.mxu0 0.0
    %891 = vmatpush1.msra.mxu0 0.0
    %892 = vmatprep.subr.mxu0 0.0
    %893 = vmatpush1.msra.mxu0 0.0
    %894 = vmatprep.subr.mxu0 0.0
    %895 = vmatpush1.msra.mxu0 0.0
    %896 = vmatprep.subr.mxu0 0.0
    %897 = vmatpush1.msra.mxu0 0.0
    %898 = vmatprep.subr.mxu0 0.0
    %899 = vmatpush1.msra.mxu0 0.0
    %900 = vmatprep.subr.mxu0 0.0
    %901 = vmatpush1.msra.mxu0 0.0
    %902 = vmatprep.subr.mxu0 0.0
    %903 = vmatpush1.msra.mxu0 0.0
    %904 = vmatprep.subr.mxu0 0.0
    %905 = vmatpush1.msra.mxu0 0.0
    %906 = vmatprep.subr.mxu0 0.0
    %907 = vmatpush1.msra.mxu0 0.0
    %908 = vmatprep.subr.mxu0 0.0
    %909 = vmatpush1.msra.mxu0 0.0
    %910 = vmatprep.subr.mxu0 0.0
    %911 = vmatpush1.msra.mxu0 0.0
    %912 = vmatprep.subr.mxu0 0.0
    %913 = vmatpush1.msra.mxu0 0.0
    %914 = vmatprep.subr.mxu0 0.0
    %915 = vmatpush1.msra.mxu0 0.0
    %916 = vmatprep.subr.mxu0 0.0
    %917 = vmatpush1.msra.mxu0 0.0
    %918 = vmatprep.subr.mxu0 0.0
    %919 = vmatpush1.msra.mxu0 0.0
    %920 = vmatprep.subr.mxu0 0.0
    %921 = vmatpush1.msra.mxu0 0.0
    %922 = vmatprep.subr.mxu0 0.0
    %923 = vmatpush1.msra.mxu0 0.0
    %924 = vmatprep.subr.mxu0 0.0
    %925 = vmatpush1.msra.mxu0 0.0
    %926 = vmatprep.subr.mxu0 0.0
    %927 = vmatpush1.msra.mxu0 0.0
    %928 = vmatprep.subr.mxu0 0.0
    %929 = vmatpush1.msra.mxu0 0.0
    %930 = vmatprep.subr.mxu0 0.0
    %931 = vmatpush1.msra.mxu0 0.0
    %932 = vmatprep.subr.mxu0 0.0
    %933 = vmatpush1.msra.mxu0 0.0
    %934 = vmatprep.subr.mxu0 0.0
    %935 = vmatpush1.msra.mxu0 0.0
    %936 = vmatprep.subr.mxu0 0.0
    %937 = vmatpush1.msra.mxu0 0.0
    %938 = vmatprep.subr.mxu0 0.0
    %939 = vmatpush1.msra.mxu0 0.0
    %940 = vmatprep.subr.mxu0 0.0
    %941 = vmatpush1.msra.mxu0 0.0
    %942 = vmatprep.subr.mxu0 0.0
    %943 = vmatpush1.msra.mxu0 0.0
    %944 = vmatprep.subr.mxu0 0.0
    %945 = vmatpush1.msra.mxu0 0.0
    %946 = vmatprep.subr.mxu0 0.0
    %947 = vmatpush1.msra.mxu0 0.0
    %948 = vmatprep.subr.mxu0 0.0
    %949 = vmatpush1.msra.mxu0 0.0
    %950 = vmatprep.mubr.f32.mxu0 0.0
    %951 = vmatmul.mubr.f32.gmra.mrb[0].mxu0 %v881
    %v952 = vpop.f32.mrb[0].mxu0
    %v953 = vadd.f32 %v879, %v952
    %v954 = vpop.f32.mrb[0].mxu0
    %955 = vdwg.mxu0
    %s956 = scalar_lea.vmem %s5, 1
    %v957 = vld [vmem:[%s956] sm:$0x1]
    %959 = vset.pattern.permute.xlu0 0
    %960 = vperm.xlu0 %959, %v957
    %v961 = vpop.permute.xlu0 %960
    %v963 = vlaneseq
    %v964 = vshrl.u32 %v963, 7
    %v965 = vsub.s32 0, %v964
    %v966 = vrot.slane %v961, %v965
    %v968 = vsel %vm71, %v866, 0
    %970 = vmatprep.subr.mxu0 0.0
    %971 = vmatpush1.msra.mxu0 %v884
    %972 = vmatprep.subr.mxu0 0.0
    %973 = vmatpush1.msra.mxu0 0.0
    %974 = vmatprep.subr.mxu0 0.0
    %975 = vmatpush1.msra.mxu0 0.0
    %976 = vmatprep.subr.mxu0 0.0
    %977 = vmatpush1.msra.mxu0 0.0
    %978 = vmatprep.subr.mxu0 0.0
    %979 = vmatpush1.msra.mxu0 0.0
    %980 = vmatprep.subr.mxu0 0.0
    %981 = vmatpush1.msra.mxu0 0.0
    %982 = vmatprep.subr.mxu0 0.0
    %983 = vmatpush1.msra.mxu0 0.0
    %984 = vmatprep.subr.mxu0 0.0
    %985 = vmatpush1.msra.mxu0 0.0
    %986 = vmatprep.subr.mxu0 0.0
    %987 = vmatpush1.msra.mxu0 0.0
    %988 = vmatprep.subr.mxu0 0.0
    %989 = vmatpush1.msra.mxu0 0.0
    %990 = vmatprep.subr.mxu0 0.0
    %991 = vmatpush1.msra.mxu0 0.0
    %992 = vmatprep.subr.mxu0 0.0
    %993 = vmatpush1.msra.mxu0 0.0
    %994 = vmatprep.subr.mxu0 0.0
    %995 = vmatpush1.msra.mxu0 0.0
    %996 = vmatprep.subr.mxu0 0.0
    %997 = vmatpush1.msra.mxu0 0.0
    %998 = vmatprep.subr.mxu0 0.0
    %999 = vmatpush1.msra.mxu0 0.0
    %1000 = vmatprep.subr.mxu0 0.0
    %1001 = vmatpush1.msra.mxu0 0.0
    %1002 = vmatprep.subr.mxu0 0.0
    %1003 = vmatpush1.msra.mxu0 0.0
    %1004 = vmatprep.subr.mxu0 0.0
    %1005 = vmatpush1.msra.mxu0 0.0
    %1006 = vmatprep.subr.mxu0 0.0
    %1007 = vmatpush1.msra.mxu0 0.0
    %1008 = vmatprep.subr.mxu0 0.0
    %1009 = vmatpush1.msra.mxu0 0.0
    %1010 = vmatprep.subr.mxu0 0.0
    %1011 = vmatpush1.msra.mxu0 0.0
    %1012 = vmatprep.subr.mxu0 0.0
    %1013 = vmatpush1.msra.mxu0 0.0
    %1014 = vmatprep.subr.mxu0 0.0
    %1015 = vmatpush1.msra.mxu0 0.0
    %1016 = vmatprep.subr.mxu0 0.0
    %1017 = vmatpush1.msra.mxu0 0.0
    %1018 = vmatprep.subr.mxu0 0.0
    %1019 = vmatpush1.msra.mxu0 0.0
    %1020 = vmatprep.subr.mxu0 0.0
    %1021 = vmatpush1.msra.mxu0 0.0
    %1022 = vmatprep.subr.mxu0 0.0
    %1023 = vmatpush1.msra.mxu0 0.0
    %1024 = vmatprep.subr.mxu0 0.0
    %1025 = vmatpush1.msra.mxu0 0.0
    %1026 = vmatprep.subr.mxu0 0.0
    %1027 = vmatpush1.msra.mxu0 0.0
    %1028 = vmatprep.subr.mxu0 0.0
    %1029 = vmatpush1.msra.mxu0 0.0
    %1030 = vmatprep.subr.mxu0 0.0
    %1031 = vmatpush1.msra.mxu0 0.0
    %1032 = vmatprep.subr.mxu0 0.0
    %1033 = vmatpush1.msra.mxu0 0.0
    %1034 = vmatprep.mubr.f32.mxu0 0.0
    %1035 = vmatmul.mubr.f32.gmra.mrb[0].mxu0 %v968
    %v1036 = vpop.f32.mrb[0].mxu0
    %v1037 = vadd.f32 %v966, %v1036
    %v1038 = vpop.f32.mrb[0].mxu0
    %1039 = vdwg.mxu0
    %s1040 = scalar_lea.vmem %s6, 1
    %v1041 = vld [vmem:[%s1040] sm:$0x1]
    %1043 = vset.pattern.permute.xlu0 0
    %1044 = vperm.xlu0 %1043, %v1041
    %v1045 = vpop.permute.xlu0 %1044
    %v1047 = vlaneseq
    %v1048 = vshrl.u32 %v1047, 7
    %v1049 = vsub.s32 0, %v1048
    %v1050 = vrot.slane %v1045, %v1049
    %v1052 = vsel %vm71, %v868, 0
    %1054 = vmatprep.subr.mxu0 0.0
    %1055 = vmatpush1.msra.mxu0 %v884
    %1056 = vmatprep.subr.mxu0 0.0
    %1057 = vmatpush1.msra.mxu0 0.0
    %1058 = vmatprep.subr.mxu0 0.0
    %1059 = vmatpush1.msra.mxu0 0.0
    %1060 = vmatprep.subr.mxu0 0.0
    %1061 = vmatpush1.msra.mxu0 0.0
    %1062 = vmatprep.subr.mxu0 0.0
    %1063 = vmatpush1.msra.mxu0 0.0
    %1064 = vmatprep.subr.mxu0 0.0
    %1065 = vmatpush1.msra.mxu0 0.0
    %1066 = vmatprep.subr.mxu0 0.0
    %1067 = vmatpush1.msra.mxu0 0.0
    %1068 = vmatprep.subr.mxu0 0.0
    %1069 = vmatpush1.msra.mxu0 0.0
    %1070 = vmatprep.subr.mxu0 0.0
    %1071 = vmatpush1.msra.mxu0 0.0
    %1072 = vmatprep.subr.mxu0 0.0
    %1073 = vmatpush1.msra.mxu0 0.0
    %1074 = vmatprep.subr.mxu0 0.0
    %1075 = vmatpush1.msra.mxu0 0.0
    %1076 = vmatprep.subr.mxu0 0.0
    %1077 = vmatpush1.msra.mxu0 0.0
    %1078 = vmatprep.subr.mxu0 0.0
    %1079 = vmatpush1.msra.mxu0 0.0
    %1080 = vmatprep.subr.mxu0 0.0
    %1081 = vmatpush1.msra.mxu0 0.0
    %1082 = vmatprep.subr.mxu0 0.0
    %1083 = vmatpush1.msra.mxu0 0.0
    %1084 = vmatprep.subr.mxu0 0.0
    %1085 = vmatpush1.msra.mxu0 0.0
    %1086 = vmatprep.subr.mxu0 0.0
    %1087 = vmatpush1.msra.mxu0 0.0
    %1088 = vmatprep.subr.mxu0 0.0
    %1089 = vmatpush1.msra.mxu0 0.0
    %1090 = vmatprep.subr.mxu0 0.0
    %1091 = vmatpush1.msra.mxu0 0.0
    %1092 = vmatprep.subr.mxu0 0.0
    %1093 = vmatpush1.msra.mxu0 0.0
    %1094 = vmatprep.subr.mxu0 0.0
    %1095 = vmatpush1.msra.mxu0 0.0
    %1096 = vmatprep.subr.mxu0 0.0
    %1097 = vmatpush1.msra.mxu0 0.0
    %1098 = vmatprep.subr.mxu0 0.0
    %1099 = vmatpush1.msra.mxu0 0.0
    %1100 = vmatprep.subr.mxu0 0.0
    %1101 = vmatpush1.msra.mxu0 0.0
    %1102 = vmatprep.subr.mxu0 0.0
    %1103 = vmatpush1.msra.mxu0 0.0
    %1104 = vmatprep.subr.mxu0 0.0
    %1105 = vmatpush1.msra.mxu0 0.0
    %1106 = vmatprep.subr.mxu0 0.0
    %1107 = vmatpush1.msra.mxu0 0.0
    %1108 = vmatprep.subr.mxu0 0.0
    %1109 = vmatpush1.msra.mxu0 0.0
    %1110 = vmatprep.subr.mxu0 0.0
    %1111 = vmatpush1.msra.mxu0 0.0
    %1112 = vmatprep.subr.mxu0 0.0
    %1113 = vmatpush1.msra.mxu0 0.0
    %1114 = vmatprep.subr.mxu0 0.0
    %1115 = vmatpush1.msra.mxu0 0.0
    %1116 = vmatprep.subr.mxu0 0.0
    %1117 = vmatpush1.msra.mxu0 0.0
    %1118 = vmatprep.mubr.f32.mxu0 0.0
    %1119 = vmatmul.mubr.f32.gmra.mrb[0].mxu0 %v1052
    %v1120 = vpop.f32.mrb[0].mxu0
    %v1121 = vadd.f32 %v1050, %v1120
    %v1122 = vpop.f32.mrb[0].mxu0
    %1123 = vdwg.mxu0
    %1124 = vxpose.xlu0.b32.start [1/16] %v953, 128
    %1125 = vxpose.xlu0.b32.cont [2/16] 0.0, 128
    %1126 = vxpose.xlu0.b32.cont [3/16] 0.0, 128
    %1127 = vxpose.xlu0.b32.cont [4/16] 0.0, 128
    %1128 = vxpose.xlu0.b32.cont [5/16] 0.0, 128
    %1129 = vxpose.xlu0.b32.cont [6/16] 0.0, 128
    %1130 = vxpose.xlu0.b32.cont [7/16] 0.0, 128
    %1131 = vxpose.xlu0.b32.cont [8/16] 0.0, 128
    %1132 = vxpose.xlu0.b32.cont [9/16] 0.0, 128
    %1133 = vxpose.xlu0.b32.cont [10/16] 0.0, 128
    %1134 = vxpose.xlu0.b32.cont [11/16] 0.0, 128
    %1135 = vxpose.xlu0.b32.cont [12/16] 0.0, 128
    %1136 = vxpose.xlu0.b32.cont [13/16] 0.0, 128
    %1137 = vxpose.xlu0.b32.cont [14/16] 0.0, 128
    %1138 = vxpose.xlu0.b32.cont [15/16] 0.0, 128
    %1139 = vxpose.xlu0.b32.end [16/16] 0.0, 128
    %v1140 = vpop.trf.xlu0
    %v1141 = vpop.trf.xlu0
    %v1142 = vpop.trf.xlu0
    %v1143 = vpop.trf.xlu0
    %v1144 = vpop.trf.xlu0
    %v1145 = vpop.trf.xlu0
    %v1146 = vpop.trf.xlu0
    %v1147 = vpop.trf.xlu0
    %v1148 = vpop.trf.xlu0
    %v1149 = vpop.trf.xlu0
    %v1150 = vpop.trf.xlu0
    %v1151 = vpop.trf.xlu0
    %v1152 = vpop.trf.xlu0
    %v1153 = vpop.trf.xlu0
    %v1154 = vpop.trf.xlu0
    %v1155 = vpop.trf.xlu0
    %v1157 = vsel %vm71, %v1140, 0
    %v1160 = vsel %vm71, %v1141, 0
    %v1163 = vsel %vm75, %v1037, 0
    %1165 = vmatprep.subr.mxu0 0.0
    %1166 = vmatpush1.msra.mxu0 %v1163
    %1167 = vmatprep.subr.mxu0 0.0
    %1168 = vmatpush1.msra.mxu0 0.0
    %1169 = vmatprep.subr.mxu0 0.0
    %1170 = vmatpush1.msra.mxu0 0.0
    %1171 = vmatprep.subr.mxu0 0.0
    %1172 = vmatpush1.msra.mxu0 0.0
    %1173 = vmatprep.subr.mxu0 0.0
    %1174 = vmatpush1.msra.mxu0 0.0
    %1175 = vmatprep.subr.mxu0 0.0
    %1176 = vmatpush1.msra.mxu0 0.0
    %1177 = vmatprep.subr.mxu0 0.0
    %1178 = vmatpush1.msra.mxu0 0.0
    %1179 = vmatprep.subr.mxu0 0.0
    %1180 = vmatpush1.msra.mxu0 0.0
    %1181 = vmatprep.subr.mxu0 0.0
    %1182 = vmatpush1.msra.mxu0 0.0
    %1183 = vmatprep.subr.mxu0 0.0
    %1184 = vmatpush1.msra.mxu0 0.0
    %1185 = vmatprep.subr.mxu0 0.0
    %1186 = vmatpush1.msra.mxu0 0.0
    %1187 = vmatprep.subr.mxu0 0.0
    %1188 = vmatpush1.msra.mxu0 0.0
    %1189 = vmatprep.subr.mxu0 0.0
    %1190 = vmatpush1.msra.mxu0 0.0
    %1191 = vmatprep.subr.mxu0 0.0
    %1192 = vmatpush1.msra.mxu0 0.0
    %1193 = vmatprep.subr.mxu0 0.0
    %1194 = vmatpush1.msra.mxu0 0.0
    %1195 = vmatprep.subr.mxu0 0.0
    %1196 = vmatpush1.msra.mxu0 0.0
    %1197 = vmatprep.subr.mxu0 0.0
    %1198 = vmatpush1.msra.mxu0 0.0
    %1199 = vmatprep.subr.mxu0 0.0
    %1200 = vmatpush1.msra.mxu0 0.0
    %1201 = vmatprep.subr.mxu0 0.0
    %1202 = vmatpush1.msra.mxu0 0.0
    %1203 = vmatprep.subr.mxu0 0.0
    %1204 = vmatpush1.msra.mxu0 0.0
    %1205 = vmatprep.subr.mxu0 0.0
    %1206 = vmatpush1.msra.mxu0 0.0
    %1207 = vmatprep.subr.mxu0 0.0
    %1208 = vmatpush1.msra.mxu0 0.0
    %1209 = vmatprep.subr.mxu0 0.0
    %1210 = vmatpush1.msra.mxu0 0.0
    %1211 = vmatprep.subr.mxu0 0.0
    %1212 = vmatpush1.msra.mxu0 0.0
    %1213 = vmatprep.subr.mxu0 0.0
    %1214 = vmatpush1.msra.mxu0 0.0
    %1215 = vmatprep.subr.mxu0 0.0
    %1216 = vmatpush1.msra.mxu0 0.0
    %1217 = vmatprep.subr.mxu0 0.0
    %1218 = vmatpush1.msra.mxu0 0.0
    %1219 = vmatprep.subr.mxu0 0.0
    %1220 = vmatpush1.msra.mxu0 0.0
    %1221 = vmatprep.subr.mxu0 0.0
    %1222 = vmatpush1.msra.mxu0 0.0
    %1223 = vmatprep.subr.mxu0 0.0
    %1224 = vmatpush1.msra.mxu0 0.0
    %1225 = vmatprep.subr.mxu0 0.0
    %1226 = vmatpush1.msra.mxu0 0.0
    %1227 = vmatprep.subr.mxu0 0.0
    %1228 = vmatpush1.msra.mxu0 0.0
    %1229 = vmatprep.mubr.f32.mxu0 0.0
    %1230 = vmatmul.mubr.f32.gmra.mrb[0].mxu0 %v1157
    %v1231 = vpop.f32.mrb[0].mxu0
    %v1232 = vadd.f32 0.0, %v1231
    %v1233 = vpop.f32.mrb[0].mxu0
    %1234 = vmatprep.mubr.f32.mxu0 0.0
    %1235 = vmatmul.mubr.f32.gmra.mrb[0].mxu0 %v1160
    %v1236 = vpop.f32.mrb[0].mxu0
    %v1237 = vadd.f32 0.0, %v1236
    %v1238 = vpop.f32.mrb[0].mxu0
    %1239 = vdwg.mxu0
    %v1240 = vsel %vm431, %v1232, -inf
    %1241 = vmax.xlane.f32.xlu0 %v1240
    %v1242 = vpop.xlane.xlu0 %1241
    %v1243 = vsel %vm431, %v1237, -inf
    %1244 = vmax.xlane.f32.xlu0 %v1243
    %v1245 = vpop.xlane.xlu0 %1244
    %v1246 = vsub.f32 %v1232, %v1242
    %v1247 = vsub.f32 %v1237, %v1245
    %v1248 = vmul.f32 %v1246, 1.442695
    %v1249 = vpow.pop %v1248
    %v1250 = vmul.f32 %v1247, 1.442695
    %v1251 = vpow.pop %v1250
    %v1252 = vsel %vm431, %v1249, 0.0
    %1253 = vadd.xlane.f32.xlu0 %v1252
    %v1254 = vpop.xlane.xlu0 %1253
    %v1255 = vsel %vm431, %v1251, 0.0
    %1256 = vadd.xlane.f32.xlu0 %v1255
    %v1257 = vpop.xlane.xlu0 %1256
    %v1258 = vrcp.pop %v1254
    %v1259 = vrcp.pop %v1257
    %v1260 = vmul.f32 %v1249, %v1258
    %v1261 = vmul.f32 %v1251, %v1259
    %v1263 = vsel %vm431, %v1121, 0
    %v1266 = vsel %vm431, %v1260, 0
    %v1269 = vsel %vm431, %v1261, 0
    %1271 = vmatprep.subr.mxu0 0.0
    %1272 = vmatpush1.xpose.msra.mxu0 %v1266
    %1273 = vmatprep.subr.mxu0 0.0
    %1274 = vmatpush1.xpose.msra.mxu0 %v1269
    %1275 = vmatprep.subr.mxu0 0.0
    %1276 = vmatpush1.xpose.msra.mxu0 0.0
    %1277 = vmatprep.subr.mxu0 0.0
    %1278 = vmatpush1.xpose.msra.mxu0 0.0
    %1279 = vmatprep.subr.mxu0 0.0
    %1280 = vmatpush1.xpose.msra.mxu0 0.0
    %1281 = vmatprep.subr.mxu0 0.0
    %1282 = vmatpush1.xpose.msra.mxu0 0.0
    %1283 = vmatprep.subr.mxu0 0.0
    %1284 = vmatpush1.xpose.msra.mxu0 0.0
    %1285 = vmatprep.subr.mxu0 0.0
    %1286 = vmatpush1.xpose.msra.mxu0 0.0
    %1287 = vmatprep.subr.mxu0 0.0
    %1288 = vmatpush1.xpose.msra.mxu0 0.0
    %1289 = vmatprep.subr.mxu0 0.0
    %1290 = vmatpush1.xpose.msra.mxu0 0.0
    %1291 = vmatprep.subr.mxu0 0.0
    %1292 = vmatpush1.xpose.msra.mxu0 0.0
    %1293 = vmatprep.subr.mxu0 0.0
    %1294 = vmatpush1.xpose.msra.mxu0 0.0
    %1295 = vmatprep.subr.mxu0 0.0
    %1296 = vmatpush1.xpose.msra.mxu0 0.0
    %1297 = vmatprep.subr.mxu0 0.0
    %1298 = vmatpush1.xpose.msra.mxu0 0.0
    %1299 = vmatprep.subr.mxu0 0.0
    %1300 = vmatpush1.xpose.msra.mxu0 0.0
    %1301 = vmatprep.subr.mxu0 0.0
    %1302 = vmatpush1.xpose.msra.mxu0 0.0
    %1303 = vmatprep.subr.mxu0 0.0
    %1304 = vmatpush1.xpose.msra.mxu0 0.0
    %1305 = vmatprep.subr.mxu0 0.0
    %1306 = vmatpush1.xpose.msra.mxu0 0.0
    %1307 = vmatprep.subr.mxu0 0.0
    %1308 = vmatpush1.xpose.msra.mxu0 0.0
    %1309 = vmatprep.subr.mxu0 0.0
    %1310 = vmatpush1.xpose.msra.mxu0 0.0
    %1311 = vmatprep.subr.mxu0 0.0
    %1312 = vmatpush1.xpose.msra.mxu0 0.0
    %1313 = vmatprep.subr.mxu0 0.0
    %1314 = vmatpush1.xpose.msra.mxu0 0.0
    %1315 = vmatprep.subr.mxu0 0.0
    %1316 = vmatpush1.xpose.msra.mxu0 0.0
    %1317 = vmatprep.subr.mxu0 0.0
    %1318 = vmatpush1.xpose.msra.mxu0 0.0
    %1319 = vmatprep.subr.mxu0 0.0
    %1320 = vmatpush1.xpose.msra.mxu0 0.0
    %1321 = vmatprep.subr.mxu0 0.0
    %1322 = vmatpush1.xpose.msra.mxu0 0.0
    %1323 = vmatprep.subr.mxu0 0.0
    %1324 = vmatpush1.xpose.msra.mxu0 0.0
    %1325 = vmatprep.subr.mxu0 0.0
    %1326 = vmatpush1.xpose.msra.mxu0 0.0
    %1327 = vmatprep.subr.mxu0 0.0
    %1328 = vmatpush1.xpose.msra.mxu0 0.0
    %1329 = vmatprep.subr.mxu0 0.0
    %1330 = vmatpush1.xpose.msra.mxu0 0.0
    %1331 = vmatprep.subr.mxu0 0.0
    %1332 = vmatpush1.xpose.msra.mxu0 0.0
    %1333 = vmatprep.subr.mxu0 0.0
    %1334 = vmatpush1.xpose.msra.mxu0 0.0
    %1335 = vmatprep.mubr.f32.mxu0 0.0
    %1336 = vmatmul.mubr.f32.gmra.mrb[0].mxu0 %v1263
    %v1337 = vpop.f32.mrb[0].mxu0
    %v1338 = vadd.f32 0.0, %v1337
    %v1339 = vpop.f32.mrb[0].mxu0
    %1340 = vdwg.mxu0
    %s1341 = scalar_lea.vmem %s7, 1
    %v1342 = vld [vmem:[%s1341] sm:$0x1]
    %s1343 = scalar_lea.vmem %s8, 1
    %v1344 = vld [vmem:[%s1343] sm:$0x1]
    %1346 = vset.pattern.permute.xlu0 0
    %1347 = vperm.xlu0 %1346, %v1344
    %v1348 = vpop.permute.xlu0 %1347
    %v1350 = vlaneseq
    %v1351 = vshrl.u32 %v1350, 7
    %v1352 = vsub.s32 0, %v1351
    %v1353 = vrot.slane %v1348, %v1352
    %v1355 = vsel %vm71, %v1342, 0
    %v1358 = vsel %vm75, %v1338, 0
    %1360 = vmatprep.subr.mxu0 0.0
    %1361 = vmatpush1.msra.mxu0 %v1358
    %1362 = vmatprep.subr.mxu0 0.0
    %1363 = vmatpush1.msra.mxu0 0.0
    %1364 = vmatprep.subr.mxu0 0.0
    %1365 = vmatpush1.msra.mxu0 0.0
    %1366 = vmatprep.subr.mxu0 0.0
    %1367 = vmatpush1.msra.mxu0 0.0
    %1368 = vmatprep.subr.mxu0 0.0
    %1369 = vmatpush1.msra.mxu0 0.0
    %1370 = vmatprep.subr.mxu0 0.0
    %1371 = vmatpush1.msra.mxu0 0.0
    %1372 = vmatprep.subr.mxu0 0.0
    %1373 = vmatpush1.msra.mxu0 0.0
    %1374 = vmatprep.subr.mxu0 0.0
    %1375 = vmatpush1.msra.mxu0 0.0
    %1376 = vmatprep.subr.mxu0 0.0
    %1377 = vmatpush1.msra.mxu0 0.0
    %1378 = vmatprep.subr.mxu0 0.0
    %1379 = vmatpush1.msra.mxu0 0.0
    %1380 = vmatprep.subr.mxu0 0.0
    %1381 = vmatpush1.msra.mxu0 0.0
    %1382 = vmatprep.subr.mxu0 0.0
    %1383 = vmatpush1.msra.mxu0 0.0
    %1384 = vmatprep.subr.mxu0 0.0
    %1385 = vmatpush1.msra.mxu0 0.0
    %1386 = vmatprep.subr.mxu0 0.0
    %1387 = vmatpush1.msra.mxu0 0.0
    %1388 = vmatprep.subr.mxu0 0.0
    %1389 = vmatpush1.msra.mxu0 0.0
    %1390 = vmatprep.subr.mxu0 0.0
    %1391 = vmatpush1.msra.mxu0 0.0
    %1392 = vmatprep.subr.mxu0 0.0
    %1393 = vmatpush1.msra.mxu0 0.0
    %1394 = vmatprep.subr.mxu0 0.0
    %1395 = vmatpush1.msra.mxu0 0.0
    %1396 = vmatprep.subr.mxu0 0.0
    %1397 = vmatpush1.msra.mxu0 0.0
    %1398 = vmatprep.subr.mxu0 0.0
    %1399 = vmatpush1.msra.mxu0 0.0
    %1400 = vmatprep.subr.mxu0 0.0
    %1401 = vmatpush1.msra.mxu0 0.0
    %1402 = vmatprep.subr.mxu0 0.0
    %1403 = vmatpush1.msra.mxu0 0.0
    %1404 = vmatprep.subr.mxu0 0.0
    %1405 = vmatpush1.msra.mxu0 0.0
    %1406 = vmatprep.subr.mxu0 0.0
    %1407 = vmatpush1.msra.mxu0 0.0
    %1408 = vmatprep.subr.mxu0 0.0
    %1409 = vmatpush1.msra.mxu0 0.0
    %1410 = vmatprep.subr.mxu0 0.0
    %1411 = vmatpush1.msra.mxu0 0.0
    %1412 = vmatprep.subr.mxu0 0.0
    %1413 = vmatpush1.msra.mxu0 0.0
    %1414 = vmatprep.subr.mxu0 0.0
    %1415 = vmatpush1.msra.mxu0 0.0
    %1416 = vmatprep.subr.mxu0 0.0
    %1417 = vmatpush1.msra.mxu0 0.0
    %1418 = vmatprep.subr.mxu0 0.0
    %1419 = vmatpush1.msra.mxu0 0.0
    %1420 = vmatprep.subr.mxu0 0.0
    %1421 = vmatpush1.msra.mxu0 0.0
    %1422 = vmatprep.subr.mxu0 0.0
    %1423 = vmatpush1.msra.mxu0 0.0
    %1424 = vmatprep.mubr.f32.mxu0 0.0
    %1425 = vmatmul.mubr.f32.gmra.mrb[0].mxu0 %v1355
    %v1426 = vpop.f32.mrb[0].mxu0
    %v1427 = vadd.f32 %v1353, %v1426
    %v1428 = vpop.f32.mrb[0].mxu0
    %1429 = vdwg.mxu0
    %v1430 = vadd.f32 %v862, %v1427
    %s1431 = scalar_lea.vmem %s9, 1
    %v1432 = vld [vmem:[%s1431] sm:$0x1]
    %s1433 = scalar_lea.vmem %s10, 1
    %v1434 = vld [vmem:[%s1433] sm:$0x1]
    %v1435 = vadd.f32 %v1430, 0.0
    %v1436 = vsub.f32 %v1430, %v1435
    %v1437 = vmul.f32 %v1436, %v1436
    %v1438 = vadd.f32 %v1437, 0.0
    %v1439 = vadd.f32 %v1438, 1e-05
    %v1440 = vrsqrt.pop %v1439
    %v1441 = vmul.f32 %v1436, %v1440
    %1443 = vset.pattern.permute.xlu0 0
    %1444 = vperm.xlu0 %1443, %v1432
    %v1445 = vpop.permute.xlu0 %1444
    %v1447 = vlaneseq
    %v1448 = vshrl.u32 %v1447, 7
    %v1449 = vsub.s32 0, %v1448
    %v1450 = vrot.slane %v1445, %v1449
    %v1451 = vmul.f32 %v1441, %v1450
    %1453 = vset.pattern.permute.xlu0 0
    %1454 = vperm.xlu0 %1453, %v1434
    %v1455 = vpop.permute.xlu0 %1454
    %v1457 = vlaneseq
    %v1458 = vshrl.u32 %v1457, 7
    %v1459 = vsub.s32 0, %v1458
    %v1460 = vrot.slane %v1455, %v1459
    %v1461 = vadd.f32 %v1451, %v1460
    %s1462 = scalar_lea.vmem %s11, 4
    %v1463 = vld [vmem:[%s1462] sm:$0xf]
    %s1464 = scalar_lea.vmem %s12, 4
    %v1465 = vld [vmem:[%s1464] sm:$0xf]
    %1467 = vset.pattern.permute.xlu0 0
    %1468 = vperm.xlu0 %1467, %v1465
    %v1469 = vpop.permute.xlu0 %1468
    %v1472 = vsel %vm71, %v1463, 0
    %v1475 = vsel %vm75, %v1461, 0
    %1477 = vmatprep.subr.mxu0 0.0
    %1478 = vmatpush1.msra.mxu0 %v1475
    %1479 = vmatprep.subr.mxu0 0.0
    %1480 = vmatpush1.msra.mxu0 0.0
    %1481 = vmatprep.subr.mxu0 0.0
    %1482 = vmatpush1.msra.mxu0 0.0
    %1483 = vmatprep.subr.mxu0 0.0
    %1484 = vmatpush1.msra.mxu0 0.0
    %1485 = vmatprep.subr.mxu0 0.0
    %1486 = vmatpush1.msra.mxu0 0.0
    %1487 = vmatprep.subr.mxu0 0.0
    %1488 = vmatpush1.msra.mxu0 0.0
    %1489 = vmatprep.subr.mxu0 0.0
    %1490 = vmatpush1.msra.mxu0 0.0
    %1491 = vmatprep.subr.mxu0 0.0
    %1492 = vmatpush1.msra.mxu0 0.0
    %1493 = vmatprep.subr.mxu0 0.0
    %1494 = vmatpush1.msra.mxu0 0.0
    %1495 = vmatprep.subr.mxu0 0.0
    %1496 = vmatpush1.msra.mxu0 0.0
    %1497 = vmatprep.subr.mxu0 0.0
    %1498 = vmatpush1.msra.mxu0 0.0
    %1499 = vmatprep.subr.mxu0 0.0
    %1500 = vmatpush1.msra.mxu0 0.0
    %1501 = vmatprep.subr.mxu0 0.0
    %1502 = vmatpush1.msra.mxu0 0.0
    %1503 = vmatprep.subr.mxu0 0.0
    %1504 = vmatpush1.msra.mxu0 0.0
    %1505 = vmatprep.subr.mxu0 0.0
    %1506 = vmatpush1.msra.mxu0 0.0
    %1507 = vmatprep.subr.mxu0 0.0
    %1508 = vmatpush1.msra.mxu0 0.0
    %1509 = vmatprep.subr.mxu0 0.0
    %1510 = vmatpush1.msra.mxu0 0.0
    %1511 = vmatprep.subr.mxu0 0.0
    %1512 = vmatpush1.msra.mxu0 0.0
    %1513 = vmatprep.subr.mxu0 0.0
    %1514 = vmatpush1.msra.mxu0 0.0
    %1515 = vmatprep.subr.mxu0 0.0
    %1516 = vmatpush1.msra.mxu0 0.0
    %1517 = vmatprep.subr.mxu0 0.0
    %1518 = vmatpush1.msra.mxu0 0.0
    %1519 = vmatprep.subr.mxu0 0.0
    %1520 = vmatpush1.msra.mxu0 0.0
    %1521 = vmatprep.subr.mxu0 0.0
    %1522 = vmatpush1.msra.mxu0 0.0
    %1523 = vmatprep.subr.mxu0 0.0
    %1524 = vmatpush1.msra.mxu0 0.0
    %1525 = vmatprep.subr.mxu0 0.0
    %1526 = vmatpush1.msra.mxu0 0.0
    %1527 = vmatprep.subr.mxu0 0.0
    %1528 = vmatpush1.msra.mxu0 0.0
    %1529 = vmatprep.subr.mxu0 0.0
    %1530 = vmatpush1.msra.mxu0 0.0
    %1531 = vmatprep.subr.mxu0 0.0
    %1532 = vmatpush1.msra.mxu0 0.0
    %1533 = vmatprep.subr.mxu0 0.0
    %1534 = vmatpush1.msra.mxu0 0.0
    %1535 = vmatprep.subr.mxu0 0.0
    %1536 = vmatpush1.msra.mxu0 0.0
    %1537 = vmatprep.subr.mxu0 0.0
    %1538 = vmatpush1.msra.mxu0 0.0
    %1539 = vmatprep.subr.mxu0 0.0
    %1540 = vmatpush1.msra.mxu0 0.0
    %1541 = vmatprep.mubr.f32.mxu0 0.0
    %1542 = vmatmul.mubr.f32.gmra.mrb[0].mxu0 %v1472
    %v1543 = vpop.f32.mrb[0].mxu0
    %v1544 = vadd.f32 %v1469, %v1543
    %v1545 = vpop.f32.mrb[0].mxu0
    %1546 = vdwg.mxu0
    %v1547 = vmul.f32 %v1544, 0.5
    %v1548 = vmul.f32 %v1544, 0.70710677
    %v1549 = verf.f32.pop %v1548
    %v1550 = vadd.f32 %v1549, 1.0
    %v1551 = vmul.f32 %v1547, %v1550
    %s1552 = scalar_lea.vmem %s13, 1
    %v1553 = vld [vmem:[%s1552] sm:$0x1]
    %s1554 = scalar_lea.vmem %s14, 1
    %v1555 = vld [vmem:[%s1554] sm:$0x1]
    %1557 = vset.pattern.permute.xlu0 0
    %1558 = vperm.xlu0 %1557, %v1555
    %v1559 = vpop.permute.xlu0 %1558
    %v1561 = vlaneseq
    %v1562 = vshrl.u32 %v1561, 7
    %v1563 = vsub.s32 0, %v1562
    %v1564 = vrot.slane %v1559, %v1563
    %v1566 = vsel %vm749, %v1553, 0
    %v1569 = vsel %vm753, %v1551, 0
    %1571 = vmatprep.subr.mxu0 0.0
    %1572 = vmatpush1.msra.mxu0 %v1569
    %1573 = vmatprep.subr.mxu0 0.0
    %1574 = vmatpush1.msra.mxu0 0.0
    %1575 = vmatprep.subr.mxu0 0.0
    %1576 = vmatpush1.msra.mxu0 0.0
    %1577 = vmatprep.subr.mxu0 0.0
    %1578 = vmatpush1.msra.mxu0 0.0
    %1579 = vmatprep.subr.mxu0 0.0
    %1580 = vmatpush1.msra.mxu0 0.0
    %1581 = vmatprep.subr.mxu0 0.0
    %1582 = vmatpush1.msra.mxu0 0.0
    %1583 = vmatprep.subr.mxu0 0.0
    %1584 = vmatpush1.msra.mxu0 0.0
    %1585 = vmatprep.subr.mxu0 0.0
    %1586 = vmatpush1.msra.mxu0 0.0
    %1587 = vmatprep.subr.mxu0 0.0
    %1588 = vmatpush1.msra.mxu0 0.0
    %1589 = vmatprep.subr.mxu0 0.0
    %1590 = vmatpush1.msra.mxu0 0.0
    %1591 = vmatprep.subr.mxu0 0.0
    %1592 = vmatpush1.msra.mxu0 0.0
    %1593 = vmatprep.subr.mxu0 0.0
    %1594 = vmatpush1.msra.mxu0 0.0
    %1595 = vmatprep.subr.mxu0 0.0
    %1596 = vmatpush1.msra.mxu0 0.0
    %1597 = vmatprep.subr.mxu0 0.0
    %1598 = vmatpush1.msra.mxu0 0.0
    %1599 = vmatprep.subr.mxu0 0.0
    %1600 = vmatpush1.msra.mxu0 0.0
    %1601 = vmatprep.subr.mxu0 0.0
    %1602 = vmatpush1.msra.mxu0 0.0
    %1603 = vmatprep.subr.mxu0 0.0
    %1604 = vmatpush1.msra.mxu0 0.0
    %1605 = vmatprep.subr.mxu0 0.0
    %1606 = vmatpush1.msra.mxu0 0.0
    %1607 = vmatprep.subr.mxu0 0.0
    %1608 = vmatpush1.msra.mxu0 0.0
    %1609 = vmatprep.subr.mxu0 0.0
    %1610 = vmatpush1.msra.mxu0 0.0
    %1611 = vmatprep.subr.mxu0 0.0
    %1612 = vmatpush1.msra.mxu0 0.0
    %1613 = vmatprep.subr.mxu0 0.0
    %1614 = vmatpush1.msra.mxu0 0.0
    %1615 = vmatprep.subr.mxu0 0.0
    %1616 = vmatpush1.msra.mxu0 0.0
    %1617 = vmatprep.subr.mxu0 0.0
    %1618 = vmatpush1.msra.mxu0 0.0
    %1619 = vmatprep.subr.mxu0 0.0
    %1620 = vmatpush1.msra.mxu0 0.0
    %1621 = vmatprep.subr.mxu0 0.0
    %1622 = vmatpush1.msra.mxu0 0.0
    %1623 = vmatprep.subr.mxu0 0.0
    %1624 = vmatpush1.msra.mxu0 0.0
    %1625 = vmatprep.subr.mxu0 0.0
    %1626 = vmatpush1.msra.mxu0 0.0
    %1627 = vmatprep.subr.mxu0 0.0
    %1628 = vmatpush1.msra.mxu0 0.0
    %1629 = vmatprep.subr.mxu0 0.0
    %1630 = vmatpush1.msra.mxu0 0.0
    %1631 = vmatprep.subr.mxu0 0.0
    %1632 = vmatpush1.msra.mxu0 0.0
    %1633 = vmatprep.subr.mxu0 0.0
    %1634 = vmatpush1.msra.mxu0 0.0
    %1635 = vmatprep.mubr.f32.mxu0 0.0
    %1636 = vmatmul.mubr.f32.gmra.mrb[0].mxu0 %v1566
    %v1637 = vpop.f32.mrb[0].mxu0
    %v1638 = vadd.f32 %v1564, %v1637
    %v1639 = vpop.f32.mrb[0].mxu0
    %1640 = vdwg.mxu0
    %v1641 = vadd.f32 %v1461, %v1638
    %s1642 = scalar_lea.vmem %s15, 1
    %v1643 = vld [vmem:[%s1642] sm:$0x1]
    %s1644 = scalar_lea.vmem %s16, 1
    %v1645 = vld [vmem:[%s1644] sm:$0x1]
    %v1646 = vadd.f32 %v1641, 0.0
    %v1647 = vsub.f32 %v1641, %v1646
    %v1648 = vmul.f32 %v1647, %v1647
    %v1649 = vadd.f32 %v1648, 0.0
    %v1650 = vadd.f32 %v1649, 1e-05
    %v1651 = vrsqrt.pop %v1650
    %v1652 = vmul.f32 %v1647, %v1651
    %1654 = vset.pattern.permute.xlu0 0
    %1655 = vperm.xlu0 %1654, %v1643
    %v1656 = vpop.permute.xlu0 %1655
    %v1658 = vlaneseq
    %v1659 = vshrl.u32 %v1658, 7
    %v1660 = vsub.s32 0, %v1659
    %v1661 = vrot.slane %v1656, %v1660
    %v1662 = vmul.f32 %v1652, %v1661
    %1664 = vset.pattern.permute.xlu0 0
    %1665 = vperm.xlu0 %1664, %v1645
    %v1666 = vpop.permute.xlu0 %1665
    %v1668 = vlaneseq
    %v1669 = vshrl.u32 %v1668, 7
    %v1670 = vsub.s32 0, %v1669
    %v1671 = vrot.slane %v1666, %v1670
    %v1672 = vadd.f32 %v1662, %v1671
    %vm1673 = vcmp.gt.f32.partialorder %v1672, 0.0
    %v1674 = vmin.f32 %v1672, 0.0
    %v1675 = vmul.f32 %v1674, 1.442695
    %v1676 = vpow.pop %v1675
    %v1677 = vsub.f32 %v1676, 1.0
    %v1678 = vsel %vm1673, %v1672, %v1677
    %v1679 = vadd.f32 %v1678, %v57
    %vm1680 = vcmask 122880
    %1681 = vst.msk [vmem:[#allocation2] sm:$0x1] %vm1680, %v1679
    %s1682 = scalar_lea.vmem %s0, 1
    %v1683 = vld [vmem:[%s1682] sm:$0x1]
    %v1684 = vld [vmem:[%s1] sm:$0x1]
    %v1685 = vld [vmem:[%s2] sm:$0x1]
    %v1686 = vld [vmem:[%s3] sm:$0x1]
    %v1687 = vld [vmem:[%s4] sm:$0x1]
    %1689 = vset.pattern.permute.xlu0 0
    %1690 = vperm.xlu0 %1689, %v1687
    %v1691 = vpop.permute.xlu0 %1690
    %v1693 = vlaneseq
    %v1694 = vshrl.u32 %v1693, 7
    %v1695 = vsub.s32 0, %v1694
    %v1696 = vrot.slane %v1691, %v1695
    %v1698 = vsel %vm71, %v1684, 0
    %v1701 = vsel %vm75, %v1683, 0
    %1703 = vmatprep.subr.mxu0 0.0
    %1704 = vmatpush1.msra.mxu0 %v1701
    %1705 = vmatprep.subr.mxu0 0.0
    %1706 = vmatpush1.msra.mxu0 0.0
    %1707 = vmatprep.subr.mxu0 0.0
    %1708 = vmatpush1.msra.mxu0 0.0
    %1709 = vmatprep.subr.mxu0 0.0
    %1710 = vmatpush1.msra.mxu0 0.0
    %1711 = vmatprep.subr.mxu0 0.0
    %1712 = vmatpush1.msra.mxu0 0.0
    %1713 = vmatprep.subr.mxu0 0.0
    %1714 = vmatpush1.msra.mxu0 0.0
    %1715 = vmatprep.subr.mxu0 0.0
    %1716 = vmatpush1.msra.mxu0 0.0
    %1717 = vmatprep.subr.mxu0 0.0
    %1718 = vmatpush1.msra.mxu0 0.0
    %1719 = vmatprep.subr.mxu0 0.0
    %1720 = vmatpush1.msra.mxu0 0.0
    %1721 = vmatprep.subr.mxu0 0.0
    %1722 = vmatpush1.msra.mxu0 0.0
    %1723 = vmatprep.subr.mxu0 0.0
    %1724 = vmatpush1.msra.mxu0 0.0
    %1725 = vmatprep.subr.mxu0 0.0
    %1726 = vmatpush1.msra.mxu0 0.0
    %1727 = vmatprep.subr.mxu0 0.0
    %1728 = vmatpush1.msra.mxu0 0.0
    %1729 = vmatprep.subr.mxu0 0.0
    %1730 = vmatpush1.msra.mxu0 0.0
    %1731 = vmatprep.subr.mxu0 0.0
    %1732 = vmatpush1.msra.mxu0 0.0
    %1733 = vmatprep.subr.mxu0 0.0
    %1734 = vmatpush1.msra.mxu0 0.0
    %1735 = vmatprep.subr.mxu0 0.0
    %1736 = vmatpush1.msra.mxu0 0.0
    %1737 = vmatprep.subr.mxu0 0.0
    %1738 = vmatpush1.msra.mxu0 0.0
    %1739 = vmatprep.subr.mxu0 0.0
    %1740 = vmatpush1.msra.mxu0 0.0
    %1741 = vmatprep.subr.mxu0 0.0
    %1742 = vmatpush1.msra.mxu0 0.0
    %1743 = vmatprep.subr.mxu0 0.0
    %1744 = vmatpush1.msra.mxu0 0.0
    %1745 = vmatprep.subr.mxu0 0.0
    %1746 = vmatpush1.msra.mxu0 0.0
    %1747 = vmatprep.subr.mxu0 0.0
    %1748 = vmatpush1.msra.mxu0 0.0
    %1749 = vmatprep.subr.mxu0 0.0
    %1750 = vmatpush1.msra.mxu0 0.0
    %1751 = vmatprep.subr.mxu0 0.0
    %1752 = vmatpush1.msra.mxu0 0.0
    %1753 = vmatprep.subr.mxu0 0.0
    %1754 = vmatpush1.msra.mxu0 0.0
    %1755 = vmatprep.subr.mxu0 0.0
    %1756 = vmatpush1.msra.mxu0 0.0
    %1757 = vmatprep.subr.mxu0 0.0
    %1758 = vmatpush1.msra.mxu0 0.0
    %1759 = vmatprep.subr.mxu0 0.0
    %1760 = vmatpush1.msra.mxu0 0.0
    %1761 = vmatprep.subr.mxu0 0.0
    %1762 = vmatpush1.msra.mxu0 0.0
    %1763 = vmatprep.subr.mxu0 0.0
    %1764 = vmatpush1.msra.mxu0 0.0
    %1765 = vmatprep.subr.mxu0 0.0
    %1766 = vmatpush1.msra.mxu0 0.0
    %1767 = vmatprep.mubr.f32.mxu0 0.0
    %1768 = vmatmul.mubr.f32.gmra.mrb[0].mxu0 %v1698
    %v1769 = vpop.f32.mrb[0].mxu0
    %v1770 = vadd.f32 %v1696, %v1769
    %v1771 = vpop.f32.mrb[0].mxu0
    %1772 = vdwg.mxu0
    %v1773 = vld [vmem:[%s5] sm:$0x1]
    %1775 = vset.pattern.permute.xlu0 0
    %1776 = vperm.xlu0 %1775, %v1773
    %v1777 = vpop.permute.xlu0 %1776
    %v1779 = vlaneseq
    %v1780 = vshrl.u32 %v1779, 7
    %v1781 = vsub.s32 0, %v1780
    %v1782 = vrot.slane %v1777, %v1781
    %v1784 = vsel %vm71, %v1685, 0
    %1786 = vmatprep.subr.mxu0 0.0
    %1787 = vmatpush1.msra.mxu0 %v1701
    %1788 = vmatprep.subr.mxu0 0.0
    %1789 = vmatpush1.msra.mxu0 0.0
    %1790 = vmatprep.subr.mxu0 0.0
    %1791 = vmatpush1.msra.mxu0 0.0
    %1792 = vmatprep.subr.mxu0 0.0
    %1793 = vmatpush1.msra.mxu0 0.0
    %1794 = vmatprep.subr.mxu0 0.0
    %1795 = vmatpush1.msra.mxu0 0.0
    %1796 = vmatprep.subr.mxu0 0.0
    %1797 = vmatpush1.msra.mxu0 0.0
    %1798 = vmatprep.subr.mxu0 0.0
    %1799 = vmatpush1.msra.mxu0 0.0
    %1800 = vmatprep.subr.mxu0 0.0
    %1801 = vmatpush1.msra.mxu0 0.0
    %1802 = vmatprep.subr.mxu0 0.0
    %1803 = vmatpush1.msra.mxu0 0.0
    %1804 = vmatprep.subr.mxu0 0.0
    %1805 = vmatpush1.msra.mxu0 0.0
    %1806 = vmatprep.subr.mxu0 0.0
    %1807 = vmatpush1.msra.mxu0 0.0
    %1808 = vmatprep.subr.mxu0 0.0
    %1809 = vmatpush1.msra.mxu0 0.0
    %1810 = vmatprep.subr.mxu0 0.0
    %1811 = vmatpush1.msra.mxu0 0.0
    %1812 = vmatprep.subr.mxu0 0.0
    %1813 = vmatpush1.msra.mxu0 0.0
    %1814 = vmatprep.subr.mxu0 0.0
    %1815 = vmatpush1.msra.mxu0 0.0
    %1816 = vmatprep.subr.mxu0 0.0
    %1817 = vmatpush1.msra.mxu0 0.0
    %1818 = vmatprep.subr.mxu0 0.0
    %1819 = vmatpush1.msra.mxu0 0.0
    %1820 = vmatprep.subr.mxu0 0.0
    %1821 = vmatpush1.msra.mxu0 0.0
    %1822 = vmatprep.subr.mxu0 0.0
    %1823 = vmatpush1.msra.mxu0 0.0
    %1824 = vmatprep.subr.mxu0 0.0
    %1825 = vmatpush1.msra.mxu0 0.0
    %1826 = vmatprep.subr.mxu0 0.0
    %1827 = vmatpush1.msra.mxu0 0.0
    %1828 = vmatprep.subr.mxu0 0.0
    %1829 = vmatpush1.msra.mxu0 0.0
    %1830 = vmatprep.subr.mxu0 0.0
    %1831 = vmatpush1.msra.mxu0 0.0
    %1832 = vmatprep.subr.mxu0 0.0
    %1833 = vmatpush1.msra.mxu0 0.0
    %1834 = vmatprep.subr.mxu0 0.0
    %1835 = vmatpush1.msra.mxu0 0.0
    %1836 = vmatprep.subr.mxu0 0.0
    %1837 = vmatpush1.msra.mxu0 0.0
    %1838 = vmatprep.subr.mxu0 0.0
    %1839 = vmatpush1.msra.mxu0 0.0
    %1840 = vmatprep.subr.mxu0 0.0
    %1841 = vmatpush1.msra.mxu0 0.0
    %1842 = vmatprep.subr.mxu0 0.0
    %1843 = vmatpush1.msra.mxu0 0.0
    %1844 = vmatprep.subr.mxu0 0.0
    %1845 = vmatpush1.msra.mxu0 0.0
    %1846 = vmatprep.subr.mxu0 0.0
    %1847 = vmatpush1.msra.mxu0 0.0
    %1848 = vmatprep.subr.mxu0 0.0
    %1849 = vmatpush1.msra.mxu0 0.0
    %1850 = vmatprep.mubr.f32.mxu0 0.0
    %1851 = vmatmul.mubr.f32.gmra.mrb[0].mxu0 %v1784
    %v1852 = vpop.f32.mrb[0].mxu0
    %v1853 = vadd.f32 %v1782, %v1852
    %v1854 = vpop.f32.mrb[0].mxu0
    %1855 = vdwg.mxu0
    %v1856 = vld [vmem:[%s6] sm:$0x1]
    %1858 = vset.pattern.permute.xlu0 0
    %1859 = vperm.xlu0 %1858, %v1856
    %v1860 = vpop.permute.xlu0 %1859
    %v1862 = vlaneseq
    %v1863 = vshrl.u32 %v1862, 7
    %v1864 = vsub.s32 0, %v1863
    %v1865 = vrot.slane %v1860, %v1864
    %v1867 = vsel %vm71, %v1686, 0
    %1869 = vmatprep.subr.mxu0 0.0
    %1870 = vmatpush1.msra.mxu0 %v1701
    %1871 = vmatprep.subr.mxu0 0.0
    %1872 = vmatpush1.msra.mxu0 0.0
    %1873 = vmatprep.subr.mxu0 0.0
    %1874 = vmatpush1.msra.mxu0 0.0
    %1875 = vmatprep.subr.mxu0 0.0
    %1876 = vmatpush1.msra.mxu0 0.0
    %1877 = vmatprep.subr.mxu0 0.0
    %1878 = vmatpush1.msra.mxu0 0.0
    %1879 = vmatprep.subr.mxu0 0.0
    %1880 = vmatpush1.msra.mxu0 0.0
    %1881 = vmatprep.subr.mxu0 0.0
    %1882 = vmatpush1.msra.mxu0 0.0
    %1883 = vmatprep.subr.mxu0 0.0
    %1884 = vmatpush1.msra.mxu0 0.0
    %1885 = vmatprep.subr.mxu0 0.0
    %1886 = vmatpush1.msra.mxu0 0.0
    %1887 = vmatprep.subr.mxu0 0.0
    %1888 = vmatpush1.msra.mxu0 0.0
    %1889 = vmatprep.subr.mxu0 0.0
    %1890 = vmatpush1.msra.mxu0 0.0
    %1891 = vmatprep.subr.mxu0 0.0
    %1892 = vmatpush1.msra.mxu0 0.0
    %1893 = vmatprep.subr.mxu0 0.0
    %1894 = vmatpush1.msra.mxu0 0.0
    %1895 = vmatprep.subr.mxu0 0.0
    %1896 = vmatpush1.msra.mxu0 0.0
    %1897 = vmatprep.subr.mxu0 0.0
    %1898 = vmatpush1.msra.mxu0 0.0
    %1899 = vmatprep.subr.mxu0 0.0
    %1900 = vmatpush1.msra.mxu0 0.0
    %1901 = vmatprep.subr.mxu0 0.0
    %1902 = vmatpush1.msra.mxu0 0.0
    %1903 = vmatprep.subr.mxu0 0.0
    %1904 = vmatpush1.msra.mxu0 0.0
    %1905 = vmatprep.subr.mxu0 0.0
    %1906 = vmatpush1.msra.mxu0 0.0
    %1907 = vmatprep.subr.mxu0 0.0
    %1908 = vmatpush1.msra.mxu0 0.0
    %1909 = vmatprep.subr.mxu0 0.0
    %1910 = vmatpush1.msra.mxu0 0.0
    %1911 = vmatprep.subr.mxu0 0.0
    %1912 = vmatpush1.msra.mxu0 0.0
    %1913 = vmatprep.subr.mxu0 0.0
    %1914 = vmatpush1.msra.mxu0 0.0
    %1915 = vmatprep.subr.mxu0 0.0
    %1916 = vmatpush1.msra.mxu0 0.0
    %1917 = vmatprep.subr.mxu0 0.0
    %1918 = vmatpush1.msra.mxu0 0.0
    %1919 = vmatprep.subr.mxu0 0.0
    %1920 = vmatpush1.msra.mxu0 0.0
    %1921 = vmatprep.subr.mxu0 0.0
    %1922 = vmatpush1.msra.mxu0 0.0
    %1923 = vmatprep.subr.mxu0 0.0
    %1924 = vmatpush1.msra.mxu0 0.0
    %1925 = vmatprep.subr.mxu0 0.0
    %1926 = vmatpush1.msra.mxu0 0.0
    %1927 = vmatprep.subr.mxu0 0.0
    %1928 = vmatpush1.msra.mxu0 0.0
    %1929 = vmatprep.subr.mxu0 0.0
    %1930 = vmatpush1.msra.mxu0 0.0
    %1931 = vmatprep.subr.mxu0 0.0
    %1932 = vmatpush1.msra.mxu0 0.0
    %1933 = vmatprep.mubr.f32.mxu0 0.0
    %1934 = vmatmul.mubr.f32.gmra.mrb[0].mxu0 %v1867
    %v1935 = vpop.f32.mrb[0].mxu0
    %v1936 = vadd.f32 %v1865, %v1935
    %v1937 = vpop.f32.mrb[0].mxu0
    %1938 = vdwg.mxu0
    %1939 = vxpose.xlu0.b32.start [1/16] %v1770, 128
    %1940 = vxpose.xlu0.b32.cont [2/16] 0.0, 128
    %1941 = vxpose.xlu0.b32.cont [3/16] 0.0, 128
    %1942 = vxpose.xlu0.b32.cont [4/16] 0.0, 128
    %1943 = vxpose.xlu0.b32.cont [5/16] 0.0, 128
    %1944 = vxpose.xlu0.b32.cont [6/16] 0.0, 128
    %1945 = vxpose.xlu0.b32.cont [7/16] 0.0, 128
    %1946 = vxpose.xlu0.b32.cont [8/16] 0.0, 128
    %1947 = vxpose.xlu0.b32.cont [9/16] 0.0, 128
    %1948 = vxpose.xlu0.b32.cont [10/16] 0.0, 128
    %1949 = vxpose.xlu0.b32.cont [11/16] 0.0, 128
    %1950 = vxpose.xlu0.b32.cont [12/16] 0.0, 128
    %1951 = vxpose.xlu0.b32.cont [13/16] 0.0, 128
    %1952 = vxpose.xlu0.b32.cont [14/16] 0.0, 128
    %1953 = vxpose.xlu0.b32.cont [15/16] 0.0, 128
    %1954 = vxpose.xlu0.b32.end [16/16] 0.0, 128
    %v1955 = vpop.trf.xlu0
    %v1956 = vpop.trf.xlu0
    %v1957 = vpop.trf.xlu0
    %v1958 = vpop.trf.xlu0
    %v1959 = vpop.trf.xlu0
    %v1960 = vpop.trf.xlu0
    %v1961 = vpop.trf.xlu0
    %v1962 = vpop.trf.xlu0
    %v1963 = vpop.trf.xlu0
    %v1964 = vpop.trf.xlu0
    %v1965 = vpop.trf.xlu0
    %v1966 = vpop.trf.xlu0
    %v1967 = vpop.trf.xlu0
    %v1968 = vpop.trf.xlu0
    %v1969 = vpop.trf.xlu0
    %v1970 = vpop.trf.xlu0
    %v1972 = vsel %vm71, %v1955, 0
    %v1975 = vsel %vm71, %v1956, 0
    %v1978 = vsel %vm75, %v1853, 0
    %1980 = vmatprep.subr.mxu0 0.0
    %1981 = vmatpush1.msra.mxu0 %v1978
    %1982 = vmatprep.subr.mxu0 0.0
    %1983 = vmatpush1.msra.mxu0 0.0
    %1984 = vmatprep.subr.mxu0 0.0
    %1985 = vmatpush1.msra.mxu0 0.0
    %1986 = vmatprep.subr.mxu0 0.0
    %1987 = vmatpush1.msra.mxu0 0.0
    %1988 = vmatprep.subr.mxu0 0.0
    %1989 = vmatpush1.msra.mxu0 0.0
    %1990 = vmatprep.subr.mxu0 0.0
    %1991 = vmatpush1.msra.mxu0 0.0
    %1992 = vmatprep.subr.mxu0 0.0
    %1993 = vmatpush1.msra.mxu0 0.0
    %1994 = vmatprep.subr.mxu0 0.0
    %1995 = vmatpush1.msra.mxu0 0.0
    %1996 = vmatprep.subr.mxu0 0.0
    %1997 = vmatpush1.msra.mxu0 0.0
    %1998 = vmatprep.subr.mxu0 0.0
    %1999 = vmatpush1.msra.mxu0 0.0
    %2000 = vmatprep.subr.mxu0 0.0
    %2001 = vmatpush1.msra.mxu0 0.0
    %2002 = vmatprep.subr.mxu0 0.0
    %2003 = vmatpush1.msra.mxu0 0.0
    %2004 = vmatprep.subr.mxu0 0.0
    %2005 = vmatpush1.msra.mxu0 0.0
    %2006 = vmatprep.subr.mxu0 0.0
    %2007 = vmatpush1.msra.mxu0 0.0
    %2008 = vmatprep.subr.mxu0 0.0
    %2009 = vmatpush1.msra.mxu0 0.0
    %2010 = vmatprep.subr.mxu0 0.0
    %2011 = vmatpush1.msra.mxu0 0.0
    %2012 = vmatprep.subr.mxu0 0.0
    %2013 = vmatpush1.msra.mxu0 0.0
    %2014 = vmatprep.subr.mxu0 0.0
    %2015 = vmatpush1.msra.mxu0 0.0
    %2016 = vmatprep.subr.mxu0 0.0
    %2017 = vmatpush1.msra.mxu0 0.0
    %2018 = vmatprep.subr.mxu0 0.0
    %2019 = vmatpush1.msra.mxu0 0.0
    %2020 = vmatprep.subr.mxu0 0.0
    %2021 = vmatpush1.msra.mxu0 0.0
    %2022 = vmatprep.subr.mxu0 0.0
    %2023 = vmatpush1.msra.mxu0 0.0
    %2024 = vmatprep.subr.mxu0 0.0
    %2025 = vmatpush1.msra.mxu0 0.0
    %2026 = vmatprep.subr.mxu0 0.0
    %2027 = vmatpush1.msra.mxu0 0.0
    %2028 = vmatprep.subr.mxu0 0.0
    %2029 = vmatpush1.msra.mxu0 0.0
    %2030 = vmatprep.subr.mxu0 0.0
    %2031 = vmatpush1.msra.mxu0 0.0
    %2032 = vmatprep.subr.mxu0 0.0
    %2033 = vmatpush1.msra.mxu0 0.0
    %2034 = vmatprep.subr.mxu0 0.0
    %2035 = vmatpush1.msra.mxu0 0.0
    %2036 = vmatprep.subr.mxu0 0.0
    %2037 = vmatpush1.msra.mxu0 0.0
    %2038 = vmatprep.subr.mxu0 0.0
    %2039 = vmatpush1.msra.mxu0 0.0
    %2040 = vmatprep.subr.mxu0 0.0
    %2041 = vmatpush1.msra.mxu0 0.0
    %2042 = vmatprep.subr.mxu0 0.0
    %2043 = vmatpush1.msra.mxu0 0.0
    %2044 = vmatprep.mubr.f32.mxu0 0.0
    %2045 = vmatmul.mubr.f32.gmra.mrb[0].mxu0 %v1972
    %v2046 = vpop.f32.mrb[0].mxu0
    %v2047 = vadd.f32 0.0, %v2046
    %v2048 = vpop.f32.mrb[0].mxu0
    %2049 = vmatprep.mubr.f32.mxu0 0.0
    %2050 = vmatmul.mubr.f32.gmra.mrb[0].mxu0 %v1975
    %v2051 = vpop.f32.mrb[0].mxu0
    %v2052 = vadd.f32 0.0, %v2051
    %v2053 = vpop.f32.mrb[0].mxu0
    %2054 = vdwg.mxu0
    %v2055 = vsel %vm431, %v2047, -inf
    %2056 = vmax.xlane.f32.xlu0 %v2055
    %v2057 = vpop.xlane.xlu0 %2056
    %v2058 = vsel %vm431, %v2052, -inf
    %2059 = vmax.xlane.f32.xlu0 %v2058
    %v2060 = vpop.xlane.xlu0 %2059
    %v2061 = vsub.f32 %v2047, %v2057
    %v2062 = vsub.f32 %v2052, %v2060
    %v2063 = vmul.f32 %v2061, 1.442695
    %v2064 = vpow.pop %v2063
    %v2065 = vmul.f32 %v2062, 1.442695
    %v2066 = vpow.pop %v2065
    %v2067 = vsel %vm431, %v2064, 0.0
    %2068 = vadd.xlane.f32.xlu0 %v2067
    %v2069 = vpop.xlane.xlu0 %2068
    %v2070 = vsel %vm431, %v2066, 0.0
    %2071 = vadd.xlane.f32.xlu0 %v2070
    %v2072 = vpop.xlane.xlu0 %2071
    %v2073 = vrcp.pop %v2069
    %v2074 = vrcp.pop %v2072
    %v2075 = vmul.f32 %v2064, %v2073
    %v2076 = vmul.f32 %v2066, %v2074
    %v2078 = vsel %vm431, %v1936, 0
    %v2081 = vsel %vm431, %v2075, 0
    %v2084 = vsel %vm431, %v2076, 0
    %2086 = vmatprep.subr.mxu0 0.0
    %2087 = vmatpush1.xpose.msra.mxu0 %v2081
    %2088 = vmatprep.subr.mxu0 0.0
    %2089 = vmatpush1.xpose.msra.mxu0 %v2084
    %2090 = vmatprep.subr.mxu0 0.0
    %2091 = vmatpush1.xpose.msra.mxu0 0.0
    %2092 = vmatprep.subr.mxu0 0.0
    %2093 = vmatpush1.xpose.msra.mxu0 0.0
    %2094 = vmatprep.subr.mxu0 0.0
    %2095 = vmatpush1.xpose.msra.mxu0 0.0
    %2096 = vmatprep.subr.mxu0 0.0
    %2097 = vmatpush1.xpose.msra.mxu0 0.0
    %2098 = vmatprep.subr.mxu0 0.0
    %2099 = vmatpush1.xpose.msra.mxu0 0.0
    %2100 = vmatprep.subr.mxu0 0.0
    %2101 = vmatpush1.xpose.msra.mxu0 0.0
    %2102 = vmatprep.subr.mxu0 0.0
    %2103 = vmatpush1.xpose.msra.mxu0 0.0
    %2104 = vmatprep.subr.mxu0 0.0
    %2105 = vmatpush1.xpose.msra.mxu0 0.0
    %2106 = vmatprep.subr.mxu0 0.0
    %2107 = vmatpush1.xpose.msra.mxu0 0.0
    %2108 = vmatprep.subr.mxu0 0.0
    %2109 = vmatpush1.xpose.msra.mxu0 0.0
    %2110 = vmatprep.subr.mxu0 0.0
    %2111 = vmatpush1.xpose.msra.mxu0 0.0
    %2112 = vmatprep.subr.mxu0 0.0
    %2113 = vmatpush1.xpose.msra.mxu0 0.0
    %2114 = vmatprep.subr.mxu0 0.0
    %2115 = vmatpush1.xpose.msra.mxu0 0.0
    %2116 = vmatprep.subr.mxu0 0.0
    %2117 = vmatpush1.xpose.msra.mxu0 0.0
    %2118 = vmatprep.subr.mxu0 0.0
    %2119 = vmatpush1.xpose.msra.mxu0 0.0
    %2120 = vmatprep.subr.mxu0 0.0
    %2121 = vmatpush1.xpose.msra.mxu0 0.0
    %2122 = vmatprep.subr.mxu0 0.0
    %2123 = vmatpush1.xpose.msra.mxu0 0.0
    %2124 = vmatprep.subr.mxu0 0.0
    %2125 = vmatpush1.xpose.msra.mxu0 0.0
    %2126 = vmatprep.subr.mxu0 0.0
    %2127 = vmatpush1.xpose.msra.mxu0 0.0
    %2128 = vmatprep.subr.mxu0 0.0
    %2129 = vmatpush1.xpose.msra.mxu0 0.0
    %2130 = vmatprep.subr.mxu0 0.0
    %2131 = vmatpush1.xpose.msra.mxu0 0.0
    %2132 = vmatprep.subr.mxu0 0.0
    %2133 = vmatpush1.xpose.msra.mxu0 0.0
    %2134 = vmatprep.subr.mxu0 0.0
    %2135 = vmatpush1.xpose.msra.mxu0 0.0
    %2136 = vmatprep.subr.mxu0 0.0
    %2137 = vmatpush1.xpose.msra.mxu0 0.0
    %2138 = vmatprep.subr.mxu0 0.0
    %2139 = vmatpush1.xpose.msra.mxu0 0.0
    %2140 = vmatprep.subr.mxu0 0.0
    %2141 = vmatpush1.xpose.msra.mxu0 0.0
    %2142 = vmatprep.subr.mxu0 0.0
    %2143 = vmatpush1.xpose.msra.mxu0 0.0
    %2144 = vmatprep.subr.mxu0 0.0
    %2145 = vmatpush1.xpose.msra.mxu0 0.0
    %2146 = vmatprep.subr.mxu0 0.0
    %2147 = vmatpush1.xpose.msra.mxu0 0.0
    %2148 = vmatprep.subr.mxu0 0.0
    %2149 = vmatpush1.xpose.msra.mxu0 0.0
    %2150 = vmatprep.mubr.f32.mxu0 0.0
    %2151 = vmatmul.mubr.f32.gmra.mrb[0].mxu0 %v2078
    %v2152 = vpop.f32.mrb[0].mxu0
    %v2153 = vadd.f32 0.0, %v2152
    %v2154 = vpop.f32.mrb[0].mxu0
    %2155 = vdwg.mxu0
    %v2156 = vld [vmem:[%s7] sm:$0x1]
    %v2157 = vld [vmem:[%s8] sm:$0x1]
    %2159 = vset.pattern.permute.xlu0 0
    %2160 = vperm.xlu0 %2159, %v2157
    %v2161 = vpop.permute.xlu0 %2160
    %v2163 = vlaneseq
    %v2164 = vshrl.u32 %v2163, 7
    %v2165 = vsub.s32 0, %v2164
    %v2166 = vrot.slane %v2161, %v2165
    %v2168 = vsel %vm71, %v2156, 0
    %v2171 = vsel %vm75, %v2153, 0
    %2173 = vmatprep.subr.mxu0 0.0
    %2174 = vmatpush1.msra.mxu0 %v2171
    %2175 = vmatprep.subr.mxu0 0.0
    %2176 = vmatpush1.msra.mxu0 0.0
    %2177 = vmatprep.subr.mxu0 0.0
    %2178 = vmatpush1.msra.mxu0 0.0
    %2179 = vmatprep.subr.mxu0 0.0
    %2180 = vmatpush1.msra.mxu0 0.0
    %2181 = vmatprep.subr.mxu0 0.0
    %2182 = vmatpush1.msra.mxu0 0.0
    %2183 = vmatprep.subr.mxu0 0.0
    %2184 = vmatpush1.msra.mxu0 0.0
    %2185 = vmatprep.subr.mxu0 0.0
    %2186 = vmatpush1.msra.mxu0 0.0
    %2187 = vmatprep.subr.mxu0 0.0
    %2188 = vmatpush1.msra.mxu0 0.0
    %2189 = vmatprep.subr.mxu0 0.0
    %2190 = vmatpush1.msra.mxu0 0.0
    %2191 = vmatprep.subr.mxu0 0.0
    %2192 = vmatpush1.msra.mxu0 0.0
    %2193 = vmatprep.subr.mxu0 0.0
    %2194 = vmatpush1.msra.mxu0 0.0
    %2195 = vmatprep.subr.mxu0 0.0
    %2196 = vmatpush1.msra.mxu0 0.0
    %2197 = vmatprep.subr.mxu0 0.0
    %2198 = vmatpush1.msra.mxu0 0.0
    %2199 = vmatprep.subr.mxu0 0.0
    %2200 = vmatpush1.msra.mxu0 0.0
    %2201 = vmatprep.subr.mxu0 0.0
    %2202 = vmatpush1.msra.mxu0 0.0
    %2203 = vmatprep.subr.mxu0 0.0
    %2204 = vmatpush1.msra.mxu0 0.0
    %2205 = vmatprep.subr.mxu0 0.0
    %2206 = vmatpush1.msra.mxu0 0.0
    %2207 = vmatprep.subr.mxu0 0.0
    %2208 = vmatpush1.msra.mxu0 0.0
    %2209 = vmatprep.subr.mxu0 0.0
    %2210 = vmatpush1.msra.mxu0 0.0
    %2211 = vmatprep.subr.mxu0 0.0
    %2212 = vmatpush1.msra.mxu0 0.0
    %2213 = vmatprep.subr.mxu0 0.0
    %2214 = vmatpush1.msra.mxu0 0.0
    %2215 = vmatprep.subr.mxu0 0.0
    %2216 = vmatpush1.msra.mxu0 0.0
    %2217 = vmatprep.subr.mxu0 0.0
    %2218 = vmatpush1.msra.mxu0 0.0
    %2219 = vmatprep.subr.mxu0 0.0
    %2220 = vmatpush1.msra.mxu0 0.0
    %2221 = vmatprep.subr.mxu0 0.0
    %2222 = vmatpush1.msra.mxu0 0.0
    %2223 = vmatprep.subr.mxu0 0.0
    %2224 = vmatpush1.msra.mxu0 0.0
    %2225 = vmatprep.subr.mxu0 0.0
    %2226 = vmatpush1.msra.mxu0 0.0
    %2227 = vmatprep.subr.mxu0 0.0
    %2228 = vmatpush1.msra.mxu0 0.0
    %2229 = vmatprep.subr.mxu0 0.0
    %2230 = vmatpush1.msra.mxu0 0.0
    %2231 = vmatprep.subr.mxu0 0.0
    %2232 = vmatpush1.msra.mxu0 0.0
    %2233 = vmatprep.subr.mxu0 0.0
    %2234 = vmatpush1.msra.mxu0 0.0
    %2235 = vmatprep.subr.mxu0 0.0
    %2236 = vmatpush1.msra.mxu0 0.0
    %2237 = vmatprep.mubr.f32.mxu0 0.0
    %2238 = vmatmul.mubr.f32.gmra.mrb[0].mxu0 %v2168
    %v2239 = vpop.f32.mrb[0].mxu0
    %v2240 = vadd.f32 %v2166, %v2239
    %v2241 = vpop.f32.mrb[0].mxu0
    %2242 = vdwg.mxu0
    %v2243 = vadd.f32 %v1683, %v2240
    %v2244 = vld [vmem:[%s9] sm:$0x1]
    %v2245 = vld [vmem:[%s10] sm:$0x1]
    %v2246 = vadd.f32 %v2243, 0.0
    %v2247 = vsub.f32 %v2243, %v2246
    %v2248 = vmul.f32 %v2247, %v2247
    %v2249 = vadd.f32 %v2248, 0.0
    %v2250 = vadd.f32 %v2249, 1e-05
    %v2251 = vrsqrt.pop %v2250
    %v2252 = vmul.f32 %v2247, %v2251
    %2254 = vset.pattern.permute.xlu0 0
    %2255 = vperm.xlu0 %2254, %v2244
    %v2256 = vpop.permute.xlu0 %2255
    %v2258 = vlaneseq
    %v2259 = vshrl.u32 %v2258, 7
    %v2260 = vsub.s32 0, %v2259
    %v2261 = vrot.slane %v2256, %v2260
    %v2262 = vmul.f32 %v2252, %v2261
    %2264 = vset.pattern.permute.xlu0 0
    %2265 = vperm.xlu0 %2264, %v2245
    %v2266 = vpop.permute.xlu0 %2265
    %v2268 = vlaneseq
    %v2269 = vshrl.u32 %v2268, 7
    %v2270 = vsub.s32 0, %v2269
    %v2271 = vrot.slane %v2266, %v2270
    %v2272 = vadd.f32 %v2262, %v2271
    %v2273 = vld [vmem:[%s11] sm:$0xf]
    %v2274 = vld [vmem:[%s12] sm:$0xf]
    %2276 = vset.pattern.permute.xlu0 0
    %2277 = vperm.xlu0 %2276, %v2274
    %v2278 = vpop.permute.xlu0 %2277
    %v2281 = vsel %vm71, %v2273, 0
    %v2284 = vsel %vm75, %v2272, 0
    %2286 = vmatprep.subr.mxu0 0.0
    %2287 = vmatpush1.msra.mxu0 %v2284
    %2288 = vmatprep.subr.mxu0 0.0
    %2289 = vmatpush1.msra.mxu0 0.0
    %2290 = vmatprep.subr.mxu0 0.0
    %2291 = vmatpush1.msra.mxu0 0.0
    %2292 = vmatprep.subr.mxu0 0.0
    %2293 = vmatpush1.msra.mxu0 0.0
    %2294 = vmatprep.subr.mxu0 0.0
    %2295 = vmatpush1.msra.mxu0 0.0
    %2296 = vmatprep.subr.mxu0 0.0
    %2297 = vmatpush1.msra.mxu0 0.0
    %2298 = vmatprep.subr.mxu0 0.0
    %2299 = vmatpush1.msra.mxu0 0.0
    %2300 = vmatprep.subr.mxu0 0.0
    %2301 = vmatpush1.msra.mxu0 0.0
    %2302 = vmatprep.subr.mxu0 0.0
    %2303 = vmatpush1.msra.mxu0 0.0
    %2304 = vmatprep.subr.mxu0 0.0
    %2305 = vmatpush1.msra.mxu0 0.0
    %2306 = vmatprep.subr.mxu0 0.0
    %2307 = vmatpush1.msra.mxu0 0.0
    %2308 = vmatprep.subr.mxu0 0.0
    %2309 = vmatpush1.msra.mxu0 0.0
    %2310 = vmatprep.subr.mxu0 0.0
    %2311 = vmatpush1.msra.mxu0 0.0
    %2312 = vmatprep.subr.mxu0 0.0
    %2313 = vmatpush1.msra.mxu0 0.0
    %2314 = vmatprep.subr.mxu0 0.0
    %2315 = vmatpush1.msra.mxu0 0.0
    %2316 = vmatprep.subr.mxu0 0.0
    %2317 = vmatpush1.msra.mxu0 0.0
    %2318 = vmatprep.subr.mxu0 0.0
    %2319 = vmatpush1.msra.mxu0 0.0
    %2320 = vmatprep.subr.mxu0 0.0
    %2321 = vmatpush1.msra.mxu0 0.0
    %2322 = vmatprep.subr.mxu0 0.0
    %2323 = vmatpush1.msra.mxu0 0.0
    %2324 = vmatprep.subr.mxu0 0.0
    %2325 = vmatpush1.msra.mxu0 0.0
    %2326 = vmatprep.subr.mxu0 0.0
    %2327 = vmatpush1.msra.mxu0 0.0
    %2328 = vmatprep.subr.mxu0 0.0
    %2329 = vmatpush1.msra.mxu0 0.0
    %2330 = vmatprep.subr.mxu0 0.0
    %2331 = vmatpush1.msra.mxu0 0.0
    %2332 = vmatprep.subr.mxu0 0.0
    %2333 = vmatpush1.msra.mxu0 0.0
    %2334 = vmatprep.subr.mxu0 0.0
    %2335 = vmatpush1.msra.mxu0 0.0
    %2336 = vmatprep.subr.mxu0 0.0
    %2337 = vmatpush1.msra.mxu0 0.0
    %2338 = vmatprep.subr.mxu0 0.0
    %2339 = vmatpush1.msra.mxu0 0.0
    %2340 = vmatprep.subr.mxu0 0.0
    %2341 = vmatpush1.msra.mxu0 0.0
    %2342 = vmatprep.subr.mxu0 0.0
    %2343 = vmatpush1.msra.mxu0 0.0
    %2344 = vmatprep.subr.mxu0 0.0
    %2345 = vmatpush1.msra.mxu0 0.0
    %2346 = vmatprep.subr.mxu0 0.0
    %2347 = vmatpush1.msra.mxu0 0.0
    %2348 = vmatprep.subr.mxu0 0.0
    %2349 = vmatpush1.msra.mxu0 0.0
    %2350 = vmatprep.mubr.f32.mxu0 0.0
    %2351 = vmatmul.mubr.f32.gmra.mrb[0].mxu0 %v2281
    %v2352 = vpop.f32.mrb[0].mxu0
    %v2353 = vadd.f32 %v2278, %v2352
    %v2354 = vpop.f32.mrb[0].mxu0
    %2355 = vdwg.mxu0
    %v2356 = vmul.f32 %v2353, 0.5
    %v2357 = vmul.f32 %v2353, 0.70710677
    %v2358 = verf.f32.pop %v2357
    %v2359 = vadd.f32 %v2358, 1.0
    %v2360 = vmul.f32 %v2356, %v2359
    %v2361 = vld [vmem:[%s13] sm:$0x1]
    %v2362 = vld [vmem:[%s14] sm:$0x1]
    %2364 = vset.pattern.permute.xlu0 0
    %2365 = vperm.xlu0 %2364, %v2362
    %v2366 = vpop.permute.xlu0 %2365
    %v2368 = vlaneseq
    %v2369 = vshrl.u32 %v2368, 7
    %v2370 = vsub.s32 0, %v2369
    %v2371 = vrot.slane %v2366, %v2370
    %v2373 = vsel %vm749, %v2361, 0
    %v2376 = vsel %vm753, %v2360, 0
    %2378 = vmatprep.subr.mxu0 0.0
    %2379 = vmatpush1.msra.mxu0 %v2376
    %2380 = vmatprep.subr.mxu0 0.0
    %2381 = vmatpush1.msra.mxu0 0.0
    %2382 = vmatprep.subr.mxu0 0.0
    %2383 = vmatpush1.msra.mxu0 0.0
    %2384 = vmatprep.subr.mxu0 0.0
    %2385 = vmatpush1.msra.mxu0 0.0
    %2386 = vmatprep.subr.mxu0 0.0
    %2387 = vmatpush1.msra.mxu0 0.0
    %2388 = vmatprep.subr.mxu0 0.0
    %2389 = vmatpush1.msra.mxu0 0.0
    %2390 = vmatprep.subr.mxu0 0.0
    %2391 = vmatpush1.msra.mxu0 0.0
    %2392 = vmatprep.subr.mxu0 0.0
    %2393 = vmatpush1.msra.mxu0 0.0
    %2394 = vmatprep.subr.mxu0 0.0
    %2395 = vmatpush1.msra.mxu0 0.0
    %2396 = vmatprep.subr.mxu0 0.0
    %2397 = vmatpush1.msra.mxu0 0.0
    %2398 = vmatprep.subr.mxu0 0.0
    %2399 = vmatpush1.msra.mxu0 0.0
    %2400 = vmatprep.subr.mxu0 0.0
    %2401 = vmatpush1.msra.mxu0 0.0
    %2402 = vmatprep.subr.mxu0 0.0
    %2403 = vmatpush1.msra.mxu0 0.0
    %2404 = vmatprep.subr.mxu0 0.0
    %2405 = vmatpush1.msra.mxu0 0.0
    %2406 = vmatprep.subr.mxu0 0.0
    %2407 = vmatpush1.msra.mxu0 0.0
    %2408 = vmatprep.subr.mxu0 0.0
    %2409 = vmatpush1.msra.mxu0 0.0
    %2410 = vmatprep.subr.mxu0 0.0
    %2411 = vmatpush1.msra.mxu0 0.0
    %2412 = vmatprep.subr.mxu0 0.0
    %2413 = vmatpush1.msra.mxu0 0.0
    %2414 = vmatprep.subr.mxu0 0.0
    %2415 = vmatpush1.msra.mxu0 0.0
    %2416 = vmatprep.subr.mxu0 0.0
    %2417 = vmatpush1.msra.mxu0 0.0
    %2418 = vmatprep.subr.mxu0 0.0
    %2419 = vmatpush1.msra.mxu0 0.0
    %2420 = vmatprep.subr.mxu0 0.0
    %2421 = vmatpush1.msra.mxu0 0.0
    %2422 = vmatprep.subr.mxu0 0.0
    %2423 = vmatpush1.msra.mxu0 0.0
    %2424 = vmatprep.subr.mxu0 0.0
    %2425 = vmatpush1.msra.mxu0 0.0
    %2426 = vmatprep.subr.mxu0 0.0
    %2427 = vmatpush1.msra.mxu0 0.0
    %2428 = vmatprep.subr.mxu0 0.0
    %2429 = vmatpush1.msra.mxu0 0.0
    %2430 = vmatprep.subr.mxu0 0.0
    %2431 = vmatpush1.msra.mxu0 0.0
    %2432 = vmatprep.subr.mxu0 0.0
    %2433 = vmatpush1.msra.mxu0 0.0
    %2434 = vmatprep.subr.mxu0 0.0
    %2435 = vmatpush1.msra.mxu0 0.0
    %2436 = vmatprep.subr.mxu0 0.0
    %2437 = vmatpush1.msra.mxu0 0.0
    %2438 = vmatprep.subr.mxu0 0.0
    %2439 = vmatpush1.msra.mxu0 0.0
    %2440 = vmatprep.subr.mxu0 0.0
    %2441 = vmatpush1.msra.mxu0 0.0
    %2442 = vmatprep.mubr.f32.mxu0 0.0
    %2443 = vmatmul.mubr.f32.gmra.mrb[0].mxu0 %v2373
    %v2444 = vpop.f32.mrb[0].mxu0
    %v2445 = vadd.f32 %v2371, %v2444
    %v2446 = vpop.f32.mrb[0].mxu0
    %2447 = vdwg.mxu0
    %v2448 = vadd.f32 %v2272, %v2445
    %v2449 = vld [vmem:[%s15] sm:$0x1]
    %v2450 = vld [vmem:[%s16] sm:$0x1]
    %v2451 = vadd.f32 %v2448, 0.0
    %v2452 = vsub.f32 %v2448, %v2451
    %v2453 = vmul.f32 %v2452, %v2452
    %v2454 = vadd.f32 %v2453, 0.0
    %v2455 = vadd.f32 %v2454, 1e-05
    %v2456 = vrsqrt.pop %v2455
    %v2457 = vmul.f32 %v2452, %v2456
    %2459 = vset.pattern.permute.xlu0 0
    %2460 = vperm.xlu0 %2459, %v2449
    %v2461 = vpop.permute.xlu0 %2460
    %v2463 = vlaneseq
    %v2464 = vshrl.u32 %v2463, 7
    %v2465 = vsub.s32 0, %v2464
    %v2466 = vrot.slane %v2461, %v2465
    %v2467 = vmul.f32 %v2457, %v2466
    %2469 = vset.pattern.permute.xlu0 0
    %2470 = vperm.xlu0 %2469, %v2450
    %v2471 = vpop.permute.xlu0 %2470
    %v2473 = vlaneseq
    %v2474 = vshrl.u32 %v2473, 7
    %v2475 = vsub.s32 0, %v2474
    %v2476 = vrot.slane %v2471, %v2475
    %v2477 = vadd.f32 %v2467, %v2476
    %vm2478 = vcmp.gt.f32.partialorder %v2477, 0.0
    %v2479 = vmin.f32 %v2477, 0.0
    %v2480 = vmul.f32 %v2479, 1.442695
    %v2481 = vpow.pop %v2480
    %v2482 = vsub.f32 %v2481, 1.0
    %v2483 = vsel %vm2478, %v2477, %v2482
    %v2484 = vld [vmem:[%s863] sm:$0x1]
    %v2485 = vld [vmem:[%s865] sm:$0x1]
    %v2486 = vld [vmem:[%s867] sm:$0x1]
    %v2487 = vld [vmem:[%s869] sm:$0x1]
    %2489 = vset.pattern.permute.xlu0 0
    %2490 = vperm.xlu0 %2489, %v2487
    %v2491 = vpop.permute.xlu0 %2490
    %v2493 = vlaneseq
    %v2494 = vshrl.u32 %v2493, 7
    %v2495 = vsub.s32 0, %v2494
    %v2496 = vrot.slane %v2491, %v2495
    %v2498 = vsel %vm71, %v2484, 0
    %v2501 = vsel %vm75, %v2483, 0
    %2503 = vmatprep.subr.mxu0 0.0
    %2504 = vmatpush1.msra.mxu0 %v2501
    %2505 = vmatprep.subr.mxu0 0.0
    %2506 = vmatpush1.msra.mxu0 0.0
    %2507 = vmatprep.subr.mxu0 0.0
    %2508 = vmatpush1.msra.mxu0 0.0
    %2509 = vmatprep.subr.mxu0 0.0
    %2510 = vmatpush1.msra.mxu0 0.0
    %2511 = vmatprep.subr.mxu0 0.0
    %2512 = vmatpush1.msra.mxu0 0.0
    %2513 = vmatprep.subr.mxu0 0.0
    %2514 = vmatpush1.msra.mxu0 0.0
    %2515 = vmatprep.subr.mxu0 0.0
    %2516 = vmatpush1.msra.mxu0 0.0
    %2517 = vmatprep.subr.mxu0 0.0
    %2518 = vmatpush1.msra.mxu0 0.0
    %2519 = vmatprep.subr.mxu0 0.0
    %2520 = vmatpush1.msra.mxu0 0.0
    %2521 = vmatprep.subr.mxu0 0.0
    %2522 = vmatpush1.msra.mxu0 0.0
    %2523 = vmatprep.subr.mxu0 0.0
    %2524 = vmatpush1.msra.mxu0 0.0
    %2525 = vmatprep.subr.mxu0 0.0
    %2526 = vmatpush1.msra.mxu0 0.0
    %2527 = vmatprep.subr.mxu0 0.0
    %2528 = vmatpush1.msra.mxu0 0.0
    %2529 = vmatprep.subr.mxu0 0.0
    %2530 = vmatpush1.msra.mxu0 0.0
    %2531 = vmatprep.subr.mxu0 0.0
    %2532 = vmatpush1.msra.mxu0 0.0
    %2533 = vmatprep.subr.mxu0 0.0
    %2534 = vmatpush1.msra.mxu0 0.0
    %2535 = vmatprep.subr.mxu0 0.0
    %2536 = vmatpush1.msra.mxu0 0.0
    %2537 = vmatprep.subr.mxu0 0.0
    %2538 = vmatpush1.msra.mxu0 0.0
    %2539 = vmatprep.subr.mxu0 0.0
    %2540 = vmatpush1.msra.mxu0 0.0
    %2541 = vmatprep.subr.mxu0 0.0
    %2542 = vmatpush1.msra.mxu0 0.0
    %2543 = vmatprep.subr.mxu0 0.0
    %2544 = vmatpush1.msra.mxu0 0.0
    %2545 = vmatprep.subr.mxu0 0.0
    %2546 = vmatpush1.msra.mxu0 0.0
    %2547 = vmatprep.subr.mxu0 0.0
    %2548 = vmatpush1.msra.mxu0 0.0
    %2549 = vmatprep.subr.mxu0 0.0
    %2550 = vmatpush1.msra.mxu0 0.0
    %2551 = vmatprep.subr.mxu0 0.0
    %2552 = vmatpush1.msra.mxu0 0.0
    %2553 = vmatprep.subr.mxu0 0.0
    %2554 = vmatpush1.msra.mxu0 0.0
    %2555 = vmatprep.subr.mxu0 0.0
    %2556 = vmatpush1.msra.mxu0 0.0
    %2557 = vmatprep.subr.mxu0 0.0
    %2558 = vmatpush1.msra.mxu0 0.0
    %2559 = vmatprep.subr.mxu0 0.0
    %2560 = vmatpush1.msra.mxu0 0.0
    %2561 = vmatprep.subr.mxu0 0.0
    %2562 = vmatpush1.msra.mxu0 0.0
    %2563 = vmatprep.subr.mxu0 0.0
    %2564 = vmatpush1.msra.mxu0 0.0
    %2565 = vmatprep.subr.mxu0 0.0
    %2566 = vmatpush1.msra.mxu0 0.0
    %2567 = vmatprep.mubr.f32.mxu0 0.0
    %2568 = vmatmul.mubr.f32.gmra.mrb[0].mxu0 %v2498
    %v2569 = vpop.f32.mrb[0].mxu0
    %v2570 = vadd.f32 %v2496, %v2569
    %v2571 = vpop.f32.mrb[0].mxu0
    %2572 = vdwg.mxu0
    %v2573 = vld [vmem:[%s956] sm:$0x1]
    %2575 = vset.pattern.permute.xlu0 0
    %2576 = vperm.xlu0 %2575, %v2573
    %v2577 = vpop.permute.xlu0 %2576
    %v2579 = vlaneseq
    %v2580 = vshrl.u32 %v2579, 7
    %v2581 = vsub.s32 0, %v2580
    %v2582 = vrot.slane %v2577, %v2581
    %v2584 = vsel %vm71, %v2485, 0
    %2586 = vmatprep.subr.mxu0 0.0
    %2587 = vmatpush1.msra.mxu0 %v2501
    %2588 = vmatprep.subr.mxu0 0.0
    %2589 = vmatpush1.msra.mxu0 0.0
    %2590 = vmatprep.subr.mxu0 0.0
    %2591 = vmatpush1.msra.mxu0 0.0
    %2592 = vmatprep.subr.mxu0 0.0
    %2593 = vmatpush1.msra.mxu0 0.0
    %2594 = vmatprep.subr.mxu0 0.0
    %2595 = vmatpush1.msra.mxu0 0.0
    %2596 = vmatprep.subr.mxu0 0.0
    %2597 = vmatpush1.msra.mxu0 0.0
    %2598 = vmatprep.subr.mxu0 0.0
    %2599 = vmatpush1.msra.mxu0 0.0
    %2600 = vmatprep.subr.mxu0 0.0
    %2601 = vmatpush1.msra.mxu0 0.0
    %2602 = vmatprep.subr.mxu0 0.0
    %2603 = vmatpush1.msra.mxu0 0.0
    %2604 = vmatprep.subr.mxu0 0.0
    %2605 = vmatpush1.msra.mxu0 0.0
    %2606 = vmatprep.subr.mxu0 0.0
    %2607 = vmatpush1.msra.mxu0 0.0
    %2608 = vmatprep.subr.mxu0 0.0
    %2609 = vmatpush1.msra.mxu0 0.0
    %2610 = vmatprep.subr.mxu0 0.0
    %2611 = vmatpush1.msra.mxu0 0.0
    %2612 = vmatprep.subr.mxu0 0.0
    %2613 = vmatpush1.msra.mxu0 0.0
    %2614 = vmatprep.subr.mxu0 0.0
    %2615 = vmatpush1.msra.mxu0 0.0
    %2616 = vmatprep.subr.mxu0 0.0
    %2617 = vmatpush1.msra.mxu0 0.0
    %2618 = vmatprep.subr.mxu0 0.0
    %2619 = vmatpush1.msra.mxu0 0.0
    %2620 = vmatprep.subr.mxu0 0.0
    %2621 = vmatpush1.msra.mxu0 0.0
    %2622 = vmatprep.subr.mxu0 0.0
    %2623 = vmatpush1.msra.mxu0 0.0
    %2624 = vmatprep.subr.mxu0 0.0
    %2625 = vmatpush1.msra.mxu0 0.0
    %2626 = vmatprep.subr.mxu0 0.0
    %2627 = vmatpush1.msra.mxu0 0.0
    %2628 = vmatprep.subr.mxu0 0.0
    %2629 = vmatpush1.msra.mxu0 0.0
    %2630 = vmatprep.subr.mxu0 0.0
    %2631 = vmatpush1.msra.mxu0 0.0
    %2632 = vmatprep.subr.mxu0 0.0
    %2633 = vmatpush1.msra.mxu0 0.0
    %2634 = vmatprep.subr.mxu0 0.0
    %2635 = vmatpush1.msra.mxu0 0.0
    %2636 = vmatprep.subr.mxu0 0.0
    %2637 = vmatpush1.msra.mxu0 0.0
    %2638 = vmatprep.subr.mxu0 0.0
    %2639 = vmatpush1.msra.mxu0 0.0
    %2640 = vmatprep.subr.mxu0 0.0
    %2641 = vmatpush1.msra.mxu0 0.0
    %2642 = vmatprep.subr.mxu0 0.0
    %2643 = vmatpush1.msra.mxu0 0.0
    %2644 = vmatprep.subr.mxu0 0.0
    %2645 = vmatpush1.msra.mxu0 0.0
    %2646 = vmatprep.subr.mxu0 0.0
    %2647 = vmatpush1.msra.mxu0 0.0
    %2648 = vmatprep.subr.mxu0 0.0
    %2649 = vmatpush1.msra.mxu0 0.0
    %2650 = vmatprep.mubr.f32.mxu0 0.0
    %2651 = vmatmul.mubr.f32.gmra.mrb[0].mxu0 %v2584
    %v2652 = vpop.f32.mrb[0].mxu0
    %v2653 = vadd.f32 %v2582, %v2652
    %v2654 = vpop.f32.mrb[0].mxu0
    %2655 = vdwg.mxu0
    %v2656 = vld [vmem:[%s1040] sm:$0x1]
    %2658 = vset.pattern.permute.xlu0 0
    %2659 = vperm.xlu0 %2658, %v2656
    %v2660 = vpop.permute.xlu0 %2659
    %v2662 = vlaneseq
    %v2663 = vshrl.u32 %v2662, 7
    %v2664 = vsub.s32 0, %v2663
    %v2665 = vrot.slane %v2660, %v2664
    %v2667 = vsel %vm71, %v2486, 0
    %2669 = vmatprep.subr.mxu0 0.0
    %2670 = vmatpush1.msra.mxu0 %v2501
    %2671 = vmatprep.subr.mxu0 0.0
    %2672 = vmatpush1.msra.mxu0 0.0
    %2673 = vmatprep.subr.mxu0 0.0
    %2674 = vmatpush1.msra.mxu0 0.0
    %2675 = vmatprep.subr.mxu0 0.0
    %2676 = vmatpush1.msra.mxu0 0.0
    %2677 = vmatprep.subr.mxu0 0.0
    %2678 = vmatpush1.msra.mxu0 0.0
    %2679 = vmatprep.subr.mxu0 0.0
    %2680 = vmatpush1.msra.mxu0 0.0
    %2681 = vmatprep.subr.mxu0 0.0
    %2682 = vmatpush1.msra.mxu0 0.0
    %2683 = vmatprep.subr.mxu0 0.0
    %2684 = vmatpush1.msra.mxu0 0.0
    %2685 = vmatprep.subr.mxu0 0.0
    %2686 = vmatpush1.msra.mxu0 0.0
    %2687 = vmatprep.subr.mxu0 0.0
    %2688 = vmatpush1.msra.mxu0 0.0
    %2689 = vmatprep.subr.mxu0 0.0
    %2690 = vmatpush1.msra.mxu0 0.0
    %2691 = vmatprep.subr.mxu0 0.0
    %2692 = vmatpush1.msra.mxu0 0.0
    %2693 = vmatprep.subr.mxu0 0.0
    %2694 = vmatpush1.msra.mxu0 0.0
    %2695 = vmatprep.subr.mxu0 0.0
    %2696 = vmatpush1.msra.mxu0 0.0
    %2697 = vmatprep.subr.mxu0 0.0
    %2698 = vmatpush1.msra.mxu0 0.0
    %2699 = vmatprep.subr.mxu0 0.0
    %2700 = vmatpush1.msra.mxu0 0.0
    %2701 = vmatprep.subr.mxu0 0.0
    %2702 = vmatpush1.msra.mxu0 0.0
    %2703 = vmatprep.subr.mxu0 0.0
    %2704 = vmatpush1.msra.mxu0 0.0
    %2705 = vmatprep.subr.mxu0 0.0
    %2706 = vmatpush1.msra.mxu0 0.0
    %2707 = vmatprep.subr.mxu0 0.0
    %2708 = vmatpush1.msra.mxu0 0.0
    %2709 = vmatprep.subr.mxu0 0.0
    %2710 = vmatpush1.msra.mxu0 0.0
    %2711 = vmatprep.subr.mxu0 0.0
    %2712 = vmatpush1.msra.mxu0 0.0
    %2713 = vmatprep.subr.mxu0 0.0
    %2714 = vmatpush1.msra.mxu0 0.0
    %2715 = vmatprep.subr.mxu0 0.0
    %2716 = vmatpush1.msra.mxu0 0.0
    %2717 = vmatprep.subr.mxu0 0.0
    %2718 = vmatpush1.msra.mxu0 0.0
    %2719 = vmatprep.subr.mxu0 0.0
    %2720 = vmatpush1.msra.mxu0 0.0
    %2721 = vmatprep.subr.mxu0 0.0
    %2722 = vmatpush1.msra.mxu0 0.0
    %2723 = vmatprep.subr.mxu0 0.0
    %2724 = vmatpush1.msra.mxu0 0.0
    %2725 = vmatprep.subr.mxu0 0.0
    %2726 = vmatpush1.msra.mxu0 0.0
    %2727 = vmatprep.subr.mxu0 0.0
    %2728 = vmatpush1.msra.mxu0 0.0
    %2729 = vmatprep.subr.mxu0 0.0
    %2730 = vmatpush1.msra.mxu0 0.0
    %2731 = vmatprep.subr.mxu0 0.0
    %2732 = vmatpush1.msra.mxu0 0.0
    %2733 = vmatprep.mubr.f32.mxu0 0.0
    %2734 = vmatmul.mubr.f32.gmra.mrb[0].mxu0 %v2667
    %v2735 = vpop.f32.mrb[0].mxu0
    %v2736 = vadd.f32 %v2665, %v2735
    %v2737 = vpop.f32.mrb[0].mxu0
    %2738 = vdwg.mxu0
    %2739 = vxpose.xlu0.b32.start [1/16] %v2570, 128
    %2740 = vxpose.xlu0.b32.cont [2/16] 0.0, 128
    %2741 = vxpose.xlu0.b32.cont [3/16] 0.0, 128
    %2742 = vxpose.xlu0.b32.cont [4/16] 0.0, 128
    %2743 = vxpose.xlu0.b32.cont [5/16] 0.0, 128
    %2744 = vxpose.xlu0.b32.cont [6/16] 0.0, 128
    %2745 = vxpose.xlu0.b32.cont [7/16] 0.0, 128
    %2746 = vxpose.xlu0.b32.cont [8/16] 0.0, 128
    %2747 = vxpose.xlu0.b32.cont [9/16] 0.0, 128
    %2748 = vxpose.xlu0.b32.cont [10/16] 0.0, 128
    %2749 = vxpose.xlu0.b32.cont [11/16] 0.0, 128
    %2750 = vxpose.xlu0.b32.cont [12/16] 0.0, 128
    %2751 = vxpose.xlu0.b32.cont [13/16] 0.0, 128
    %2752 = vxpose.xlu0.b32.cont [14/16] 0.0, 128
    %2753 = vxpose.xlu0.b32.cont [15/16] 0.0, 128
    %2754 = vxpose.xlu0.b32.end [16/16] 0.0, 128
    %v2755 = vpop.trf.xlu0
    %v2756 = vpop.trf.xlu0
    %v2757 = vpop.trf.xlu0
    %v2758 = vpop.trf.xlu0
    %v2759 = vpop.trf.xlu0
    %v2760 = vpop.trf.xlu0
    %v2761 = vpop.trf.xlu0
    %v2762 = vpop.trf.xlu0
    %v2763 = vpop.trf.xlu0
    %v2764 = vpop.trf.xlu0
    %v2765 = vpop.trf.xlu0
    %v2766 = vpop.trf.xlu0
    %v2767 = vpop.trf.xlu0
    %v2768 = vpop.trf.xlu0
    %v2769 = vpop.trf.xlu0
    %v2770 = vpop.trf.xlu0
    %v2772 = vsel %vm71, %v2755, 0
    %v2775 = vsel %vm71, %v2756, 0
    %v2778 = vsel %vm75, %v2653, 0
    %2780 = vmatprep.subr.mxu0 0.0
    %2781 = vmatpush1.msra.mxu0 %v2778
    %2782 = vmatprep.subr.mxu0 0.0
    %2783 = vmatpush1.msra.mxu0 0.0
    %2784 = vmatprep.subr.mxu0 0.0
    %2785 = vmatpush1.msra.mxu0 0.0
    %2786 = vmatprep.subr.mxu0 0.0
    %2787 = vmatpush1.msra.mxu0 0.0
    %2788 = vmatprep.subr.mxu0 0.0
    %2789 = vmatpush1.msra.mxu0 0.0
    %2790 = vmatprep.subr.mxu0 0.0
    %2791 = vmatpush1.msra.mxu0 0.0
    %2792 = vmatprep.subr.mxu0 0.0
    %2793 = vmatpush1.msra.mxu0 0.0
    %2794 = vmatprep.subr.mxu0 0.0
    %2795 = vmatpush1.msra.mxu0 0.0
    %2796 = vmatprep.subr.mxu0 0.0
    %2797 = vmatpush1.msra.mxu0 0.0
    %2798 = vmatprep.subr.mxu0 0.0
    %2799 = vmatpush1.msra.mxu0 0.0
    %2800 = vmatprep.subr.mxu0 0.0
    %2801 = vmatpush1.msra.mxu0 0.0
    %2802 = vmatprep.subr.mxu0 0.0
    %2803 = vmatpush1.msra.mxu0 0.0
    %2804 = vmatprep.subr.mxu0 0.0
    %2805 = vmatpush1.msra.mxu0 0.0
    %2806 = vmatprep.subr.mxu0 0.0
    %2807 = vmatpush1.msra.mxu0 0.0
    %2808 = vmatprep.subr.mxu0 0.0
    %2809 = vmatpush1.msra.mxu0 0.0
    %2810 = vmatprep.subr.mxu0 0.0
    %2811 = vmatpush1.msra.mxu0 0.0
    %2812 = vmatprep.subr.mxu0 0.0
    %2813 = vmatpush1.msra.mxu0 0.0
    %2814 = vmatprep.subr.mxu0 0.0
    %2815 = vmatpush1.msra.mxu0 0.0
    %2816 = vmatprep.subr.mxu0 0.0
    %2817 = vmatpush1.msra.mxu0 0.0
    %2818 = vmatprep.subr.mxu0 0.0
    %2819 = vmatpush1.msra.mxu0 0.0
    %2820 = vmatprep.subr.mxu0 0.0
    %2821 = vmatpush1.msra.mxu0 0.0
    %2822 = vmatprep.subr.mxu0 0.0
    %2823 = vmatpush1.msra.mxu0 0.0
    %2824 = vmatprep.subr.mxu0 0.0
    %2825 = vmatpush1.msra.mxu0 0.0
    %2826 = vmatprep.subr.mxu0 0.0
    %2827 = vmatpush1.msra.mxu0 0.0
    %2828 = vmatprep.subr.mxu0 0.0
    %2829 = vmatpush1.msra.mxu0 0.0
    %2830 = vmatprep.subr.mxu0 0.0
    %2831 = vmatpush1.msra.mxu0 0.0
    %2832 = vmatprep.subr.mxu0 0.0
    %2833 = vmatpush1.msra.mxu0 0.0
    %2834 = vmatprep.subr.mxu0 0.0
    %2835 = vmatpush1.msra.mxu0 0.0
    %2836 = vmatprep.subr.mxu0 0.0
    %2837 = vmatpush1.msra.mxu0 0.0
    %2838 = vmatprep.subr.mxu0 0.0
    %2839 = vmatpush1.msra.mxu0 0.0
    %2840 = vmatprep.subr.mxu0 0.0
    %2841 = vmatpush1.msra.mxu0 0.0
    %2842 = vmatprep.subr.mxu0 0.0
    %2843 = vmatpush1.msra.mxu0 0.0
    %2844 = vmatprep.mubr.f32.mxu0 0.0
    %2845 = vmatmul.mubr.f32.gmra.mrb[0].mxu0 %v2772
    %v2846 = vpop.f32.mrb[0].mxu0
    %v2847 = vadd.f32 0.0, %v2846
    %v2848 = vpop.f32.mrb[0].mxu0
    %2849 = vmatprep.mubr.f32.mxu0 0.0
    %2850 = vmatmul.mubr.f32.gmra.mrb[0].mxu0 %v2775
    %v2851 = vpop.f32.mrb[0].mxu0
    %v2852 = vadd.f32 0.0, %v2851
    %v2853 = vpop.f32.mrb[0].mxu0
    %2854 = vdwg.mxu0
    %v2855 = vsel %vm431, %v2847, -inf
    %2856 = vmax.xlane.f32.xlu0 %v2855
    %v2857 = vpop.xlane.xlu0 %2856
    %v2858 = vsel %vm431, %v2852, -inf
    %2859 = vmax.xlane.f32.xlu0 %v2858
    %v2860 = vpop.xlane.xlu0 %2859
    %v2861 = vsub.f32 %v2847, %v2857
    %v2862 = vsub.f32 %v2852, %v2860
    %v2863 = vmul.f32 %v2861, 1.442695
    %v2864 = vpow.pop %v2863
    %v2865 = vmul.f32 %v2862, 1.442695
    %v2866 = vpow.pop %v2865
    %v2867 = vsel %vm431, %v2864, 0.0
    %2868 = vadd.xlane.f32.xlu0 %v2867
    %v2869 = vpop.xlane.xlu0 %2868
    %v2870 = vsel %vm431, %v2866, 0.0
    %2871 = vadd.xlane.f32.xlu0 %v2870
    %v2872 = vpop.xlane.xlu0 %2871
    %v2873 = vrcp.pop %v2869
    %v2874 = vrcp.pop %v2872
    %v2875 = vmul.f32 %v2864, %v2873
    %v2876 = vmul.f32 %v2866, %v2874
    %v2878 = vsel %vm431, %v2736, 0
    %v2881 = vsel %vm431, %v2875, 0
    %v2884 = vsel %vm431, %v2876, 0
    %2886 = vmatprep.subr.mxu0 0.0
    %2887 = vmatpush1.xpose.msra.mxu0 %v2881
    %2888 = vmatprep.subr.mxu0 0.0
    %2889 = vmatpush1.xpose.msra.mxu0 %v2884
    %2890 = vmatprep.subr.mxu0 0.0
    %2891 = vmatpush1.xpose.msra.mxu0 0.0
    %2892 = vmatprep.subr.mxu0 0.0
    %2893 = vmatpush1.xpose.msra.mxu0 0.0
    %2894 = vmatprep.subr.mxu0 0.0
    %2895 = vmatpush1.xpose.msra.mxu0 0.0
    %2896 = vmatprep.subr.mxu0 0.0
    %2897 = vmatpush1.xpose.msra.mxu0 0.0
    %2898 = vmatprep.subr.mxu0 0.0
    %2899 = vmatpush1.xpose.msra.mxu0 0.0
    %2900 = vmatprep.subr.mxu0 0.0
    %2901 = vmatpush1.xpose.msra.mxu0 0.0
    %2902 = vmatprep.subr.mxu0 0.0
    %2903 = vmatpush1.xpose.msra.mxu0 0.0
    %2904 = vmatprep.subr.mxu0 0.0
    %2905 = vmatpush1.xpose.msra.mxu0 0.0
    %2906 = vmatprep.subr.mxu0 0.0
    %2907 = vmatpush1.xpose.msra.mxu0 0.0
    %2908 = vmatprep.subr.mxu0 0.0
    %2909 = vmatpush1.xpose.msra.mxu0 0.0
    %2910 = vmatprep.subr.mxu0 0.0
    %2911 = vmatpush1.xpose.msra.mxu0 0.0
    %2912 = vmatprep.subr.mxu0 0.0
    %2913 = vmatpush1.xpose.msra.mxu0 0.0
    %2914 = vmatprep.subr.mxu0 0.0
    %2915 = vmatpush1.xpose.msra.mxu0 0.0
    %2916 = vmatprep.subr.mxu0 0.0
    %2917 = vmatpush1.xpose.msra.mxu0 0.0
    %2918 = vmatprep.subr.mxu0 0.0
    %2919 = vmatpush1.xpose.msra.mxu0 0.0
    %2920 = vmatprep.subr.mxu0 0.0
    %2921 = vmatpush1.xpose.msra.mxu0 0.0
    %2922 = vmatprep.subr.mxu0 0.0
    %2923 = vmatpush1.xpose.msra.mxu0 0.0
    %2924 = vmatprep.subr.mxu0 0.0
    %2925 = vmatpush1.xpose.msra.mxu0 0.0
    %2926 = vmatprep.subr.mxu0 0.0
    %2927 = vmatpush1.xpose.msra.mxu0 0.0
    %2928 = vmatprep.subr.mxu0 0.0
    %2929 = vmatpush1.xpose.msra.mxu0 0.0
    %2930 = vmatprep.subr.mxu0 0.0
    %2931 = vmatpush1.xpose.msra.mxu0 0.0
    %2932 = vmatprep.subr.mxu0 0.0
    %2933 = vmatpush1.xpose.msra.mxu0 0.0
    %2934 = vmatprep.subr.mxu0 0.0
    %2935 = vmatpush1.xpose.msra.mxu0 0.0
    %2936 = vmatprep.subr.mxu0 0.0
    %2937 = vmatpush1.xpose.msra.mxu0 0.0
    %2938 = vmatprep.subr.mxu0 0.0
    %2939 = vmatpush1.xpose.msra.mxu0 0.0
    %2940 = vmatprep.subr.mxu0 0.0
    %2941 = vmatpush1.xpose.msra.mxu0 0.0
    %2942 = vmatprep.subr.mxu0 0.0
    %2943 = vmatpush1.xpose.msra.mxu0 0.0
    %2944 = vmatprep.subr.mxu0 0.0
    %2945 = vmatpush1.xpose.msra.mxu0 0.0
    %2946 = vmatprep.subr.mxu0 0.0
    %2947 = vmatpush1.xpose.msra.mxu0 0.0
    %2948 = vmatprep.subr.mxu0 0.0
    %2949 = vmatpush1.xpose.msra.mxu0 0.0
    %2950 = vmatprep.mubr.f32.mxu0 0.0
    %2951 = vmatmul.mubr.f32.gmra.mrb[0].mxu0 %v2878
    %v2952 = vpop.f32.mrb[0].mxu0
    %v2953 = vadd.f32 0.0, %v2952
    %v2954 = vpop.f32.mrb[0].mxu0
    %2955 = vdwg.mxu0
    %v2956 = vld [vmem:[%s1341] sm:$0x1]
    %v2957 = vld [vmem:[%s1343] sm:$0x1]
    %2959 = vset.pattern.permute.xlu0 0
    %2960 = vperm.xlu0 %2959, %v2957
    %v2961 = vpop.permute.xlu0 %2960
    %v2963 = vlaneseq
    %v2964 = vshrl.u32 %v2963, 7
    %v2965 = vsub.s32 0, %v2964
    %v2966 = vrot.slane %v2961, %v2965
    %v2968 = vsel %vm71, %v2956, 0
    %v2971 = vsel %vm75, %v2953, 0
    %2973 = vmatprep.subr.mxu0 0.0
    %2974 = vmatpush1.msra.mxu0 %v2971
    %2975 = vmatprep.subr.mxu0 0.0
    %2976 = vmatpush1.msra.mxu0 0.0
    %2977 = vmatprep.subr.mxu0 0.0
    %2978 = vmatpush1.msra.mxu0 0.0
    %2979 = vmatprep.subr.mxu0 0.0
    %2980 = vmatpush1.msra.mxu0 0.0
    %2981 = vmatprep.subr.mxu0 0.0
    %2982 = vmatpush1.msra.mxu0 0.0
    %2983 = vmatprep.subr.mxu0 0.0
    %2984 = vmatpush1.msra.mxu0 0.0
    %2985 = vmatprep.subr.mxu0 0.0
    %2986 = vmatpush1.msra.mxu0 0.0
    %2987 = vmatprep.subr.mxu0 0.0
    %2988 = vmatpush1.msra.mxu0 0.0
    %2989 = vmatprep.subr.mxu0 0.0
    %2990 = vmatpush1.msra.mxu0 0.0
    %2991 = vmatprep.subr.mxu0 0.0
    %2992 = vmatpush1.msra.mxu0 0.0
    %2993 = vmatprep.subr.mxu0 0.0
    %2994 = vmatpush1.msra.mxu0 0.0
    %2995 = vmatprep.subr.mxu0 0.0
    %2996 = vmatpush1.msra.mxu0 0.0
    %2997 = vmatprep.subr.mxu0 0.0
    %2998 = vmatpush1.msra.mxu0 0.0
    %2999 = vmatprep.subr.mxu0 0.0
    %3000 = vmatpush1.msra.mxu0 0.0
    %3001 = vmatprep.subr.mxu0 0.0
    %3002 = vmatpush1.msra.mxu0 0.0
    %3003 = vmatprep.subr.mxu0 0.0
    %3004 = vmatpush1.msra.mxu0 0.0
    %3005 = vmatprep.subr.mxu0 0.0
    %3006 = vmatpush1.msra.mxu0 0.0
    %3007 = vmatprep.subr.mxu0 0.0
    %3008 = vmatpush1.msra.mxu0 0.0
    %3009 = vmatprep.subr.mxu0 0.0
    %3010 = vmatpush1.msra.mxu0 0.0
    %3011 = vmatprep.subr.mxu0 0.0
    %3012 = vmatpush1.msra.mxu0 0.0
    %3013 = vmatprep.subr.mxu0 0.0
    %3014 = vmatpush1.msra.mxu0 0.0
    %3015 = vmatprep.subr.mxu0 0.0
    %3016 = vmatpush1.msra.mxu0 0.0
    %3017 = vmatprep.subr.mxu0 0.0
    %3018 = vmatpush1.msra.mxu0 0.0
    %3019 = vmatprep.subr.mxu0 0.0
    %3020 = vmatpush1.msra.mxu0 0.0
    %3021 = vmatprep.subr.mxu0 0.0
    %3022 = vmatpush1.msra.mxu0 0.0
    %3023 = vmatprep.subr.mxu0 0.0
    %3024 = vmatpush1.msra.mxu0 0.0
    %3025 = vmatprep.subr.mxu0 0.0
    %3026 = vmatpush1.msra.mxu0 0.0
    %3027 = vmatprep.subr.mxu0 0.0
    %3028 = vmatpush1.msra.mxu0 0.0
    %3029 = vmatprep.subr.mxu0 0.0
    %3030 = vmatpush1.msra.mxu0 0.0
    %3031 = vmatprep.subr.mxu0 0.0
    %3032 = vmatpush1.msra.mxu0 0.0
    %3033 = vmatprep.subr.mxu0 0.0
    %3034 = vmatpush1.msra.mxu0 0.0
    %3035 = vmatprep.subr.mxu0 0.0
    %3036 = vmatpush1.msra.mxu0 0.0
    %3037 = vmatprep.mubr.f32.mxu0 0.0
    %3038 = vmatmul.mubr.f32.gmra.mrb[0].mxu0 %v2968
    %v3039 = vpop.f32.mrb[0].mxu0
    %v3040 = vadd.f32 %v2966, %v3039
    %v3041 = vpop.f32.mrb[0].mxu0
    %3042 = vdwg.mxu0
    %v3043 = vadd.f32 %v2483, %v3040
    %v3044 = vld [vmem:[%s1431] sm:$0x1]
    %v3045 = vld [vmem:[%s1433] sm:$0x1]
    %v3046 = vadd.f32 %v3043, 0.0
    %v3047 = vsub.f32 %v3043, %v3046
    %v3048 = vmul.f32 %v3047, %v3047
    %v3049 = vadd.f32 %v3048, 0.0
    %v3050 = vadd.f32 %v3049, 1e-05
    %v3051 = vrsqrt.pop %v3050
    %v3052 = vmul.f32 %v3047, %v3051
    %3054 = vset.pattern.permute.xlu0 0
    %3055 = vperm.xlu0 %3054, %v3044
    %v3056 = vpop.permute.xlu0 %3055
    %v3058 = vlaneseq
    %v3059 = vshrl.u32 %v3058, 7
    %v3060 = vsub.s32 0, %v3059
    %v3061 = vrot.slane %v3056, %v3060
    %v3062 = vmul.f32 %v3052, %v3061
    %3064 = vset.pattern.permute.xlu0 0
    %3065 = vperm.xlu0 %3064, %v3045
    %v3066 = vpop.permute.xlu0 %3065
    %v3068 = vlaneseq
    %v3069 = vshrl.u32 %v3068, 7
    %v3070 = vsub.s32 0, %v3069
    %v3071 = vrot.slane %v3066, %v3070
    %v3072 = vadd.f32 %v3062, %v3071
    %v3073 = vld [vmem:[%s1462] sm:$0xf]
    %v3074 = vld [vmem:[%s1464] sm:$0xf]
    %3076 = vset.pattern.permute.xlu0 0
    %3077 = vperm.xlu0 %3076, %v3074
    %v3078 = vpop.permute.xlu0 %3077
    %v3081 = vsel %vm71, %v3073, 0
    %v3084 = vsel %vm75, %v3072, 0
    %3086 = vmatprep.subr.mxu0 0.0
    %3087 = vmatpush1.msra.mxu0 %v3084
    %3088 = vmatprep.subr.mxu0 0.0
    %3089 = vmatpush1.msra.mxu0 0.0
    %3090 = vmatprep.subr.mxu0 0.0
    %3091 = vmatpush1.msra.mxu0 0.0
    %3092 = vmatprep.subr.mxu0 0.0
    %3093 = vmatpush1.msra.mxu0 0.0
    %3094 = vmatprep.subr.mxu0 0.0
    %3095 = vmatpush1.msra.mxu0 0.0
    %3096 = vmatprep.subr.mxu0 0.0
    %3097 = vmatpush1.msra.mxu0 0.0
    %3098 = vmatprep.subr.mxu0 0.0
    %3099 = vmatpush1.msra.mxu0 0.0
    %3100 = vmatprep.subr.mxu0 0.0
    %3101 = vmatpush1.msra.mxu0 0.0
    %3102 = vmatprep.subr.mxu0 0.0
    %3103 = vmatpush1.msra.mxu0 0.0
    %3104 = vmatprep.subr.mxu0 0.0
    %3105 = vmatpush1.msra.mxu0 0.0
    %3106 = vmatprep.subr.mxu0 0.0
    %3107 = vmatpush1.msra.mxu0 0.0
    %3108 = vmatprep.subr.mxu0 0.0
    %3109 = vmatpush1.msra.mxu0 0.0
    %3110 = vmatprep.subr.mxu0 0.0
    %3111 = vmatpush1.msra.mxu0 0.0
    %3112 = vmatprep.subr.mxu0 0.0
    %3113 = vmatpush1.msra.mxu0 0.0
    %3114 = vmatprep.subr.mxu0 0.0
    %3115 = vmatpush1.msra.mxu0 0.0
    %3116 = vmatprep.subr.mxu0 0.0
    %3117 = vmatpush1.msra.mxu0 0.0
    %3118 = vmatprep.subr.mxu0 0.0
    %3119 = vmatpush1.msra.mxu0 0.0
    %3120 = vmatprep.subr.mxu0 0.0
    %3121 = vmatpush1.msra.mxu0 0.0
    %3122 = vmatprep.subr.mxu0 0.0
    %3123 = vmatpush1.msra.mxu0 0.0
    %3124 = vmatprep.subr.mxu0 0.0
    %3125 = vmatpush1.msra.mxu0 0.0
    %3126 = vmatprep.subr.mxu0 0.0
    %3127 = vmatpush1.msra.mxu0 0.0
    %3128 = vmatprep.subr.mxu0 0.0
    %3129 = vmatpush1.msra.mxu0 0.0
    %3130 = vmatprep.subr.mxu0 0.0
    %3131 = vmatpush1.msra.mxu0 0.0
    %3132 = vmatprep.subr.mxu0 0.0
    %3133 = vmatpush1.msra.mxu0 0.0
    %3134 = vmatprep.subr.mxu0 0.0
    %3135 = vmatpush1.msra.mxu0 0.0
    %3136 = vmatprep.subr.mxu0 0.0
    %3137 = vmatpush1.msra.mxu0 0.0
    %3138 = vmatprep.subr.mxu0 0.0
    %3139 = vmatpush1.msra.mxu0 0.0
    %3140 = vmatprep.subr.mxu0 0.0
    %3141 = vmatpush1.msra.mxu0 0.0
    %3142 = vmatprep.subr.mxu0 0.0
    %3143 = vmatpush1.msra.mxu0 0.0
    %3144 = vmatprep.subr.mxu0 0.0
    %3145 = vmatpush1.msra.mxu0 0.0
    %3146 = vmatprep.subr.mxu0 0.0
    %3147 = vmatpush1.msra.mxu0 0.0
    %3148 = vmatprep.subr.mxu0 0.0
    %3149 = vmatpush1.msra.mxu0 0.0
    %3150 = vmatprep.mubr.f32.mxu0 0.0
    %3151 = vmatmul.mubr.f32.gmra.mrb[0].mxu0 %v3081
    %v3152 = vpop.f32.mrb[0].mxu0
    %v3153 = vadd.f32 %v3078, %v3152
    %v3154 = vpop.f32.mrb[0].mxu0
    %3155 = vdwg.mxu0
    %v3156 = vmul.f32 %v3153, 0.5
    %v3157 = vmul.f32 %v3153, 0.70710677
    %v3158 = verf.f32.pop %v3157
    %v3159 = vadd.f32 %v3158, 1.0
    %v3160 = vmul.f32 %v3156, %v3159
    %v3161 = vld [vmem:[%s1552] sm:$0x1]
    %v3162 = vld [vmem:[%s1554] sm:$0x1]
    %3164 = vset.pattern.permute.xlu0 0
    %3165 = vperm.xlu0 %3164, %v3162
    %v3166 = vpop.permute.xlu0 %3165
    %v3168 = vlaneseq
    %v3169 = vshrl.u32 %v3168, 7
    %v3170 = vsub.s32 0, %v3169
    %v3171 = vrot.slane %v3166, %v3170
    %v3173 = vsel %vm749, %v3161, 0
    %v3176 = vsel %vm753, %v3160, 0
    %3178 = vmatprep.subr.mxu0 0.0
    %3179 = vmatpush1.msra.mxu0 %v3176
    %3180 = vmatprep.subr.mxu0 0.0
    %3181 = vmatpush1.msra.mxu0 0.0
    %3182 = vmatprep.subr.mxu0 0.0
    %3183 = vmatpush1.msra.mxu0 0.0
    %3184 = vmatprep.subr.mxu0 0.0
    %3185 = vmatpush1.msra.mxu0 0.0
    %3186 = vmatprep.subr.mxu0 0.0
    %3187 = vmatpush1.msra.mxu0 0.0
    %3188 = vmatprep.subr.mxu0 0.0
    %3189 = vmatpush1.msra.mxu0 0.0
    %3190 = vmatprep.subr.mxu0 0.0
    %3191 = vmatpush1.msra.mxu0 0.0
    %3192 = vmatprep.subr.mxu0 0.0
    %3193 = vmatpush1.msra.mxu0 0.0
    %3194 = vmatprep.subr.mxu0 0.0
    %3195 = vmatpush1.msra.mxu0 0.0
    %3196 = vmatprep.subr.mxu0 0.0
    %3197 = vmatpush1.msra.mxu0 0.0
    %3198 = vmatprep.subr.mxu0 0.0
    %3199 = vmatpush1.msra.mxu0 0.0
    %3200 = vmatprep.subr.mxu0 0.0
    %3201 = vmatpush1.msra.mxu0 0.0
    %3202 = vmatprep.subr.mxu0 0.0
    %3203 = vmatpush1.msra.mxu0 0.0
    %3204 = vmatprep.subr.mxu0 0.0
    %3205 = vmatpush1.msra.mxu0 0.0
    %3206 = vmatprep.subr.mxu0 0.0
    %3207 = vmatpush1.msra.mxu0 0.0
    %3208 = vmatprep.subr.mxu0 0.0
    %3209 = vmatpush1.msra.mxu0 0.0
    %3210 = vmatprep.subr.mxu0 0.0
    %3211 = vmatpush1.msra.mxu0 0.0
    %3212 = vmatprep.subr.mxu0 0.0
    %3213 = vmatpush1.msra.mxu0 0.0
    %3214 = vmatprep.subr.mxu0 0.0
    %3215 = vmatpush1.msra.mxu0 0.0
    %3216 = vmatprep.subr.mxu0 0.0
    %3217 = vmatpush1.msra.mxu0 0.0
    %3218 = vmatprep.subr.mxu0 0.0
    %3219 = vmatpush1.msra.mxu0 0.0
    %3220 = vmatprep.subr.mxu0 0.0
    %3221 = vmatpush1.msra.mxu0 0.0
    %3222 = vmatprep.subr.mxu0 0.0
    %3223 = vmatpush1.msra.mxu0 0.0
    %3224 = vmatprep.subr.mxu0 0.0
    %3225 = vmatpush1.msra.mxu0 0.0
    %3226 = vmatprep.subr.mxu0 0.0
    %3227 = vmatpush1.msra.mxu0 0.0
    %3228 = vmatprep.subr.mxu0 0.0
    %3229 = vmatpush1.msra.mxu0 0.0
    %3230 = vmatprep.subr.mxu0 0.0
    %3231 = vmatpush1.msra.mxu0 0.0
    %3232 = vmatprep.subr.mxu0 0.0
    %3233 = vmatpush1.msra.mxu0 0.0
    %3234 = vmatprep.subr.mxu0 0.0
    %3235 = vmatpush1.msra.mxu0 0.0
    %3236 = vmatprep.subr.mxu0 0.0
    %3237 = vmatpush1.msra.mxu0 0.0
    %3238 = vmatprep.subr.mxu0 0.0
    %3239 = vmatpush1.msra.mxu0 0.0
    %3240 = vmatprep.subr.mxu0 0.0
    %3241 = vmatpush1.msra.mxu0 0.0
    %3242 = vmatprep.mubr.f32.mxu0 0.0
    %3243 = vmatmul.mubr.f32.gmra.mrb[0].mxu0 %v3173
    %v3244 = vpop.f32.mrb[0].mxu0
    %v3245 = vadd.f32 %v3171, %v3244
    %v3246 = vpop.f32.mrb[0].mxu0
    %3247 = vdwg.mxu0
    %v3248 = vadd.f32 %v3072, %v3245
    %v3249 = vld [vmem:[%s1642] sm:$0x1]
    %v3250 = vld [vmem:[%s1644] sm:$0x1]
    %v3251 = vadd.f32 %v3248, 0.0
    %v3252 = vsub.f32 %v3248, %v3251
    %v3253 = vmul.f32 %v3252, %v3252
    %v3254 = vadd.f32 %v3253, 0.0
    %v3255 = vadd.f32 %v3254, 1e-05
    %v3256 = vrsqrt.pop %v3255
    %v3257 = vmul.f32 %v3252, %v3256
    %3259 = vset.pattern.permute.xlu0 0
    %3260 = vperm.xlu0 %3259, %v3249
    %v3261 = vpop.permute.xlu0 %3260
    %v3263 = vlaneseq
    %v3264 = vshrl.u32 %v3263, 7
    %v3265 = vsub.s32 0, %v3264
    %v3266 = vrot.slane %v3261, %v3265
    %v3267 = vmul.f32 %v3257, %v3266
    %3269 = vset.pattern.permute.xlu0 0
    %3270 = vperm.xlu0 %3269, %v3250
    %v3271 = vpop.permute.xlu0 %3270
    %v3273 = vlaneseq
    %v3274 = vshrl.u32 %v3273, 7
    %v3275 = vsub.s32 0, %v3274
    %v3276 = vrot.slane %v3271, %v3275
    %v3277 = vadd.f32 %v3267, %v3276
    %vm3278 = vcmp.gt.f32.partialorder %v3277, 0.0
    %v3279 = vmin.f32 %v3277, 0.0
    %v3280 = vmul.f32 %v3279, 1.442695
    %v3281 = vpow.pop %v3280
    %v3282 = vsub.f32 %v3281, 1.0
    %v3283 = vsel %vm3278, %v3277, %v3282
    %v3284 = vadd.f32 %v3283, %v1683
    %s3285 = scalar_lea.vmem [#allocation2], 1
    %3286 = vst.msk [vmem:[%s3285] sm:$0x1] %vm1680, %v3284
    // Predicated region
    $region70: #{tpu_custom_call.1} parent=1 // pred_check
      _
    $region71: #{tpu_custom_call.1} parent=1 // pred_check_branch
      %3288 = sbr.rel (0) target = $region73
    $region72: #{tpu_custom_call.1} parent=1 // pred_region
      %s3290 = ssub.s32 32, 32
      %3291 = vsyncadd [#allocation3], %s3290
      %s3292 = sshll.u32 [#allocation2], 4
      %s3293 = int_to_ptr.vmem [resolvable:$true] %s3292
      %3298 = dma.vmem_to_hbm [thread:$0]  %s3293, 32, %s17, [#allocation3], 16, 16, 1
    $region73: #{tpu_custom_call.1} parent=1 // pred_fallthru
      _
    // Predicated region
    $region74: #{tpu_custom_call.1} parent=1 // pred_check
      _
    $region75: #{tpu_custom_call.1} parent=1 // pred_check_branch
      %3300 = sbr.rel (0) target = $region77
    $region76: #{tpu_custom_call.1} parent=1 // pred_region
      %3301 = dma.done [#allocation3], 32
    $region77: #{tpu_custom_call.1} parent=1 // pred_fallthru
      _
    %3302 = vsyncpa [#allocation3], 1

</llo_original>
